<compile_context>
chip_gen: v5e
topology: v5e:2x2
jax: 0.10.0
libtpu: 0.0.40
codegen_flags: <defaults>
</compile_context>

<pallas_src>
import math

import jax
import jax.numpy as jnp
from jax import lax
from jax.experimental import pallas as pl
from jax.experimental.pallas import tpu as pltpu

# ----------------------------- model config ---------------------------------
BATCH = 2
SRC_LEN = 8          # encoder sequence length
TGT_LEN = 8          # decoder sequence length
HID = 32             # hidden size
HEADS = 2
D_HEAD = HID // HEADS
FFN = 64
VOCAB = 64
RANK = 8             # LoRA r
LORA_ALPHA = 32      # LoRA alpha -> scaling = alpha / r = 4.0
NEG_INF = -1e9

# Stacked weight index maps (see init_params):
#   attn_w (12,H,H): 0..3 enc q,k,v,o | 4..7 dec-self q,k,v,o | 8..11 cross q,k,v,o
#   lora_a (6,H,R) / lora_b (6,R,H): 0 enc-q, 1 enc-v, 2 self-q, 3 self-v, 4 cross-q, 5 cross-v
#   ln (10,H): rows (2i, 2i+1) = (scale, bias) for LN i; enc uses 0,1; dec uses 2,3,4
#   ffn_w1 (2,H,FFN) / ffn_w2 (2,FFN,H): 0 enc, 1 dec


# ----------------------------- fused kernel ----------------------------------
def _fused_seq2seq_kernel(enc_x_ref, dec_x_ref, emask_ref, dmask_ref, labels_ref,
                          attn_w_ref, lora_a_ref, lora_b_ref, ln_ref,
                          ffn_w1_ref, ffn_w2_ref, lm_head_ref,
                          logits_ref, loss_ref):
    b, s, h = enc_x_ref.shape
    t = dec_x_ref.shape[1]
    scaling = float(LORA_ALPHA) / float(RANK)
    inv_sqrt_d = 1.0 / math.sqrt(D_HEAD)

    def merged(w_idx, ab_idx):
        # In-kernel LoRA merge (exact with dropout off / frozen adapters).
        return attn_w_ref[w_idx] + scaling * jnp.dot(
            lora_a_ref[ab_idx], lora_b_ref[ab_idx],
            preferred_element_type=jnp.float32)

    def layer_norm(x2d, idx, eps=1e-6):
        scale_row = ln_ref[2 * idx:2 * idx + 1, :]       # (1, H)
        bias_row = ln_ref[2 * idx + 1:2 * idx + 2, :]    # (1, H)
        mu = jnp.mean(x2d, axis=-1, keepdims=True)
        var = jnp.mean((x2d - mu) ** 2, axis=-1, keepdims=True)
        return (x2d - mu) * lax.rsqrt(var + eps) * scale_row + bias_row

    def mha(xq, xkv, bias, bq, tq, tk, wq, wk, wv, wo):
        # Per-head projections via static weight slices; output projection is
        # accumulated per head, so activations are never lane-sliced or
        # lane-concatenated. Static 2-iteration unroll (HEADS=2).
        out = jnp.zeros((bq * tq, h), jnp.float32)
        for hd in range(HEADS):
            lo = hd * D_HEAD
            hi = lo + D_HEAD
            qh = jnp.dot(xq, wq[:, lo:hi],
                         preferred_element_type=jnp.float32).reshape(bq, tq, D_HEAD)
            kh = jnp.dot(xkv, wk[:, lo:hi],
                         preferred_element_type=jnp.float32).reshape(bq, tk, D_HEAD)
            vh = jnp.dot(xkv, wv[:, lo:hi],
                         preferred_element_type=jnp.float32).reshape(bq, tk, D_HEAD)
            sc = jnp.einsum("bqd,bkd->bqk", qh, kh,
                            preferred_element_type=jnp.float32) * inv_sqrt_d + bias
            sc = sc - jnp.max(sc, axis=-1, keepdims=True)
            p = jnp.exp(sc)
            p = p * pl.reciprocal(jnp.sum(p, axis=-1, keepdims=True), approx=True)
            ctx = jnp.einsum("bqk,bkd->bqd", p, vh,
                             preferred_element_type=jnp.float32).reshape(bq * tq, D_HEAD)
            out = out + jnp.dot(ctx, wo[lo:hi, :], preferred_element_type=jnp.float32)
        return out

    # ----- additive attention biases: built once per invocation, f32 -----
    emask = emask_ref[...]                                               # (B, S)
    enc_bias = (1.0 - emask)[:, None, :] * NEG_INF                       # (B, 1, S)
    dmask = dmask_ref[...]                                               # (B, T)
    row = lax.broadcasted_iota(jnp.int32, (t, t), 0)
    col = lax.broadcasted_iota(jnp.int32, (t, t), 1)
    causal = (col <= row).astype(jnp.float32)                            # (T, T)
    self_bias = (1.0 - causal[None, :, :] * dmask[:, None, :]) * NEG_INF  # (B, T, T)

    # ---------------- encoder layer (self-attn + FFN) ----------------
    ex = enc_x_ref[...].reshape(b * s, h)
    attn = mha(ex, ex, enc_bias, b, s, s,
               merged(0, 0), attn_w_ref[1], merged(2, 1), attn_w_ref[3])
    hx = layer_norm(ex + attn, 0)
    mid = jnp.maximum(
        jnp.dot(hx, ffn_w1_ref[0], preferred_element_type=jnp.float32), 0.0)
    enc_out = layer_norm(
        hx + jnp.dot(mid, ffn_w2_ref[0], preferred_element_type=jnp.float32), 1)

    # ---------------- decoder layer (self-attn + cross-attn + FFN) ----------------
    dx = dec_x_ref[...].reshape(b * t, h)
    attn = mha(dx, dx, self_bias, b, t, t,
               merged(4, 2), attn_w_ref[5], merged(6, 3), attn_w_ref[7])
    hx = layer_norm(dx + attn, 2)

    attn = mha(hx, enc_out, enc_bias, b, t, s,
               merged(8, 4), attn_w_ref[9], merged(10, 5), attn_w_ref[11])
    hx = layer_norm(hx + attn, 3)

    mid = jnp.maximum(
        jnp.dot(hx, ffn_w1_ref[1], preferred_element_type=jnp.float32), 0.0)
    dec_out = layer_norm(
        hx + jnp.dot(mid, ffn_w2_ref[1], preferred_element_type=jnp.float32), 4)

    # ---------------- fused LM head + cross entropy (ignore_index < 0) ----------------
    logits = jnp.dot(dec_out, lm_head_ref[...],
                     preferred_element_type=jnp.float32)                 # (B*T, V)
    n, v = logits.shape
    logits_ref[...] = logits.reshape(b, t, v)

    labels = labels_ref[...]                                             # (B*T, 1) i32
    lab_col = lax.broadcasted_iota(jnp.int32, (n, v), 1)
    valid = (labels >= 0).astype(jnp.float32)                            # (B*T, 1)
    m = jnp.max(logits, axis=-1, keepdims=True)
    lse = m + jnp.log(jnp.sum(jnp.exp(logits - m), axis=-1, keepdims=True))
    # No materialized one-hot: gate logits with a compare and reduce.
    correct = jnp.sum(jnp.where(lab_col == labels, logits, 0.0),
                      axis=-1, keepdims=True)
    nll = (lse - correct) * valid
    loss_ref[0, 0] = jnp.sum(nll) / jnp.maximum(jnp.sum(valid), 1.0)


# ----------------------------- kernel wrapper ---------------------------------
def fused_forward(enc_x, dec_x, emask_f, dmask_f, labels2d,
                  attn_w, lora_a, lora_b, ln_w, ffn_w1, ffn_w2, lm_head):
    b, _, _ = enc_x.shape
    t = dec_x.shape[1]
    v = lm_head.shape[1]
    vmem = lambda: pl.BlockSpec(memory_space=pltpu.MemorySpace.VMEM)
    return pl.pallas_call(
        _fused_seq2seq_kernel,
        in_specs=[vmem() for _ in range(12)],
        out_specs=(vmem(),
                   pl.BlockSpec(memory_space=pltpu.MemorySpace.SMEM)),
        out_shape=(jax.ShapeDtypeStruct((b, t, v), jnp.float32),
                   jax.ShapeDtypeStruct((1, 1), jnp.float32)),
    )(enc_x, dec_x, emask_f, dmask_f, labels2d,
      attn_w, lora_a, lora_b, ln_w, ffn_w1, ffn_w2, lm_head)


# ----------------------------- params & forward --------------------------------
def init_params(key):
    ks = iter(jax.random.split(key, 8))

    def rnd(shape, s=0.02):
        return jax.random.normal(next(ks), shape, jnp.float32) * s

    # NOTE: real LoRA inits lora_B to zero (identity fwd); small nonzero values
    # are used so the LoRA path is actually exercised by this synthetic kernel.
    ln_rows = jnp.stack(
        [jnp.ones((HID,), jnp.float32) if i % 2 == 0
         else jnp.zeros((HID,), jnp.float32) for i in range(10)], axis=0)
    return dict(
        embed=rnd((VOCAB, HID), 0.05),
        attn_w=rnd((12, HID, HID)),
        lora_a=rnd((6, HID, RANK)),
        lora_b=rnd((6, RANK, HID)),
        ln=ln_rows,
        ffn_w1=rnd((2, HID, FFN)),
        ffn_w2=rnd((2, FFN, HID)),
        lm_head=rnd((HID, VOCAB)),
    )


def peft_seq2seq_forward(params, input_ids, attention_mask,
                         decoder_input_ids, decoder_attention_mask, labels):
    """Mirrors PeftModelForSeq2SeqLM.forward for a LoRA PeftConfig: delegates to
    the LoRA-wrapped seq2seq base model and returns (loss, logits)."""
    # TODO(synk): embedding gather stays in plain JAX (tiny gather, no clean Pallas win).
    emb = params["embed"]
    enc_x = emb[input_ids]                       # (B, S, H)
    dec_x = emb[decoder_input_ids]               # (B, T, H)

    emask_f = attention_mask.astype(jnp.float32)
    dmask_f = decoder_attention_mask.astype(jnp.float32)
    b, t = decoder_input_ids.shape
    labels2d = labels.reshape(b * t, 1).astype(jnp.int32)

    logits, loss = fused_forward(
        enc_x, dec_x, emask_f, dmask_f, labels2d,
        params["attn_w"], params["lora_a"], params["lora_b"], params["ln"],
        params["ffn_w1"], params["ffn_w2"], params["lm_head"])
    return loss[0, 0], logits


# --------------------------------- main ---------------------------------------
if __name__ == "__main__":
    key = jax.random.PRNGKey(0)
    k_par, k_in, k_dec, k_lab = jax.random.split(key, 4)

    params = init_params(k_par)

    input_ids = jax.random.randint(k_in, (BATCH, SRC_LEN), 0, VOCAB, dtype=jnp.int32)
    attention_mask = jnp.ones((BATCH, SRC_LEN), jnp.int32).at[1, -2:].set(0)
    decoder_input_ids = jax.random.randint(k_dec, (BATCH, TGT_LEN), 0, VOCAB, dtype=jnp.int32)
    decoder_attention_mask = jnp.ones((BATCH, TGT_LEN), jnp.int32)
    labels = jax.random.randint(k_lab, (BATCH, TGT_LEN), 0, VOCAB, dtype=jnp.int32)
    labels = labels.at[0, -1].set(-100)   # exercise ignore_index path

    fwd = jax.jit(peft_seq2seq_forward)
    loss, logits = fwd(params, input_ids, attention_mask,
                       decoder_input_ids, decoder_attention_mask, labels)
    jax.block_until_ready((loss, logits))

    assert logits.shape == (BATCH, TGT_LEN, VOCAB)
    assert jnp.isfinite(loss)
    print("KERNEL_OK")
</pallas_src>

<mosaic_0001>
module attributes {stable_mosaic.version = 11 : i64} {
  func.func @_fused_seq2seq_kernel(%arg0: memref<2x8x32xf32, #tpu.memory_space<vmem>>, %arg1: memref<2x8x32xf32, #tpu.memory_space<vmem>>, %arg2: memref<2x8xf32, #tpu.memory_space<vmem>>, %arg3: memref<2x8xf32, #tpu.memory_space<vmem>>, %arg4: memref<16x1xi32, #tpu.memory_space<vmem>>, %arg5: memref<12x32x32xf32, #tpu.memory_space<vmem>>, %arg6: memref<6x32x8xf32, #tpu.memory_space<vmem>>, %arg7: memref<6x8x32xf32, #tpu.memory_space<vmem>>, %arg8: memref<10x32xf32, #tpu.memory_space<vmem>>, %arg9: memref<2x32x64xf32, #tpu.memory_space<vmem>>, %arg10: memref<2x64x32xf32, #tpu.memory_space<vmem>>, %arg11: memref<32x64xf32, #tpu.memory_space<vmem>>, %arg12: memref<2x8x64xf32, #tpu.memory_space<vmem>>, %arg13: memref<1x1xf32, #tpu.memory_space<smem>>) attributes {dimension_semantics = [], scalar_prefetch = 0 : i64, scratch_operands = 0 : i64, tpu.core_type = #tpu.core_type<tc>} {
    %c0 = arith.constant 0 : index
    %c0_0 = arith.constant 0 : index
    %0 = vector.load %arg2[%c0, %c0_0] : memref<2x8xf32, #tpu.memory_space<vmem>>, vector<2x8xf32>
    %cst = arith.constant 1.000000e+00 : f32
    %1 = vector.broadcast %cst : f32 to vector<2x8xf32>
    %2 = arith.subf %1, %0 : vector<2x8xf32>
    %3 = vector.shape_cast %2 : vector<2x8xf32> to vector<2x1x8xf32>
    %cst_1 = arith.constant -1.000000e+09 : f32
    %4 = vector.broadcast %cst_1 : f32 to vector<2x1x8xf32>
    %5 = arith.mulf %3, %4 : vector<2x1x8xf32>
    %c0_2 = arith.constant 0 : index
    %c0_3 = arith.constant 0 : index
    %6 = vector.load %arg3[%c0_2, %c0_3] : memref<2x8xf32, #tpu.memory_space<vmem>>, vector<2x8xf32>
    %7 = tpu.iota {dimensions = array<i32: 0>} : vector<8x8xi32>
    %8 = tpu.iota {dimensions = array<i32: 1>} : vector<8x8xi32>
    %9 = arith.cmpi sle, %8, %7 : vector<8x8xi32>
    %10 = arith.extui %9 : vector<8x8xi1> to vector<8x8xi32>
    %11 = arith.sitofp %10 : vector<8x8xi32> to vector<8x8xf32>
    %12 = vector.shape_cast %11 : vector<8x8xf32> to vector<1x8x8xf32>
    %13 = vector.shape_cast %6 : vector<2x8xf32> to vector<2x1x8xf32>
    %14 = vector.broadcast %12 : vector<1x8x8xf32> to vector<2x8x8xf32>
    %15 = vector.broadcast %13 : vector<2x1x8xf32> to vector<2x8x8xf32>
    %16 = arith.mulf %14, %15 : vector<2x8x8xf32>
    %cst_4 = arith.constant 1.000000e+00 : f32
    %17 = vector.broadcast %cst_4 : f32 to vector<2x8x8xf32>
    %18 = arith.subf %17, %16 : vector<2x8x8xf32>
    %cst_5 = arith.constant -1.000000e+09 : f32
    %19 = vector.broadcast %cst_5 : f32 to vector<2x8x8xf32>
    %20 = arith.mulf %18, %19 : vector<2x8x8xf32>
    %c0_6 = arith.constant 0 : index
    %c0_7 = arith.constant 0 : index
    %c0_8 = arith.constant 0 : index
    %21 = vector.load %arg0[%c0_6, %c0_7, %c0_8] : memref<2x8x32xf32, #tpu.memory_space<vmem>>, vector<2x8x32xf32>
    %22 = vector.shape_cast %21 : vector<2x8x32xf32> to vector<16x32xf32>
    %c0_9 = arith.constant 0 : index
    %c0_10 = arith.constant 0 : index
    %c0_11 = arith.constant 0 : index
    %23 = vector.load %arg5[%c0_9, %c0_10, %c0_11] : memref<12x32x32xf32, #tpu.memory_space<vmem>>, vector<1x32x32xf32>
    %24 = vector.shape_cast %23 : vector<1x32x32xf32> to vector<32x32xf32>
    %c0_12 = arith.constant 0 : index
    %c0_13 = arith.constant 0 : index
    %c0_14 = arith.constant 0 : index
    %25 = vector.load %arg6[%c0_12, %c0_13, %c0_14] : memref<6x32x8xf32, #tpu.memory_space<vmem>>, vector<1x32x8xf32>
    %26 = vector.shape_cast %25 : vector<1x32x8xf32> to vector<32x8xf32>
    %c0_15 = arith.constant 0 : index
    %c0_16 = arith.constant 0 : index
    %c0_17 = arith.constant 0 : index
    %27 = vector.load %arg7[%c0_15, %c0_16, %c0_17] : memref<6x8x32xf32, #tpu.memory_space<vmem>>, vector<1x8x32xf32>
    %28 = vector.shape_cast %27 : vector<1x8x32xf32> to vector<8x32xf32>
    %cst_18 = arith.constant dense<0.000000e+00> : vector<32x32xf32>
    %29 = tpu.matmul %26, %28, %cst_18 {dimension_numbers = #tpu.dot_dimension_numbers<[1], [0], [0], [1], [0, 0, 1, 1], [], []>} : vector<32x8xf32>, vector<8x32xf32>, vector<32x32xf32> -> vector<32x32xf32>
    %cst_19 = arith.constant 4.000000e+00 : f32
    %30 = vector.broadcast %cst_19 : f32 to vector<32x32xf32>
    %31 = arith.mulf %30, %29 : vector<32x32xf32>
    %32 = arith.addf %24, %31 : vector<32x32xf32>
    %c1 = arith.constant 1 : index
    %c0_20 = arith.constant 0 : index
    %c0_21 = arith.constant 0 : index
    %33 = vector.load %arg5[%c1, %c0_20, %c0_21] : memref<12x32x32xf32, #tpu.memory_space<vmem>>, vector<1x32x32xf32>
    %34 = vector.shape_cast %33 : vector<1x32x32xf32> to vector<32x32xf32>
    %c2 = arith.constant 2 : index
    %c0_22 = arith.constant 0 : index
    %c0_23 = arith.constant 0 : index
    %35 = vector.load %arg5[%c2, %c0_22, %c0_23] : memref<12x32x32xf32, #tpu.memory_space<vmem>>, vector<1x32x32xf32>
    %36 = vector.shape_cast %35 : vector<1x32x32xf32> to vector<32x32xf32>
    %c1_24 = arith.constant 1 : index
    %c0_25 = arith.constant 0 : index
    %c0_26 = arith.constant 0 : index
    %37 = vector.load %arg6[%c1_24, %c0_25, %c0_26] : memref<6x32x8xf32, #tpu.memory_space<vmem>>, vector<1x32x8xf32>
    %38 = vector.shape_cast %37 : vector<1x32x8xf32> to vector<32x8xf32>
    %c1_27 = arith.constant 1 : index
    %c0_28 = arith.constant 0 : index
    %c0_29 = arith.constant 0 : index
    %39 = vector.load %arg7[%c1_27, %c0_28, %c0_29] : memref<6x8x32xf32, #tpu.memory_space<vmem>>, vector<1x8x32xf32>
    %40 = vector.shape_cast %39 : vector<1x8x32xf32> to vector<8x32xf32>
    %cst_30 = arith.constant dense<0.000000e+00> : vector<32x32xf32>
    %41 = tpu.matmul %38, %40, %cst_30 {dimension_numbers = #tpu.dot_dimension_numbers<[1], [0], [0], [1], [0, 0, 1, 1], [], []>} : vector<32x8xf32>, vector<8x32xf32>, vector<32x32xf32> -> vector<32x32xf32>
    %cst_31 = arith.constant 4.000000e+00 : f32
    %42 = vector.broadcast %cst_31 : f32 to vector<32x32xf32>
    %43 = arith.mulf %42, %41 : vector<32x32xf32>
    %44 = arith.addf %36, %43 : vector<32x32xf32>
    %c3 = arith.constant 3 : index
    %c0_32 = arith.constant 0 : index
    %c0_33 = arith.constant 0 : index
    %45 = vector.load %arg5[%c3, %c0_32, %c0_33] : memref<12x32x32xf32, #tpu.memory_space<vmem>>, vector<1x32x32xf32>
    %46 = vector.shape_cast %45 : vector<1x32x32xf32> to vector<32x32xf32>
    %cst_34 = arith.constant 0.000000e+00 : f32
    %47 = vector.broadcast %cst_34 : f32 to vector<16x32xf32>
    %48 = vector.extract_strided_slice %32 {offsets = [0, 0], sizes = [32, 16], strides = [1, 1]} : vector<32x32xf32> to vector<32x16xf32>
    %cst_35 = arith.constant dense<0.000000e+00> : vector<16x16xf32>
    %49 = tpu.matmul %22, %48, %cst_35 {dimension_numbers = #tpu.dot_dimension_numbers<[1], [0], [0], [1], [0, 0, 1, 1], [], []>} : vector<16x32xf32>, vector<32x16xf32>, vector<16x16xf32> -> vector<16x16xf32>
    %50 = vector.shape_cast %49 : vector<16x16xf32> to vector<2x8x16xf32>
    %51 = vector.extract_strided_slice %34 {offsets = [0, 0], sizes = [32, 16], strides = [1, 1]} : vector<32x32xf32> to vector<32x16xf32>
    %cst_36 = arith.constant dense<0.000000e+00> : vector<16x16xf32>
    %52 = tpu.matmul %22, %51, %cst_36 {dimension_numbers = #tpu.dot_dimension_numbers<[1], [0], [0], [1], [0, 0, 1, 1], [], []>} : vector<16x32xf32>, vector<32x16xf32>, vector<16x16xf32> -> vector<16x16xf32>
    %53 = vector.shape_cast %52 : vector<16x16xf32> to vector<2x8x16xf32>
    %54 = vector.extract_strided_slice %44 {offsets = [0, 0], sizes = [32, 16], strides = [1, 1]} : vector<32x32xf32> to vector<32x16xf32>
    %cst_37 = arith.constant dense<0.000000e+00> : vector<16x16xf32>
    %55 = tpu.matmul %22, %54, %cst_37 {dimension_numbers = #tpu.dot_dimension_numbers<[1], [0], [0], [1], [0, 0, 1, 1], [], []>} : vector<16x32xf32>, vector<32x16xf32>, vector<16x16xf32> -> vector<16x16xf32>
    %56 = vector.shape_cast %55 : vector<16x16xf32> to vector<2x8x16xf32>
    "tpu.trace_start"() <{level = 10 : i32, message = "bqd,bkd->bqk"}> : () -> ()
    %cst_38 = arith.constant dense<0.000000e+00> : vector<2x8x8xf32>
    %57 = tpu.matmul %50, %53, %cst_38 {dimension_numbers = #tpu.dot_dimension_numbers<[2], [2], [1], [1], [0, 0, 0, 1, 1, 1], [0], [0]>} : vector<2x8x16xf32>, vector<2x8x16xf32>, vector<2x8x8xf32> -> vector<2x8x8xf32>
    "tpu.trace_stop"() : () -> ()
    %cst_39 = arith.constant 2.500000e-01 : f32
    %58 = vector.broadcast %cst_39 : f32 to vector<2x8x8xf32>
    %59 = arith.mulf %57, %58 : vector<2x8x8xf32>
    %60 = vector.broadcast %5 : vector<2x1x8xf32> to vector<2x8x8xf32>
    %61 = arith.addf %59, %60 : vector<2x8x8xf32>
    %cst_40 = arith.constant dense<0xFF800000> : vector<2x8xf32>
    %62 = vector.multi_reduction <maximumf>, %61, %cst_40 [2] : vector<2x8x8xf32> to vector<2x8xf32>
    %63 = vector.shape_cast %62 : vector<2x8xf32> to vector<2x8x1xf32>
    %64 = vector.broadcast %63 : vector<2x8x1xf32> to vector<2x8x8xf32>
    %65 = arith.subf %61, %64 : vector<2x8x8xf32>
    %66 = math.exp %65 : vector<2x8x8xf32>
    %cst_41 = arith.constant dense<0.000000e+00> : vector<2x8xf32>
    %67 = vector.multi_reduction <add>, %66, %cst_41 [2] : vector<2x8x8xf32> to vector<2x8xf32>
    %68 = vector.shape_cast %67 : vector<2x8xf32> to vector<2x8x1xf32>
    %69 = tpu.reciprocal %68 {approx = true} : vector<2x8x1xf32> -> vector<2x8x1xf32>
    %70 = vector.broadcast %69 : vector<2x8x1xf32> to vector<2x8x8xf32>
    %71 = arith.mulf %66, %70 : vector<2x8x8xf32>
    "tpu.trace_start"() <{level = 10 : i32, message = "bqk,bkd->bqd"}> : () -> ()
    %cst_42 = arith.constant dense<0.000000e+00> : vector<2x8x16xf32>
    %72 = tpu.matmul %71, %56, %cst_42 {dimension_numbers = #tpu.dot_dimension_numbers<[2], [1], [1], [2], [0, 0, 0, 1, 1, 2], [0], [0]>} : vector<2x8x8xf32>, vector<2x8x16xf32>, vector<2x8x16xf32> -> vector<2x8x16xf32>
    "tpu.trace_stop"() : () -> ()
    %73 = vector.shape_cast %72 : vector<2x8x16xf32> to vector<16x16xf32>
    %74 = vector.extract_strided_slice %46 {offsets = [0, 0], sizes = [16, 32], strides = [1, 1]} : vector<32x32xf32> to vector<16x32xf32>
    %cst_43 = arith.constant dense<0.000000e+00> : vector<16x32xf32>
    %75 = tpu.matmul %73, %74, %cst_43 {dimension_numbers = #tpu.dot_dimension_numbers<[1], [0], [0], [1], [0, 0, 1, 1], [], []>} : vector<16x16xf32>, vector<16x32xf32>, vector<16x32xf32> -> vector<16x32xf32>
    %76 = arith.addf %47, %75 : vector<16x32xf32>
    %77 = vector.extract_strided_slice %32 {offsets = [0, 16], sizes = [32, 16], strides = [1, 1]} : vector<32x32xf32> to vector<32x16xf32>
    %cst_44 = arith.constant dense<0.000000e+00> : vector<16x16xf32>
    %78 = tpu.matmul %22, %77, %cst_44 {dimension_numbers = #tpu.dot_dimension_numbers<[1], [0], [0], [1], [0, 0, 1, 1], [], []>} : vector<16x32xf32>, vector<32x16xf32>, vector<16x16xf32> -> vector<16x16xf32>
    %79 = vector.shape_cast %78 : vector<16x16xf32> to vector<2x8x16xf32>
    %80 = vector.extract_strided_slice %34 {offsets = [0, 16], sizes = [32, 16], strides = [1, 1]} : vector<32x32xf32> to vector<32x16xf32>
    %cst_45 = arith.constant dense<0.000000e+00> : vector<16x16xf32>
    %81 = tpu.matmul %22, %80, %cst_45 {dimension_numbers = #tpu.dot_dimension_numbers<[1], [0], [0], [1], [0, 0, 1, 1], [], []>} : vector<16x32xf32>, vector<32x16xf32>, vector<16x16xf32> -> vector<16x16xf32>
    %82 = vector.shape_cast %81 : vector<16x16xf32> to vector<2x8x16xf32>
    %83 = vector.extract_strided_slice %44 {offsets = [0, 16], sizes = [32, 16], strides = [1, 1]} : vector<32x32xf32> to vector<32x16xf32>
    %cst_46 = arith.constant dense<0.000000e+00> : vector<16x16xf32>
    %84 = tpu.matmul %22, %83, %cst_46 {dimension_numbers = #tpu.dot_dimension_numbers<[1], [0], [0], [1], [0, 0, 1, 1], [], []>} : vector<16x32xf32>, vector<32x16xf32>, vector<16x16xf32> -> vector<16x16xf32>
    %85 = vector.shape_cast %84 : vector<16x16xf32> to vector<2x8x16xf32>
    "tpu.trace_start"() <{level = 10 : i32, message = "bqd,bkd->bqk"}> : () -> ()
    %cst_47 = arith.constant dense<0.000000e+00> : vector<2x8x8xf32>
    %86 = tpu.matmul %79, %82, %cst_47 {dimension_numbers = #tpu.dot_dimension_numbers<[2], [2], [1], [1], [0, 0, 0, 1, 1, 1], [0], [0]>} : vector<2x8x16xf32>, vector<2x8x16xf32>, vector<2x8x8xf32> -> vector<2x8x8xf32>
    "tpu.trace_stop"() : () -> ()
    %cst_48 = arith.constant 2.500000e-01 : f32
    %87 = vector.broadcast %cst_48 : f32 to vector<2x8x8xf32>
    %88 = arith.mulf %86, %87 : vector<2x8x8xf32>
    %89 = vector.broadcast %5 : vector<2x1x8xf32> to vector<2x8x8xf32>
    %90 = arith.addf %88, %89 : vector<2x8x8xf32>
    %cst_49 = arith.constant dense<0xFF800000> : vector<2x8xf32>
    %91 = vector.multi_reduction <maximumf>, %90, %cst_49 [2] : vector<2x8x8xf32> to vector<2x8xf32>
    %92 = vector.shape_cast %91 : vector<2x8xf32> to vector<2x8x1xf32>
    %93 = vector.broadcast %92 : vector<2x8x1xf32> to vector<2x8x8xf32>
    %94 = arith.subf %90, %93 : vector<2x8x8xf32>
    %95 = math.exp %94 : vector<2x8x8xf32>
    %cst_50 = arith.constant dense<0.000000e+00> : vector<2x8xf32>
    %96 = vector.multi_reduction <add>, %95, %cst_50 [2] : vector<2x8x8xf32> to vector<2x8xf32>
    %97 = vector.shape_cast %96 : vector<2x8xf32> to vector<2x8x1xf32>
    %98 = tpu.reciprocal %97 {approx = true} : vector<2x8x1xf32> -> vector<2x8x1xf32>
    %99 = vector.broadcast %98 : vector<2x8x1xf32> to vector<2x8x8xf32>
    %100 = arith.mulf %95, %99 : vector<2x8x8xf32>
    "tpu.trace_start"() <{level = 10 : i32, message = "bqk,bkd->bqd"}> : () -> ()
    %cst_51 = arith.constant dense<0.000000e+00> : vector<2x8x16xf32>
    %101 = tpu.matmul %100, %85, %cst_51 {dimension_numbers = #tpu.dot_dimension_numbers<[2], [1], [1], [2], [0, 0, 0, 1, 1, 2], [0], [0]>} : vector<2x8x8xf32>, vector<2x8x16xf32>, vector<2x8x16xf32> -> vector<2x8x16xf32>
    "tpu.trace_stop"() : () -> ()
    %102 = vector.shape_cast %101 : vector<2x8x16xf32> to vector<16x16xf32>
    %103 = vector.extract_strided_slice %46 {offsets = [16, 0], sizes = [16, 32], strides = [1, 1]} : vector<32x32xf32> to vector<16x32xf32>
    %cst_52 = arith.constant dense<0.000000e+00> : vector<16x32xf32>
    %104 = tpu.matmul %102, %103, %cst_52 {dimension_numbers = #tpu.dot_dimension_numbers<[1], [0], [0], [1], [0, 0, 1, 1], [], []>} : vector<16x16xf32>, vector<16x32xf32>, vector<16x32xf32> -> vector<16x32xf32>
    %105 = arith.addf %76, %104 : vector<16x32xf32>
    %106 = arith.addf %22, %105 : vector<16x32xf32>
    %c0_53 = arith.constant 0 : index
    %c0_54 = arith.constant 0 : index
    %107 = vector.load %arg8[%c0_53, %c0_54] : memref<10x32xf32, #tpu.memory_space<vmem>>, vector<1x32xf32>
    %c1_55 = arith.constant 1 : index
    %c0_56 = arith.constant 0 : index
    %108 = vector.load %arg8[%c1_55, %c0_56] : memref<10x32xf32, #tpu.memory_space<vmem>>, vector<1x32xf32>
    %cst_57 = arith.constant dense<0.000000e+00> : vector<16xf32>
    %109 = vector.multi_reduction <add>, %106, %cst_57 [1] : vector<16x32xf32> to vector<16xf32>
    %110 = vector.shape_cast %109 : vector<16xf32> to vector<16x1xf32>
    %cst_58 = arith.constant 3.200000e+01 : f32
    %111 = vector.broadcast %cst_58 : f32 to vector<16x1xf32>
    %112 = arith.divf %110, %111 : vector<16x1xf32>
    %113 = vector.broadcast %112 : vector<16x1xf32> to vector<16x32xf32>
    %114 = arith.subf %106, %113 : vector<16x32xf32>
    %115 = arith.mulf %114, %114 : vector<16x32xf32>
    %cst_59 = arith.constant dense<0.000000e+00> : vector<16xf32>
    %116 = vector.multi_reduction <add>, %115, %cst_59 [1] : vector<16x32xf32> to vector<16xf32>
    %117 = vector.shape_cast %116 : vector<16xf32> to vector<16x1xf32>
    %cst_60 = arith.constant 3.200000e+01 : f32
    %118 = vector.broadcast %cst_60 : f32 to vector<16x1xf32>
    %119 = arith.divf %117, %118 : vector<16x1xf32>
    %120 = vector.broadcast %112 : vector<16x1xf32> to vector<16x32xf32>
    %121 = arith.subf %106, %120 : vector<16x32xf32>
    %cst_61 = arith.constant 9.99999997E-7 : f32
    %122 = vector.broadcast %cst_61 : f32 to vector<16x1xf32>
    %123 = arith.addf %119, %122 : vector<16x1xf32>
    %124 = math.rsqrt %123 : vector<16x1xf32>
    %125 = vector.broadcast %124 : vector<16x1xf32> to vector<16x32xf32>
    %126 = arith.mulf %121, %125 : vector<16x32xf32>
    %127 = vector.broadcast %107 : vector<1x32xf32> to vector<16x32xf32>
    %128 = arith.mulf %126, %127 : vector<16x32xf32>
    %129 = vector.broadcast %108 : vector<1x32xf32> to vector<16x32xf32>
    %130 = arith.addf %128, %129 : vector<16x32xf32>
    %c0_62 = arith.constant 0 : index
    %c0_63 = arith.constant 0 : index
    %c0_64 = arith.constant 0 : index
    %131 = vector.load %arg9[%c0_62, %c0_63, %c0_64] : memref<2x32x64xf32, #tpu.memory_space<vmem>>, vector<1x32x64xf32>
    %132 = vector.shape_cast %131 : vector<1x32x64xf32> to vector<32x64xf32>
    %cst_65 = arith.constant dense<0.000000e+00> : vector<16x64xf32>
    %133 = tpu.matmul %130, %132, %cst_65 {dimension_numbers = #tpu.dot_dimension_numbers<[1], [0], [0], [1], [0, 0, 1, 1], [], []>} : vector<16x32xf32>, vector<32x64xf32>, vector<16x64xf32> -> vector<16x64xf32>
    %cst_66 = arith.constant 0.000000e+00 : f32
    %134 = vector.broadcast %cst_66 : f32 to vector<16x64xf32>
    %135 = arith.maximumf %133, %134 : vector<16x64xf32>
    %c0_67 = arith.constant 0 : index
    %c0_68 = arith.constant 0 : index
    %c0_69 = arith.constant 0 : index
    %136 = vector.load %arg10[%c0_67, %c0_68, %c0_69] : memref<2x64x32xf32, #tpu.memory_space<vmem>>, vector<1x64x32xf32>
    %137 = vector.shape_cast %136 : vector<1x64x32xf32> to vector<64x32xf32>
    %cst_70 = arith.constant dense<0.000000e+00> : vector<16x32xf32>
    %138 = tpu.matmul %135, %137, %cst_70 {dimension_numbers = #tpu.dot_dimension_numbers<[1], [0], [0], [1], [0, 0, 1, 1], [], []>} : vector<16x64xf32>, vector<64x32xf32>, vector<16x32xf32> -> vector<16x32xf32>
    %139 = arith.addf %130, %138 : vector<16x32xf32>
    %c2_71 = arith.constant 2 : index
    %c0_72 = arith.constant 0 : index
    %140 = vector.load %arg8[%c2_71, %c0_72] : memref<10x32xf32, #tpu.memory_space<vmem>>, vector<1x32xf32>
    %c3_73 = arith.constant 3 : index
    %c0_74 = arith.constant 0 : index
    %141 = vector.load %arg8[%c3_73, %c0_74] : memref<10x32xf32, #tpu.memory_space<vmem>>, vector<1x32xf32>
    %cst_75 = arith.constant dense<0.000000e+00> : vector<16xf32>
    %142 = vector.multi_reduction <add>, %139, %cst_75 [1] : vector<16x32xf32> to vector<16xf32>
    %143 = vector.shape_cast %142 : vector<16xf32> to vector<16x1xf32>
    %cst_76 = arith.constant 3.200000e+01 : f32
    %144 = vector.broadcast %cst_76 : f32 to vector<16x1xf32>
    %145 = arith.divf %143, %144 : vector<16x1xf32>
    %146 = vector.broadcast %145 : vector<16x1xf32> to vector<16x32xf32>
    %147 = arith.subf %139, %146 : vector<16x32xf32>
    %148 = arith.mulf %147, %147 : vector<16x32xf32>
    %cst_77 = arith.constant dense<0.000000e+00> : vector<16xf32>
    %149 = vector.multi_reduction <add>, %148, %cst_77 [1] : vector<16x32xf32> to vector<16xf32>
    %150 = vector.shape_cast %149 : vector<16xf32> to vector<16x1xf32>
    %cst_78 = arith.constant 3.200000e+01 : f32
    %151 = vector.broadcast %cst_78 : f32 to vector<16x1xf32>
    %152 = arith.divf %150, %151 : vector<16x1xf32>
    %153 = vector.broadcast %145 : vector<16x1xf32> to vector<16x32xf32>
    %154 = arith.subf %139, %153 : vector<16x32xf32>
    %cst_79 = arith.constant 9.99999997E-7 : f32
    %155 = vector.broadcast %cst_79 : f32 to vector<16x1xf32>
    %156 = arith.addf %152, %155 : vector<16x1xf32>
    %157 = math.rsqrt %156 : vector<16x1xf32>
    %158 = vector.broadcast %157 : vector<16x1xf32> to vector<16x32xf32>
    %159 = arith.mulf %154, %158 : vector<16x32xf32>
    %160 = vector.broadcast %140 : vector<1x32xf32> to vector<16x32xf32>
    %161 = arith.mulf %159, %160 : vector<16x32xf32>
    %162 = vector.broadcast %141 : vector<1x32xf32> to vector<16x32xf32>
    %163 = arith.addf %161, %162 : vector<16x32xf32>
    %c0_80 = arith.constant 0 : index
    %c0_81 = arith.constant 0 : index
    %c0_82 = arith.constant 0 : index
    %164 = vector.load %arg1[%c0_80, %c0_81, %c0_82] : memref<2x8x32xf32, #tpu.memory_space<vmem>>, vector<2x8x32xf32>
    %165 = vector.shape_cast %164 : vector<2x8x32xf32> to vector<16x32xf32>
    %c4 = arith.constant 4 : index
    %c0_83 = arith.constant 0 : index
    %c0_84 = arith.constant 0 : index
    %166 = vector.load %arg5[%c4, %c0_83, %c0_84] : memref<12x32x32xf32, #tpu.memory_space<vmem>>, vector<1x32x32xf32>
    %167 = vector.shape_cast %166 : vector<1x32x32xf32> to vector<32x32xf32>
    %c2_85 = arith.constant 2 : index
    %c0_86 = arith.constant 0 : index
    %c0_87 = arith.constant 0 : index
    %168 = vector.load %arg6[%c2_85, %c0_86, %c0_87] : memref<6x32x8xf32, #tpu.memory_space<vmem>>, vector<1x32x8xf32>
    %169 = vector.shape_cast %168 : vector<1x32x8xf32> to vector<32x8xf32>
    %c2_88 = arith.constant 2 : index
    %c0_89 = arith.constant 0 : index
    %c0_90 = arith.constant 0 : index
    %170 = vector.load %arg7[%c2_88, %c0_89, %c0_90] : memref<6x8x32xf32, #tpu.memory_space<vmem>>, vector<1x8x32xf32>
    %171 = vector.shape_cast %170 : vector<1x8x32xf32> to vector<8x32xf32>
    %cst_91 = arith.constant dense<0.000000e+00> : vector<32x32xf32>
    %172 = tpu.matmul %169, %171, %cst_91 {dimension_numbers = #tpu.dot_dimension_numbers<[1], [0], [0], [1], [0, 0, 1, 1], [], []>} : vector<32x8xf32>, vector<8x32xf32>, vector<32x32xf32> -> vector<32x32xf32>
    %cst_92 = arith.constant 4.000000e+00 : f32
    %173 = vector.broadcast %cst_92 : f32 to vector<32x32xf32>
    %174 = arith.mulf %173, %172 : vector<32x32xf32>
    %175 = arith.addf %167, %174 : vector<32x32xf32>
    %c5 = arith.constant 5 : index
    %c0_93 = arith.constant 0 : index
    %c0_94 = arith.constant 0 : index
    %176 = vector.load %arg5[%c5, %c0_93, %c0_94] : memref<12x32x32xf32, #tpu.memory_space<vmem>>, vector<1x32x32xf32>
    %177 = vector.shape_cast %176 : vector<1x32x32xf32> to vector<32x32xf32>
    %c6 = arith.constant 6 : index
    %c0_95 = arith.constant 0 : index
    %c0_96 = arith.constant 0 : index
    %178 = vector.load %arg5[%c6, %c0_95, %c0_96] : memref<12x32x32xf32, #tpu.memory_space<vmem>>, vector<1x32x32xf32>
    %179 = vector.shape_cast %178 : vector<1x32x32xf32> to vector<32x32xf32>
    %c3_97 = arith.constant 3 : index
    %c0_98 = arith.constant 0 : index
    %c0_99 = arith.constant 0 : index
    %180 = vector.load %arg6[%c3_97, %c0_98, %c0_99] : memref<6x32x8xf32, #tpu.memory_space<vmem>>, vector<1x32x8xf32>
    %181 = vector.shape_cast %180 : vector<1x32x8xf32> to vector<32x8xf32>
    %c3_100 = arith.constant 3 : index
    %c0_101 = arith.constant 0 : index
    %c0_102 = arith.constant 0 : index
    %182 = vector.load %arg7[%c3_100, %c0_101, %c0_102] : memref<6x8x32xf32, #tpu.memory_space<vmem>>, vector<1x8x32xf32>
    %183 = vector.shape_cast %182 : vector<1x8x32xf32> to vector<8x32xf32>
    %cst_103 = arith.constant dense<0.000000e+00> : vector<32x32xf32>
    %184 = tpu.matmul %181, %183, %cst_103 {dimension_numbers = #tpu.dot_dimension_numbers<[1], [0], [0], [1], [0, 0, 1, 1], [], []>} : vector<32x8xf32>, vector<8x32xf32>, vector<32x32xf32> -> vector<32x32xf32>
    %cst_104 = arith.constant 4.000000e+00 : f32
    %185 = vector.broadcast %cst_104 : f32 to vector<32x32xf32>
    %186 = arith.mulf %185, %184 : vector<32x32xf32>
    %187 = arith.addf %179, %186 : vector<32x32xf32>
    %c7 = arith.constant 7 : index
    %c0_105 = arith.constant 0 : index
    %c0_106 = arith.constant 0 : index
    %188 = vector.load %arg5[%c7, %c0_105, %c0_106] : memref<12x32x32xf32, #tpu.memory_space<vmem>>, vector<1x32x32xf32>
    %189 = vector.shape_cast %188 : vector<1x32x32xf32> to vector<32x32xf32>
    %cst_107 = arith.constant 0.000000e+00 : f32
    %190 = vector.broadcast %cst_107 : f32 to vector<16x32xf32>
    %191 = vector.extract_strided_slice %175 {offsets = [0, 0], sizes = [32, 16], strides = [1, 1]} : vector<32x32xf32> to vector<32x16xf32>
    %cst_108 = arith.constant dense<0.000000e+00> : vector<16x16xf32>
    %192 = tpu.matmul %165, %191, %cst_108 {dimension_numbers = #tpu.dot_dimension_numbers<[1], [0], [0], [1], [0, 0, 1, 1], [], []>} : vector<16x32xf32>, vector<32x16xf32>, vector<16x16xf32> -> vector<16x16xf32>
    %193 = vector.shape_cast %192 : vector<16x16xf32> to vector<2x8x16xf32>
    %194 = vector.extract_strided_slice %177 {offsets = [0, 0], sizes = [32, 16], strides = [1, 1]} : vector<32x32xf32> to vector<32x16xf32>
    %cst_109 = arith.constant dense<0.000000e+00> : vector<16x16xf32>
    %195 = tpu.matmul %165, %194, %cst_109 {dimension_numbers = #tpu.dot_dimension_numbers<[1], [0], [0], [1], [0, 0, 1, 1], [], []>} : vector<16x32xf32>, vector<32x16xf32>, vector<16x16xf32> -> vector<16x16xf32>
    %196 = vector.shape_cast %195 : vector<16x16xf32> to vector<2x8x16xf32>
    %197 = vector.extract_strided_slice %187 {offsets = [0, 0], sizes = [32, 16], strides = [1, 1]} : vector<32x32xf32> to vector<32x16xf32>
    %cst_110 = arith.constant dense<0.000000e+00> : vector<16x16xf32>
    %198 = tpu.matmul %165, %197, %cst_110 {dimension_numbers = #tpu.dot_dimension_numbers<[1], [0], [0], [1], [0, 0, 1, 1], [], []>} : vector<16x32xf32>, vector<32x16xf32>, vector<16x16xf32> -> vector<16x16xf32>
    %199 = vector.shape_cast %198 : vector<16x16xf32> to vector<2x8x16xf32>
    "tpu.trace_start"() <{level = 10 : i32, message = "bqd,bkd->bqk"}> : () -> ()
    %cst_111 = arith.constant dense<0.000000e+00> : vector<2x8x8xf32>
    %200 = tpu.matmul %193, %196, %cst_111 {dimension_numbers = #tpu.dot_dimension_numbers<[2], [2], [1], [1], [0, 0, 0, 1, 1, 1], [0], [0]>} : vector<2x8x16xf32>, vector<2x8x16xf32>, vector<2x8x8xf32> -> vector<2x8x8xf32>
    "tpu.trace_stop"() : () -> ()
    %cst_112 = arith.constant 2.500000e-01 : f32
    %201 = vector.broadcast %cst_112 : f32 to vector<2x8x8xf32>
    %202 = arith.mulf %200, %201 : vector<2x8x8xf32>
    %203 = arith.addf %202, %20 : vector<2x8x8xf32>
    %cst_113 = arith.constant dense<0xFF800000> : vector<2x8xf32>
    %204 = vector.multi_reduction <maximumf>, %203, %cst_113 [2] : vector<2x8x8xf32> to vector<2x8xf32>
    %205 = vector.shape_cast %204 : vector<2x8xf32> to vector<2x8x1xf32>
    %206 = vector.broadcast %205 : vector<2x8x1xf32> to vector<2x8x8xf32>
    %207 = arith.subf %203, %206 : vector<2x8x8xf32>
    %208 = math.exp %207 : vector<2x8x8xf32>
    %cst_114 = arith.constant dense<0.000000e+00> : vector<2x8xf32>
    %209 = vector.multi_reduction <add>, %208, %cst_114 [2] : vector<2x8x8xf32> to vector<2x8xf32>
    %210 = vector.shape_cast %209 : vector<2x8xf32> to vector<2x8x1xf32>
    %211 = tpu.reciprocal %210 {approx = true} : vector<2x8x1xf32> -> vector<2x8x1xf32>
    %212 = vector.broadcast %211 : vector<2x8x1xf32> to vector<2x8x8xf32>
    %213 = arith.mulf %208, %212 : vector<2x8x8xf32>
    "tpu.trace_start"() <{level = 10 : i32, message = "bqk,bkd->bqd"}> : () -> ()
    %cst_115 = arith.constant dense<0.000000e+00> : vector<2x8x16xf32>
    %214 = tpu.matmul %213, %199, %cst_115 {dimension_numbers = #tpu.dot_dimension_numbers<[2], [1], [1], [2], [0, 0, 0, 1, 1, 2], [0], [0]>} : vector<2x8x8xf32>, vector<2x8x16xf32>, vector<2x8x16xf32> -> vector<2x8x16xf32>
    "tpu.trace_stop"() : () -> ()
    %215 = vector.shape_cast %214 : vector<2x8x16xf32> to vector<16x16xf32>
    %216 = vector.extract_strided_slice %189 {offsets = [0, 0], sizes = [16, 32], strides = [1, 1]} : vector<32x32xf32> to vector<16x32xf32>
    %cst_116 = arith.constant dense<0.000000e+00> : vector<16x32xf32>
    %217 = tpu.matmul %215, %216, %cst_116 {dimension_numbers = #tpu.dot_dimension_numbers<[1], [0], [0], [1], [0, 0, 1, 1], [], []>} : vector<16x16xf32>, vector<16x32xf32>, vector<16x32xf32> -> vector<16x32xf32>
    %218 = arith.addf %190, %217 : vector<16x32xf32>
    %219 = vector.extract_strided_slice %175 {offsets = [0, 16], sizes = [32, 16], strides = [1, 1]} : vector<32x32xf32> to vector<32x16xf32>
    %cst_117 = arith.constant dense<0.000000e+00> : vector<16x16xf32>
    %220 = tpu.matmul %165, %219, %cst_117 {dimension_numbers = #tpu.dot_dimension_numbers<[1], [0], [0], [1], [0, 0, 1, 1], [], []>} : vector<16x32xf32>, vector<32x16xf32>, vector<16x16xf32> -> vector<16x16xf32>
    %221 = vector.shape_cast %220 : vector<16x16xf32> to vector<2x8x16xf32>
    %222 = vector.extract_strided_slice %177 {offsets = [0, 16], sizes = [32, 16], strides = [1, 1]} : vector<32x32xf32> to vector<32x16xf32>
    %cst_118 = arith.constant dense<0.000000e+00> : vector<16x16xf32>
    %223 = tpu.matmul %165, %222, %cst_118 {dimension_numbers = #tpu.dot_dimension_numbers<[1], [0], [0], [1], [0, 0, 1, 1], [], []>} : vector<16x32xf32>, vector<32x16xf32>, vector<16x16xf32> -> vector<16x16xf32>
    %224 = vector.shape_cast %223 : vector<16x16xf32> to vector<2x8x16xf32>
    %225 = vector.extract_strided_slice %187 {offsets = [0, 16], sizes = [32, 16], strides = [1, 1]} : vector<32x32xf32> to vector<32x16xf32>
    %cst_119 = arith.constant dense<0.000000e+00> : vector<16x16xf32>
    %226 = tpu.matmul %165, %225, %cst_119 {dimension_numbers = #tpu.dot_dimension_numbers<[1], [0], [0], [1], [0, 0, 1, 1], [], []>} : vector<16x32xf32>, vector<32x16xf32>, vector<16x16xf32> -> vector<16x16xf32>
    %227 = vector.shape_cast %226 : vector<16x16xf32> to vector<2x8x16xf32>
    "tpu.trace_start"() <{level = 10 : i32, message = "bqd,bkd->bqk"}> : () -> ()
    %cst_120 = arith.constant dense<0.000000e+00> : vector<2x8x8xf32>
    %228 = tpu.matmul %221, %224, %cst_120 {dimension_numbers = #tpu.dot_dimension_numbers<[2], [2], [1], [1], [0, 0, 0, 1, 1, 1], [0], [0]>} : vector<2x8x16xf32>, vector<2x8x16xf32>, vector<2x8x8xf32> -> vector<2x8x8xf32>
    "tpu.trace_stop"() : () -> ()
    %cst_121 = arith.constant 2.500000e-01 : f32
    %229 = vector.broadcast %cst_121 : f32 to vector<2x8x8xf32>
    %230 = arith.mulf %228, %229 : vector<2x8x8xf32>
    %231 = arith.addf %230, %20 : vector<2x8x8xf32>
    %cst_122 = arith.constant dense<0xFF800000> : vector<2x8xf32>
    %232 = vector.multi_reduction <maximumf>, %231, %cst_122 [2] : vector<2x8x8xf32> to vector<2x8xf32>
    %233 = vector.shape_cast %232 : vector<2x8xf32> to vector<2x8x1xf32>
    %234 = vector.broadcast %233 : vector<2x8x1xf32> to vector<2x8x8xf32>
    %235 = arith.subf %231, %234 : vector<2x8x8xf32>
    %236 = math.exp %235 : vector<2x8x8xf32>
    %cst_123 = arith.constant dense<0.000000e+00> : vector<2x8xf32>
    %237 = vector.multi_reduction <add>, %236, %cst_123 [2] : vector<2x8x8xf32> to vector<2x8xf32>
    %238 = vector.shape_cast %237 : vector<2x8xf32> to vector<2x8x1xf32>
    %239 = tpu.reciprocal %238 {approx = true} : vector<2x8x1xf32> -> vector<2x8x1xf32>
    %240 = vector.broadcast %239 : vector<2x8x1xf32> to vector<2x8x8xf32>
    %241 = arith.mulf %236, %240 : vector<2x8x8xf32>
    "tpu.trace_start"() <{level = 10 : i32, message = "bqk,bkd->bqd"}> : () -> ()
    %cst_124 = arith.constant dense<0.000000e+00> : vector<2x8x16xf32>
    %242 = tpu.matmul %241, %227, %cst_124 {dimension_numbers = #tpu.dot_dimension_numbers<[2], [1], [1], [2], [0, 0, 0, 1, 1, 2], [0], [0]>} : vector<2x8x8xf32>, vector<2x8x16xf32>, vector<2x8x16xf32> -> vector<2x8x16xf32>
    "tpu.trace_stop"() : () -> ()
    %243 = vector.shape_cast %242 : vector<2x8x16xf32> to vector<16x16xf32>
    %244 = vector.extract_strided_slice %189 {offsets = [16, 0], sizes = [16, 32], strides = [1, 1]} : vector<32x32xf32> to vector<16x32xf32>
    %cst_125 = arith.constant dense<0.000000e+00> : vector<16x32xf32>
    %245 = tpu.matmul %243, %244, %cst_125 {dimension_numbers = #tpu.dot_dimension_numbers<[1], [0], [0], [1], [0, 0, 1, 1], [], []>} : vector<16x16xf32>, vector<16x32xf32>, vector<16x32xf32> -> vector<16x32xf32>
    %246 = arith.addf %218, %245 : vector<16x32xf32>
    %247 = arith.addf %165, %246 : vector<16x32xf32>
    %c4_126 = arith.constant 4 : index
    %c0_127 = arith.constant 0 : index
    %248 = vector.load %arg8[%c4_126, %c0_127] : memref<10x32xf32, #tpu.memory_space<vmem>>, vector<1x32xf32>
    %c5_128 = arith.constant 5 : index
    %c0_129 = arith.constant 0 : index
    %249 = vector.load %arg8[%c5_128, %c0_129] : memref<10x32xf32, #tpu.memory_space<vmem>>, vector<1x32xf32>
    %cst_130 = arith.constant dense<0.000000e+00> : vector<16xf32>
    %250 = vector.multi_reduction <add>, %247, %cst_130 [1] : vector<16x32xf32> to vector<16xf32>
    %251 = vector.shape_cast %250 : vector<16xf32> to vector<16x1xf32>
    %cst_131 = arith.constant 3.200000e+01 : f32
    %252 = vector.broadcast %cst_131 : f32 to vector<16x1xf32>
    %253 = arith.divf %251, %252 : vector<16x1xf32>
    %254 = vector.broadcast %253 : vector<16x1xf32> to vector<16x32xf32>
    %255 = arith.subf %247, %254 : vector<16x32xf32>
    %256 = arith.mulf %255, %255 : vector<16x32xf32>
    %cst_132 = arith.constant dense<0.000000e+00> : vector<16xf32>
    %257 = vector.multi_reduction <add>, %256, %cst_132 [1] : vector<16x32xf32> to vector<16xf32>
    %258 = vector.shape_cast %257 : vector<16xf32> to vector<16x1xf32>
    %cst_133 = arith.constant 3.200000e+01 : f32
    %259 = vector.broadcast %cst_133 : f32 to vector<16x1xf32>
    %260 = arith.divf %258, %259 : vector<16x1xf32>
    %261 = vector.broadcast %253 : vector<16x1xf32> to vector<16x32xf32>
    %262 = arith.subf %247, %261 : vector<16x32xf32>
    %cst_134 = arith.constant 9.99999997E-7 : f32
    %263 = vector.broadcast %cst_134 : f32 to vector<16x1xf32>
    %264 = arith.addf %260, %263 : vector<16x1xf32>
    %265 = math.rsqrt %264 : vector<16x1xf32>
    %266 = vector.broadcast %265 : vector<16x1xf32> to vector<16x32xf32>
    %267 = arith.mulf %262, %266 : vector<16x32xf32>
    %268 = vector.broadcast %248 : vector<1x32xf32> to vector<16x32xf32>
    %269 = arith.mulf %267, %268 : vector<16x32xf32>
    %270 = vector.broadcast %249 : vector<1x32xf32> to vector<16x32xf32>
    %271 = arith.addf %269, %270 : vector<16x32xf32>
    %c8 = arith.constant 8 : index
    %c0_135 = arith.constant 0 : index
    %c0_136 = arith.constant 0 : index
    %272 = vector.load %arg5[%c8, %c0_135, %c0_136] : memref<12x32x32xf32, #tpu.memory_space<vmem>>, vector<1x32x32xf32>
    %273 = vector.shape_cast %272 : vector<1x32x32xf32> to vector<32x32xf32>
    %c4_137 = arith.constant 4 : index
    %c0_138 = arith.constant 0 : index
    %c0_139 = arith.constant 0 : index
    %274 = vector.load %arg6[%c4_137, %c0_138, %c0_139] : memref<6x32x8xf32, #tpu.memory_space<vmem>>, vector<1x32x8xf32>
    %275 = vector.shape_cast %274 : vector<1x32x8xf32> to vector<32x8xf32>
    %c4_140 = arith.constant 4 : index
    %c0_141 = arith.constant 0 : index
    %c0_142 = arith.constant 0 : index
    %276 = vector.load %arg7[%c4_140, %c0_141, %c0_142] : memref<6x8x32xf32, #tpu.memory_space<vmem>>, vector<1x8x32xf32>
    %277 = vector.shape_cast %276 : vector<1x8x32xf32> to vector<8x32xf32>
    %cst_143 = arith.constant dense<0.000000e+00> : vector<32x32xf32>
    %278 = tpu.matmul %275, %277, %cst_143 {dimension_numbers = #tpu.dot_dimension_numbers<[1], [0], [0], [1], [0, 0, 1, 1], [], []>} : vector<32x8xf32>, vector<8x32xf32>, vector<32x32xf32> -> vector<32x32xf32>
    %cst_144 = arith.constant 4.000000e+00 : f32
    %279 = vector.broadcast %cst_144 : f32 to vector<32x32xf32>
    %280 = arith.mulf %279, %278 : vector<32x32xf32>
    %281 = arith.addf %273, %280 : vector<32x32xf32>
    %c9 = arith.constant 9 : index
    %c0_145 = arith.constant 0 : index
    %c0_146 = arith.constant 0 : index
    %282 = vector.load %arg5[%c9, %c0_145, %c0_146] : memref<12x32x32xf32, #tpu.memory_space<vmem>>, vector<1x32x32xf32>
    %283 = vector.shape_cast %282 : vector<1x32x32xf32> to vector<32x32xf32>
    %c10 = arith.constant 10 : index
    %c0_147 = arith.constant 0 : index
    %c0_148 = arith.constant 0 : index
    %284 = vector.load %arg5[%c10, %c0_147, %c0_148] : memref<12x32x32xf32, #tpu.memory_space<vmem>>, vector<1x32x32xf32>
    %285 = vector.shape_cast %284 : vector<1x32x32xf32> to vector<32x32xf32>
    %c5_149 = arith.constant 5 : index
    %c0_150 = arith.constant 0 : index
    %c0_151 = arith.constant 0 : index
    %286 = vector.load %arg6[%c5_149, %c0_150, %c0_151] : memref<6x32x8xf32, #tpu.memory_space<vmem>>, vector<1x32x8xf32>
    %287 = vector.shape_cast %286 : vector<1x32x8xf32> to vector<32x8xf32>
    %c5_152 = arith.constant 5 : index
    %c0_153 = arith.constant 0 : index
    %c0_154 = arith.constant 0 : index
    %288 = vector.load %arg7[%c5_152, %c0_153, %c0_154] : memref<6x8x32xf32, #tpu.memory_space<vmem>>, vector<1x8x32xf32>
    %289 = vector.shape_cast %288 : vector<1x8x32xf32> to vector<8x32xf32>
    %cst_155 = arith.constant dense<0.000000e+00> : vector<32x32xf32>
    %290 = tpu.matmul %287, %289, %cst_155 {dimension_numbers = #tpu.dot_dimension_numbers<[1], [0], [0], [1], [0, 0, 1, 1], [], []>} : vector<32x8xf32>, vector<8x32xf32>, vector<32x32xf32> -> vector<32x32xf32>
    %cst_156 = arith.constant 4.000000e+00 : f32
    %291 = vector.broadcast %cst_156 : f32 to vector<32x32xf32>
    %292 = arith.mulf %291, %290 : vector<32x32xf32>
    %293 = arith.addf %285, %292 : vector<32x32xf32>
    %c11 = arith.constant 11 : index
    %c0_157 = arith.constant 0 : index
    %c0_158 = arith.constant 0 : index
    %294 = vector.load %arg5[%c11, %c0_157, %c0_158] : memref<12x32x32xf32, #tpu.memory_space<vmem>>, vector<1x32x32xf32>
    %295 = vector.shape_cast %294 : vector<1x32x32xf32> to vector<32x32xf32>
    %cst_159 = arith.constant 0.000000e+00 : f32
    %296 = vector.broadcast %cst_159 : f32 to vector<16x32xf32>
    %297 = vector.extract_strided_slice %281 {offsets = [0, 0], sizes = [32, 16], strides = [1, 1]} : vector<32x32xf32> to vector<32x16xf32>
    %cst_160 = arith.constant dense<0.000000e+00> : vector<16x16xf32>
    %298 = tpu.matmul %271, %297, %cst_160 {dimension_numbers = #tpu.dot_dimension_numbers<[1], [0], [0], [1], [0, 0, 1, 1], [], []>} : vector<16x32xf32>, vector<32x16xf32>, vector<16x16xf32> -> vector<16x16xf32>
    %299 = vector.shape_cast %298 : vector<16x16xf32> to vector<2x8x16xf32>
    %300 = vector.extract_strided_slice %283 {offsets = [0, 0], sizes = [32, 16], strides = [1, 1]} : vector<32x32xf32> to vector<32x16xf32>
    %cst_161 = arith.constant dense<0.000000e+00> : vector<16x16xf32>
    %301 = tpu.matmul %163, %300, %cst_161 {dimension_numbers = #tpu.dot_dimension_numbers<[1], [0], [0], [1], [0, 0, 1, 1], [], []>} : vector<16x32xf32>, vector<32x16xf32>, vector<16x16xf32> -> vector<16x16xf32>
    %302 = vector.shape_cast %301 : vector<16x16xf32> to vector<2x8x16xf32>
    %303 = vector.extract_strided_slice %293 {offsets = [0, 0], sizes = [32, 16], strides = [1, 1]} : vector<32x32xf32> to vector<32x16xf32>
    %cst_162 = arith.constant dense<0.000000e+00> : vector<16x16xf32>
    %304 = tpu.matmul %163, %303, %cst_162 {dimension_numbers = #tpu.dot_dimension_numbers<[1], [0], [0], [1], [0, 0, 1, 1], [], []>} : vector<16x32xf32>, vector<32x16xf32>, vector<16x16xf32> -> vector<16x16xf32>
    %305 = vector.shape_cast %304 : vector<16x16xf32> to vector<2x8x16xf32>
    "tpu.trace_start"() <{level = 10 : i32, message = "bqd,bkd->bqk"}> : () -> ()
    %cst_163 = arith.constant dense<0.000000e+00> : vector<2x8x8xf32>
    %306 = tpu.matmul %299, %302, %cst_163 {dimension_numbers = #tpu.dot_dimension_numbers<[2], [2], [1], [1], [0, 0, 0, 1, 1, 1], [0], [0]>} : vector<2x8x16xf32>, vector<2x8x16xf32>, vector<2x8x8xf32> -> vector<2x8x8xf32>
    "tpu.trace_stop"() : () -> ()
    %cst_164 = arith.constant 2.500000e-01 : f32
    %307 = vector.broadcast %cst_164 : f32 to vector<2x8x8xf32>
    %308 = arith.mulf %306, %307 : vector<2x8x8xf32>
    %309 = vector.broadcast %5 : vector<2x1x8xf32> to vector<2x8x8xf32>
    %310 = arith.addf %308, %309 : vector<2x8x8xf32>
    %cst_165 = arith.constant dense<0xFF800000> : vector<2x8xf32>
    %311 = vector.multi_reduction <maximumf>, %310, %cst_165 [2] : vector<2x8x8xf32> to vector<2x8xf32>
    %312 = vector.shape_cast %311 : vector<2x8xf32> to vector<2x8x1xf32>
    %313 = vector.broadcast %312 : vector<2x8x1xf32> to vector<2x8x8xf32>
    %314 = arith.subf %310, %313 : vector<2x8x8xf32>
    %315 = math.exp %314 : vector<2x8x8xf32>
    %cst_166 = arith.constant dense<0.000000e+00> : vector<2x8xf32>
    %316 = vector.multi_reduction <add>, %315, %cst_166 [2] : vector<2x8x8xf32> to vector<2x8xf32>
    %317 = vector.shape_cast %316 : vector<2x8xf32> to vector<2x8x1xf32>
    %318 = tpu.reciprocal %317 {approx = true} : vector<2x8x1xf32> -> vector<2x8x1xf32>
    %319 = vector.broadcast %318 : vector<2x8x1xf32> to vector<2x8x8xf32>
    %320 = arith.mulf %315, %319 : vector<2x8x8xf32>
    "tpu.trace_start"() <{level = 10 : i32, message = "bqk,bkd->bqd"}> : () -> ()
    %cst_167 = arith.constant dense<0.000000e+00> : vector<2x8x16xf32>
    %321 = tpu.matmul %320, %305, %cst_167 {dimension_numbers = #tpu.dot_dimension_numbers<[2], [1], [1], [2], [0, 0, 0, 1, 1, 2], [0], [0]>} : vector<2x8x8xf32>, vector<2x8x16xf32>, vector<2x8x16xf32> -> vector<2x8x16xf32>
    "tpu.trace_stop"() : () -> ()
    %322 = vector.shape_cast %321 : vector<2x8x16xf32> to vector<16x16xf32>
    %323 = vector.extract_strided_slice %295 {offsets = [0, 0], sizes = [16, 32], strides = [1, 1]} : vector<32x32xf32> to vector<16x32xf32>
    %cst_168 = arith.constant dense<0.000000e+00> : vector<16x32xf32>
    %324 = tpu.matmul %322, %323, %cst_168 {dimension_numbers = #tpu.dot_dimension_numbers<[1], [0], [0], [1], [0, 0, 1, 1], [], []>} : vector<16x16xf32>, vector<16x32xf32>, vector<16x32xf32> -> vector<16x32xf32>
    %325 = arith.addf %296, %324 : vector<16x32xf32>
    %326 = vector.extract_strided_slice %281 {offsets = [0, 16], sizes = [32, 16], strides = [1, 1]} : vector<32x32xf32> to vector<32x16xf32>
    %cst_169 = arith.constant dense<0.000000e+00> : vector<16x16xf32>
    %327 = tpu.matmul %271, %326, %cst_169 {dimension_numbers = #tpu.dot_dimension_numbers<[1], [0], [0], [1], [0, 0, 1, 1], [], []>} : vector<16x32xf32>, vector<32x16xf32>, vector<16x16xf32> -> vector<16x16xf32>
    %328 = vector.shape_cast %327 : vector<16x16xf32> to vector<2x8x16xf32>
    %329 = vector.extract_strided_slice %283 {offsets = [0, 16], sizes = [32, 16], strides = [1, 1]} : vector<32x32xf32> to vector<32x16xf32>
    %cst_170 = arith.constant dense<0.000000e+00> : vector<16x16xf32>
    %330 = tpu.matmul %163, %329, %cst_170 {dimension_numbers = #tpu.dot_dimension_numbers<[1], [0], [0], [1], [0, 0, 1, 1], [], []>} : vector<16x32xf32>, vector<32x16xf32>, vector<16x16xf32> -> vector<16x16xf32>
    %331 = vector.shape_cast %330 : vector<16x16xf32> to vector<2x8x16xf32>
    %332 = vector.extract_strided_slice %293 {offsets = [0, 16], sizes = [32, 16], strides = [1, 1]} : vector<32x32xf32> to vector<32x16xf32>
    %cst_171 = arith.constant dense<0.000000e+00> : vector<16x16xf32>
    %333 = tpu.matmul %163, %332, %cst_171 {dimension_numbers = #tpu.dot_dimension_numbers<[1], [0], [0], [1], [0, 0, 1, 1], [], []>} : vector<16x32xf32>, vector<32x16xf32>, vector<16x16xf32> -> vector<16x16xf32>
    %334 = vector.shape_cast %333 : vector<16x16xf32> to vector<2x8x16xf32>
    "tpu.trace_start"() <{level = 10 : i32, message = "bqd,bkd->bqk"}> : () -> ()
    %cst_172 = arith.constant dense<0.000000e+00> : vector<2x8x8xf32>
    %335 = tpu.matmul %328, %331, %cst_172 {dimension_numbers = #tpu.dot_dimension_numbers<[2], [2], [1], [1], [0, 0, 0, 1, 1, 1], [0], [0]>} : vector<2x8x16xf32>, vector<2x8x16xf32>, vector<2x8x8xf32> -> vector<2x8x8xf32>
    "tpu.trace_stop"() : () -> ()
    %cst_173 = arith.constant 2.500000e-01 : f32
    %336 = vector.broadcast %cst_173 : f32 to vector<2x8x8xf32>
    %337 = arith.mulf %335, %336 : vector<2x8x8xf32>
    %338 = vector.broadcast %5 : vector<2x1x8xf32> to vector<2x8x8xf32>
    %339 = arith.addf %337, %338 : vector<2x8x8xf32>
    %cst_174 = arith.constant dense<0xFF800000> : vector<2x8xf32>
    %340 = vector.multi_reduction <maximumf>, %339, %cst_174 [2] : vector<2x8x8xf32> to vector<2x8xf32>
    %341 = vector.shape_cast %340 : vector<2x8xf32> to vector<2x8x1xf32>
    %342 = vector.broadcast %341 : vector<2x8x1xf32> to vector<2x8x8xf32>
    %343 = arith.subf %339, %342 : vector<2x8x8xf32>
    %344 = math.exp %343 : vector<2x8x8xf32>
    %cst_175 = arith.constant dense<0.000000e+00> : vector<2x8xf32>
    %345 = vector.multi_reduction <add>, %344, %cst_175 [2] : vector<2x8x8xf32> to vector<2x8xf32>
    %346 = vector.shape_cast %345 : vector<2x8xf32> to vector<2x8x1xf32>
    %347 = tpu.reciprocal %346 {approx = true} : vector<2x8x1xf32> -> vector<2x8x1xf32>
    %348 = vector.broadcast %347 : vector<2x8x1xf32> to vector<2x8x8xf32>
    %349 = arith.mulf %344, %348 : vector<2x8x8xf32>
    "tpu.trace_start"() <{level = 10 : i32, message = "bqk,bkd->bqd"}> : () -> ()
    %cst_176 = arith.constant dense<0.000000e+00> : vector<2x8x16xf32>
    %350 = tpu.matmul %349, %334, %cst_176 {dimension_numbers = #tpu.dot_dimension_numbers<[2], [1], [1], [2], [0, 0, 0, 1, 1, 2], [0], [0]>} : vector<2x8x8xf32>, vector<2x8x16xf32>, vector<2x8x16xf32> -> vector<2x8x16xf32>
    "tpu.trace_stop"() : () -> ()
    %351 = vector.shape_cast %350 : vector<2x8x16xf32> to vector<16x16xf32>
    %352 = vector.extract_strided_slice %295 {offsets = [16, 0], sizes = [16, 32], strides = [1, 1]} : vector<32x32xf32> to vector<16x32xf32>
    %cst_177 = arith.constant dense<0.000000e+00> : vector<16x32xf32>
    %353 = tpu.matmul %351, %352, %cst_177 {dimension_numbers = #tpu.dot_dimension_numbers<[1], [0], [0], [1], [0, 0, 1, 1], [], []>} : vector<16x16xf32>, vector<16x32xf32>, vector<16x32xf32> -> vector<16x32xf32>
    %354 = arith.addf %325, %353 : vector<16x32xf32>
    %355 = arith.addf %271, %354 : vector<16x32xf32>
    %c6_178 = arith.constant 6 : index
    %c0_179 = arith.constant 0 : index
    %356 = vector.load %arg8[%c6_178, %c0_179] : memref<10x32xf32, #tpu.memory_space<vmem>>, vector<1x32xf32>
    %c7_180 = arith.constant 7 : index
    %c0_181 = arith.constant 0 : index
    %357 = vector.load %arg8[%c7_180, %c0_181] : memref<10x32xf32, #tpu.memory_space<vmem>>, vector<1x32xf32>
    %cst_182 = arith.constant dense<0.000000e+00> : vector<16xf32>
    %358 = vector.multi_reduction <add>, %355, %cst_182 [1] : vector<16x32xf32> to vector<16xf32>
    %359 = vector.shape_cast %358 : vector<16xf32> to vector<16x1xf32>
    %cst_183 = arith.constant 3.200000e+01 : f32
    %360 = vector.broadcast %cst_183 : f32 to vector<16x1xf32>
    %361 = arith.divf %359, %360 : vector<16x1xf32>
    %362 = vector.broadcast %361 : vector<16x1xf32> to vector<16x32xf32>
    %363 = arith.subf %355, %362 : vector<16x32xf32>
    %364 = arith.mulf %363, %363 : vector<16x32xf32>
    %cst_184 = arith.constant dense<0.000000e+00> : vector<16xf32>
    %365 = vector.multi_reduction <add>, %364, %cst_184 [1] : vector<16x32xf32> to vector<16xf32>
    %366 = vector.shape_cast %365 : vector<16xf32> to vector<16x1xf32>
    %cst_185 = arith.constant 3.200000e+01 : f32
    %367 = vector.broadcast %cst_185 : f32 to vector<16x1xf32>
    %368 = arith.divf %366, %367 : vector<16x1xf32>
    %369 = vector.broadcast %361 : vector<16x1xf32> to vector<16x32xf32>
    %370 = arith.subf %355, %369 : vector<16x32xf32>
    %cst_186 = arith.constant 9.99999997E-7 : f32
    %371 = vector.broadcast %cst_186 : f32 to vector<16x1xf32>
    %372 = arith.addf %368, %371 : vector<16x1xf32>
    %373 = math.rsqrt %372 : vector<16x1xf32>
    %374 = vector.broadcast %373 : vector<16x1xf32> to vector<16x32xf32>
    %375 = arith.mulf %370, %374 : vector<16x32xf32>
    %376 = vector.broadcast %356 : vector<1x32xf32> to vector<16x32xf32>
    %377 = arith.mulf %375, %376 : vector<16x32xf32>
    %378 = vector.broadcast %357 : vector<1x32xf32> to vector<16x32xf32>
    %379 = arith.addf %377, %378 : vector<16x32xf32>
    %c1_187 = arith.constant 1 : index
    %c0_188 = arith.constant 0 : index
    %c0_189 = arith.constant 0 : index
    %380 = vector.load %arg9[%c1_187, %c0_188, %c0_189] : memref<2x32x64xf32, #tpu.memory_space<vmem>>, vector<1x32x64xf32>
    %381 = vector.shape_cast %380 : vector<1x32x64xf32> to vector<32x64xf32>
    %cst_190 = arith.constant dense<0.000000e+00> : vector<16x64xf32>
    %382 = tpu.matmul %379, %381, %cst_190 {dimension_numbers = #tpu.dot_dimension_numbers<[1], [0], [0], [1], [0, 0, 1, 1], [], []>} : vector<16x32xf32>, vector<32x64xf32>, vector<16x64xf32> -> vector<16x64xf32>
    %cst_191 = arith.constant 0.000000e+00 : f32
    %383 = vector.broadcast %cst_191 : f32 to vector<16x64xf32>
    %384 = arith.maximumf %382, %383 : vector<16x64xf32>
    %c1_192 = arith.constant 1 : index
    %c0_193 = arith.constant 0 : index
    %c0_194 = arith.constant 0 : index
    %385 = vector.load %arg10[%c1_192, %c0_193, %c0_194] : memref<2x64x32xf32, #tpu.memory_space<vmem>>, vector<1x64x32xf32>
    %386 = vector.shape_cast %385 : vector<1x64x32xf32> to vector<64x32xf32>
    %cst_195 = arith.constant dense<0.000000e+00> : vector<16x32xf32>
    %387 = tpu.matmul %384, %386, %cst_195 {dimension_numbers = #tpu.dot_dimension_numbers<[1], [0], [0], [1], [0, 0, 1, 1], [], []>} : vector<16x64xf32>, vector<64x32xf32>, vector<16x32xf32> -> vector<16x32xf32>
    %388 = arith.addf %379, %387 : vector<16x32xf32>
    %c8_196 = arith.constant 8 : index
    %c0_197 = arith.constant 0 : index
    %389 = vector.load %arg8[%c8_196, %c0_197] : memref<10x32xf32, #tpu.memory_space<vmem>>, vector<1x32xf32>
    %c9_198 = arith.constant 9 : index
    %c0_199 = arith.constant 0 : index
    %390 = vector.load %arg8[%c9_198, %c0_199] : memref<10x32xf32, #tpu.memory_space<vmem>>, vector<1x32xf32>
    %cst_200 = arith.constant dense<0.000000e+00> : vector<16xf32>
    %391 = vector.multi_reduction <add>, %388, %cst_200 [1] : vector<16x32xf32> to vector<16xf32>
    %392 = vector.shape_cast %391 : vector<16xf32> to vector<16x1xf32>
    %cst_201 = arith.constant 3.200000e+01 : f32
    %393 = vector.broadcast %cst_201 : f32 to vector<16x1xf32>
    %394 = arith.divf %392, %393 : vector<16x1xf32>
    %395 = vector.broadcast %394 : vector<16x1xf32> to vector<16x32xf32>
    %396 = arith.subf %388, %395 : vector<16x32xf32>
    %397 = arith.mulf %396, %396 : vector<16x32xf32>
    %cst_202 = arith.constant dense<0.000000e+00> : vector<16xf32>
    %398 = vector.multi_reduction <add>, %397, %cst_202 [1] : vector<16x32xf32> to vector<16xf32>
    %399 = vector.shape_cast %398 : vector<16xf32> to vector<16x1xf32>
    %cst_203 = arith.constant 3.200000e+01 : f32
    %400 = vector.broadcast %cst_203 : f32 to vector<16x1xf32>
    %401 = arith.divf %399, %400 : vector<16x1xf32>
    %402 = vector.broadcast %394 : vector<16x1xf32> to vector<16x32xf32>
    %403 = arith.subf %388, %402 : vector<16x32xf32>
    %cst_204 = arith.constant 9.99999997E-7 : f32
    %404 = vector.broadcast %cst_204 : f32 to vector<16x1xf32>
    %405 = arith.addf %401, %404 : vector<16x1xf32>
    %406 = math.rsqrt %405 : vector<16x1xf32>
    %407 = vector.broadcast %406 : vector<16x1xf32> to vector<16x32xf32>
    %408 = arith.mulf %403, %407 : vector<16x32xf32>
    %409 = vector.broadcast %389 : vector<1x32xf32> to vector<16x32xf32>
    %410 = arith.mulf %408, %409 : vector<16x32xf32>
    %411 = vector.broadcast %390 : vector<1x32xf32> to vector<16x32xf32>
    %412 = arith.addf %410, %411 : vector<16x32xf32>
    %c0_205 = arith.constant 0 : index
    %c0_206 = arith.constant 0 : index
    %413 = vector.load %arg11[%c0_205, %c0_206] : memref<32x64xf32, #tpu.memory_space<vmem>>, vector<32x64xf32>
    %cst_207 = arith.constant dense<0.000000e+00> : vector<16x64xf32>
    %414 = tpu.matmul %412, %413, %cst_207 {dimension_numbers = #tpu.dot_dimension_numbers<[1], [0], [0], [1], [0, 0, 1, 1], [], []>} : vector<16x32xf32>, vector<32x64xf32>, vector<16x64xf32> -> vector<16x64xf32>
    %415 = vector.shape_cast %414 : vector<16x64xf32> to vector<2x8x64xf32>
    %c0_208 = arith.constant 0 : index
    %c0_209 = arith.constant 0 : index
    %c0_210 = arith.constant 0 : index
    %416 = vector.load %arg12[%c0_208, %c0_209, %c0_210] : memref<2x8x64xf32, #tpu.memory_space<vmem>>, vector<2x8x64xf32>
    tpu.vector_store %arg12[%c0_208, %c0_209, %c0_210], %415 {strides = array<i32>} : memref<2x8x64xf32, #tpu.memory_space<vmem>>, vector<2x8x64xf32>,
    %c0_211 = arith.constant 0 : index
    %c0_212 = arith.constant 0 : index
    %417 = vector.load %arg4[%c0_211, %c0_212] : memref<16x1xi32, #tpu.memory_space<vmem>>, vector<16x1xi32>
    %418 = tpu.iota {dimensions = array<i32: 1>} : vector<16x64xi32>
    %c0_i32 = arith.constant 0 : i32
    %419 = vector.broadcast %c0_i32 : i32 to vector<16x1xi32>
    %420 = arith.cmpi sge, %417, %419 : vector<16x1xi32>
    %421 = arith.extui %420 : vector<16x1xi1> to vector<16x1xi32>
    %422 = arith.sitofp %421 : vector<16x1xi32> to vector<16x1xf32>
    %cst_213 = arith.constant dense<0xFF800000> : vector<16xf32>
    %423 = vector.multi_reduction <maximumf>, %414, %cst_213 [1] : vector<16x64xf32> to vector<16xf32>
    %424 = vector.shape_cast %423 : vector<16xf32> to vector<16x1xf32>
    %425 = vector.broadcast %424 : vector<16x1xf32> to vector<16x64xf32>
    %426 = arith.subf %414, %425 : vector<16x64xf32>
    %427 = math.exp %426 : vector<16x64xf32>
    %cst_214 = arith.constant dense<0.000000e+00> : vector<16xf32>
    %428 = vector.multi_reduction <add>, %427, %cst_214 [1] : vector<16x64xf32> to vector<16xf32>
    %429 = vector.shape_cast %428 : vector<16xf32> to vector<16x1xf32>
    %430 = math.log %429 : vector<16x1xf32>
    %431 = arith.addf %424, %430 : vector<16x1xf32>
    %432 = vector.broadcast %417 : vector<16x1xi32> to vector<16x64xi32>
    %433 = arith.cmpi eq, %418, %432 : vector<16x64xi32>
    %cst_215 = arith.constant 0.000000e+00 : f32
    %434 = vector.broadcast %cst_215 : f32 to vector<16x64xf32>
    %435 = arith.select %433, %414, %434 : vector<16x64xi1>, vector<16x64xf32>
    %cst_216 = arith.constant dense<0.000000e+00> : vector<16xf32>
    %436 = vector.multi_reduction <add>, %435, %cst_216 [1] : vector<16x64xf32> to vector<16xf32>
    %437 = vector.shape_cast %436 : vector<16xf32> to vector<16x1xf32>
    %438 = arith.subf %431, %437 : vector<16x1xf32>
    %439 = arith.mulf %438, %422 : vector<16x1xf32>
    %440 = vector.shape_cast %439 : vector<16x1xf32> to vector<1x16x1xf32>
    %cst_217 = arith.constant dense<0.000000e+00> : vector<1xf32>
    %441 = vector.multi_reduction <add>, %440, %cst_217 [1, 2] : vector<1x16x1xf32> to vector<1xf32>
    %442 = vector.shape_cast %441 : vector<1xf32> to vector<1x1x1xf32>
    %443 = vector.extract %442[0, 0, 0] : f32 from vector<1x1x1xf32>
    %444 = vector.shape_cast %422 : vector<16x1xf32> to vector<1x16x1xf32>
    %cst_218 = arith.constant dense<0.000000e+00> : vector<1xf32>
    %445 = vector.multi_reduction <add>, %444, %cst_218 [1, 2] : vector<1x16x1xf32> to vector<1xf32>
    %446 = vector.shape_cast %445 : vector<1xf32> to vector<1x1x1xf32>
    %447 = vector.extract %446[0, 0, 0] : f32 from vector<1x1x1xf32>
    %cst_219 = arith.constant 1.000000e+00 : f32
    %448 = arith.maximumf %447, %cst_219 : f32
    %449 = arith.divf %443, %448 : f32
    %c0_220 = arith.constant 0 : index
    %c0_221 = arith.constant 0 : index
    %450 = memref.load %arg13[%c0_220, %c0_221] : memref<1x1xf32, #tpu.memory_space<smem>>
    memref.store %449, %arg13[%c0_220, %c0_221] : memref<1x1xf32, #tpu.memory_space<smem>>
    return
  }
}

</mosaic_0001>

<llo_original>
// kernel: peft_seq2seq_forward.1
$region0: #{peft_seq2seq_forward.1}
  #allocation0 [shape = 'u32[]', space=smem, size = 0x4, offset = 0x4, fixed_abs, tag = 'smem constant byte address 0x4 - core index']
  #allocation1 [shape = 'u32[72,128]{1,0:T(1,128)}', space=vmem, size = 0x9000, scoped, tag = 'internal scratch']
  %s0 = inlined_call_operand.vmem [shape: f32[2,8,32], index: 0, kind: input, shape index: {}]
  %s1 = inlined_call_operand.vmem [shape: f32[2,8,32], index: 1, kind: input, shape index: {}]
  %s2 = inlined_call_operand.vmem [shape: f32[2,8], index: 2, kind: input, shape index: {}]
  %s3 = inlined_call_operand.vmem [shape: f32[2,8], index: 3, kind: input, shape index: {}]
  %s4 = inlined_call_operand.vmem [shape: s32[16,1], index: 4, kind: input, shape index: {}]
  %s5 = inlined_call_operand.vmem [shape: f32[12,32,32], index: 5, kind: input, shape index: {}]
  %s6 = inlined_call_operand.vmem [shape: f32[6,32,8], index: 6, kind: input, shape index: {}]
  %s7 = inlined_call_operand.vmem [shape: f32[6,8,32], index: 7, kind: input, shape index: {}]
  %s8 = inlined_call_operand.vmem [shape: f32[10,32], index: 8, kind: input, shape index: {}]
  %s9 = inlined_call_operand.vmem [shape: f32[2,32,64], index: 9, kind: input, shape index: {}]
  %s10 = inlined_call_operand.vmem [shape: f32[2,64,32], index: 10, kind: input, shape index: {}]
  %s11 = inlined_call_operand.vmem [shape: f32[32,64], index: 11, kind: input, shape index: {}]
  %s12 = inlined_call_operand.hbm [shape: f32[2,8,64], index: 12, kind: output, shape index: {0}]
  %s13 = inlined_call_operand.hbm [shape: f32[1,1], index: 13, kind: output, shape index: {1}]
  %14 = xla_tuple %s12, %s13
  %s15 = sld [smem:[#allocation0]]
  $region66: #{peft_seq2seq_forward.1} parent=0
    _
  %s17 = ssub.s32 1, %s15
  %s18 = scalar_select 0, %s17, %s15
  $region1: #{peft_seq2seq_forward.1} parent=0
    #allocation2 [shape = 'u8[8192]{0}', space=vmem, size = 0x2000, scoped, tag = 'output window, operand 0, single buffered']
    #allocation3 [shape = 's32[1]{0}', space=sflag, size = 0x4, scoped, tag = 'scoped memory for peft_seq2seq_forward.1']
    #allocation4 [shape = 's32[1]{0}', space=sflag, size = 0x4, scoped, tag = 'scoped memory for peft_seq2seq_forward.1']
    #allocation5 [shape = 'u8[512]{0}', space=smem, size = 0x200, scoped, tag = 'output window, operand 1, single buffered']
    %19 = vsyncpa [#allocation3], 0
    %20 = vsyncpa [#allocation4], 0
    // Predicated region
    $region2: #{peft_seq2seq_forward.1} parent=1 // pred_check
      _
    $region3: #{peft_seq2seq_forward.1} parent=1 // pred_check_branch
      %22 = sbr.rel (0) target = $region5
    $region4: #{peft_seq2seq_forward.1} parent=1 // pred_region
      _
    $region5: #{peft_seq2seq_forward.1} parent=1 // pred_fallthru
      _
    // Predicated region
    $region6: #{peft_seq2seq_forward.1} parent=1 // pred_check
      _
    $region7: #{peft_seq2seq_forward.1} parent=1 // pred_check_branch
      %24 = sbr.rel (0) target = $region9
    $region8: #{peft_seq2seq_forward.1} parent=1 // pred_region
      _
    $region9: #{peft_seq2seq_forward.1} parent=1 // pred_fallthru
      _
    // Predicated region
    $region10: #{peft_seq2seq_forward.1} parent=1 // pred_check
      _
    $region11: #{peft_seq2seq_forward.1} parent=1 // pred_check_branch
      %26 = sbr.rel (0) target = $region13
    $region12: #{peft_seq2seq_forward.1} parent=1 // pred_region
      _
    $region13: #{peft_seq2seq_forward.1} parent=1 // pred_fallthru
      _
    // Predicated region
    $region14: #{peft_seq2seq_forward.1} parent=1 // pred_check
      _
    $region15: #{peft_seq2seq_forward.1} parent=1 // pred_check_branch
      %28 = sbr.rel (0) target = $region17
    $region16: #{peft_seq2seq_forward.1} parent=1 // pred_region
      _
    $region17: #{peft_seq2seq_forward.1} parent=1 // pred_fallthru
      _
    // Predicated region
    $region18: #{peft_seq2seq_forward.1} parent=1 // pred_check
      _
    $region19: #{peft_seq2seq_forward.1} parent=1 // pred_check_branch
      %30 = sbr.rel (0) target = $region21
    $region20: #{peft_seq2seq_forward.1} parent=1 // pred_region
      _
    $region21: #{peft_seq2seq_forward.1} parent=1 // pred_fallthru
      _
    // Predicated region
    $region22: #{peft_seq2seq_forward.1} parent=1 // pred_check
      _
    $region23: #{peft_seq2seq_forward.1} parent=1 // pred_check_branch
      %32 = sbr.rel (0) target = $region25
    $region24: #{peft_seq2seq_forward.1} parent=1 // pred_region
      _
    $region25: #{peft_seq2seq_forward.1} parent=1 // pred_fallthru
      _
    // Predicated region
    $region26: #{peft_seq2seq_forward.1} parent=1 // pred_check
      _
    $region27: #{peft_seq2seq_forward.1} parent=1 // pred_check_branch
      %34 = sbr.rel (0) target = $region29
    $region28: #{peft_seq2seq_forward.1} parent=1 // pred_region
      _
    $region29: #{peft_seq2seq_forward.1} parent=1 // pred_fallthru
      _
    // Predicated region
    $region30: #{peft_seq2seq_forward.1} parent=1 // pred_check
      _
    $region31: #{peft_seq2seq_forward.1} parent=1 // pred_check_branch
      %36 = sbr.rel (0) target = $region33
    $region32: #{peft_seq2seq_forward.1} parent=1 // pred_region
      _
    $region33: #{peft_seq2seq_forward.1} parent=1 // pred_fallthru
      _
    // Predicated region
    $region34: #{peft_seq2seq_forward.1} parent=1 // pred_check
      _
    $region35: #{peft_seq2seq_forward.1} parent=1 // pred_check_branch
      %38 = sbr.rel (0) target = $region37
    $region36: #{peft_seq2seq_forward.1} parent=1 // pred_region
      _
    $region37: #{peft_seq2seq_forward.1} parent=1 // pred_fallthru
      _
    // Predicated region
    $region38: #{peft_seq2seq_forward.1} parent=1 // pred_check
      _
    $region39: #{peft_seq2seq_forward.1} parent=1 // pred_check_branch
      %40 = sbr.rel (0) target = $region41
    $region40: #{peft_seq2seq_forward.1} parent=1 // pred_region
      _
    $region41: #{peft_seq2seq_forward.1} parent=1 // pred_fallthru
      _
    // Predicated region
    $region42: #{peft_seq2seq_forward.1} parent=1 // pred_check
      _
    $region43: #{peft_seq2seq_forward.1} parent=1 // pred_check_branch
      %42 = sbr.rel (0) target = $region45
    $region44: #{peft_seq2seq_forward.1} parent=1 // pred_region
      _
    $region45: #{peft_seq2seq_forward.1} parent=1 // pred_fallthru
      _
    // Predicated region
    $region46: #{peft_seq2seq_forward.1} parent=1 // pred_check
      _
    $region47: #{peft_seq2seq_forward.1} parent=1 // pred_check_branch
      %44 = sbr.rel (0) target = $region49
    $region48: #{peft_seq2seq_forward.1} parent=1 // pred_region
      _
    $region49: #{peft_seq2seq_forward.1} parent=1 // pred_fallthru
      _
    %v45 = vld [vmem:[%s2] sm:$0x3]
    %v46 = vsub.f32 1.0, %v45
    %v48 = vrot.slane %v46, 1
    %v50 = vmul.f32 %v46, -1e+09
    %v51 = vmul.f32 %v48, -1e+09
    %v52 = vld [vmem:[%s3] sm:$0x3]
    %v53 = vlaneseq
    %v54 = vshrl.u32 %v53, 7
    %v55 = vlaneseq
    %v56 = vand.u32 %v55, 127
    %vm57 = vcmp.le.s32.totalorder %v56, %v54
    %v58 = vsel %vm57, 1, 0
    %v59 = vcvt.s32.f32 %v58
    %v61 = vrot.slane %v52, 1
    %v62 = vperm.slane %v52, 0
    %v63 = vperm.slane %v61, 0
    %v66 = vmul.f32 %v59, %v62
    %v67 = vmul.f32 %v59, %v63
    %v68 = vsub.f32 1.0, %v66
    %v69 = vsub.f32 1.0, %v67
    %v70 = vmul.f32 %v68, -1e+09
    %v71 = vmul.f32 %v69, -1e+09
    %v72 = vld [vmem:[%s0] sm:$0xff]
    %v73 = vld [vmem:[%s0 + $0x8] sm:$0xff]
    %v74 = vld [vmem:[%s5] sm:$0xff]
    %v75 = vld [vmem:[%s5 + $0x8] sm:$0xff]
    %v76 = vld [vmem:[%s5 + $0x10] sm:$0xff]
    %v77 = vld [vmem:[%s5 + $0x18] sm:$0xff]
    %v78 = vld [vmem:[%s6] sm:$0xff]
    %v79 = vld [vmem:[%s6 + $0x8] sm:$0xff]
    %v80 = vld [vmem:[%s6 + $0x10] sm:$0xff]
    %v81 = vld [vmem:[%s6 + $0x18] sm:$0xff]
    %v82 = vld [vmem:[%s7] sm:$0xff]
    %vm83 = vcmask 64512
    %v85 = vsel %vm83, %v78, 0
    %v88 = vsel %vm83, %v79, 0
    %v91 = vsel %vm83, %v80, 0
    %v94 = vsel %vm83, %v81, 0
    %96 = vmatpush.msra.mxu0 0.0
    %97 = vmatpush.msra.mxu0 0.0
    %98 = vmatpush.msra.mxu0 0.0
    %99 = vmatpush.msra.mxu0 0.0
    %100 = vmatpush.msra.mxu0 0.0
    %101 = vmatpush.msra.mxu0 0.0
    %102 = vmatpush.msra.mxu0 0.0
    %103 = vmatpush.msra.mxu0 0.0
    %104 = vmatpush.msra.mxu0 0.0
    %105 = vmatpush.msra.mxu0 0.0
    %106 = vmatpush.msra.mxu0 0.0
    %107 = vmatpush.msra.mxu0 0.0
    %108 = vmatpush.msra.mxu0 0.0
    %109 = vmatpush.msra.mxu0 0.0
    %110 = vmatpush.msra.mxu0 0.0
    %111 = vmatpush.msra.mxu0 %v82
    %112 = vmatmul.f32.gmra.mxu0 %v85
    %v113 = vpop.f32.mrf.mxu0
    %v114 = vadd.f32 0.0, %v113
    %115 = vmatmul.f32.gmra.mxu0 %v88
    %v116 = vpop.f32.mrf.mxu0
    %v117 = vadd.f32 0.0, %v116
    %118 = vmatmul.f32.gmra.mxu0 %v91
    %v119 = vpop.f32.mrf.mxu0
    %v120 = vadd.f32 0.0, %v119
    %121 = vmatmul.f32.gmra.mxu0 %v94
    %v122 = vpop.f32.mrf.mxu0
    %v123 = vadd.f32 0.0, %v122
    %124 = vdwg.mxu0
    %v125 = vmul.f32 %v114, 4.0
    %v126 = vmul.f32 %v117, 4.0
    %v127 = vmul.f32 %v120, 4.0
    %v128 = vmul.f32 %v123, 4.0
    %v129 = vadd.f32 %v74, %v125
    %v130 = vadd.f32 %v75, %v126
    %v131 = vadd.f32 %v76, %v127
    %v132 = vadd.f32 %v77, %v128
    %s133 = scalar_lea.vmem %s5, 32
    %v134 = vld [vmem:[%s133] sm:$0xff]
    %v135 = vld [vmem:[%s133 + $0x8] sm:$0xff]
    %v136 = vld [vmem:[%s133 + $0x10] sm:$0xff]
    %v137 = vld [vmem:[%s133 + $0x18] sm:$0xff]
    %s138 = scalar_lea.vmem %s5, 64
    %v139 = vld [vmem:[%s138] sm:$0xff]
    %v140 = vld [vmem:[%s138 + $0x8] sm:$0xff]
    %v141 = vld [vmem:[%s138 + $0x10] sm:$0xff]
    %v142 = vld [vmem:[%s138 + $0x18] sm:$0xff]
    %s143 = scalar_lea.vmem %s6, 32
    %v144 = vld [vmem:[%s143] sm:$0xff]
    %v145 = vld [vmem:[%s143 + $0x8] sm:$0xff]
    %v146 = vld [vmem:[%s143 + $0x10] sm:$0xff]
    %v147 = vld [vmem:[%s143 + $0x18] sm:$0xff]
    %s148 = scalar_lea.vmem %s7, 8
    %v149 = vld [vmem:[%s148] sm:$0xff]
    %v151 = vsel %vm83, %v144, 0
    %v154 = vsel %vm83, %v145, 0
    %v157 = vsel %vm83, %v146, 0
    %v160 = vsel %vm83, %v147, 0
    %162 = vmatpush.msra.mxu0 0.0
    %163 = vmatpush.msra.mxu0 0.0
    %164 = vmatpush.msra.mxu0 0.0
    %165 = vmatpush.msra.mxu0 0.0
    %166 = vmatpush.msra.mxu0 0.0
    %167 = vmatpush.msra.mxu0 0.0
    %168 = vmatpush.msra.mxu0 0.0
    %169 = vmatpush.msra.mxu0 0.0
    %170 = vmatpush.msra.mxu0 0.0
    %171 = vmatpush.msra.mxu0 0.0
    %172 = vmatpush.msra.mxu0 0.0
    %173 = vmatpush.msra.mxu0 0.0
    %174 = vmatpush.msra.mxu0 0.0
    %175 = vmatpush.msra.mxu0 0.0
    %176 = vmatpush.msra.mxu0 0.0
    %177 = vmatpush.msra.mxu0 %v149
    %178 = vmatmul.f32.gmra.mxu0 %v151
    %v179 = vpop.f32.mrf.mxu0
    %v180 = vadd.f32 0.0, %v179
    %181 = vmatmul.f32.gmra.mxu0 %v154
    %v182 = vpop.f32.mrf.mxu0
    %v183 = vadd.f32 0.0, %v182
    %184 = vmatmul.f32.gmra.mxu0 %v157
    %v185 = vpop.f32.mrf.mxu0
    %v186 = vadd.f32 0.0, %v185
    %187 = vmatmul.f32.gmra.mxu0 %v160
    %v188 = vpop.f32.mrf.mxu0
    %v189 = vadd.f32 0.0, %v188
    %190 = vdwg.mxu0
    %v191 = vmul.f32 %v180, 4.0
    %v192 = vmul.f32 %v183, 4.0
    %v193 = vmul.f32 %v186, 4.0
    %v194 = vmul.f32 %v189, 4.0
    %v195 = vadd.f32 %v139, %v191
    %v196 = vadd.f32 %v140, %v192
    %v197 = vadd.f32 %v141, %v193
    %v198 = vadd.f32 %v142, %v194
    %s199 = scalar_lea.vmem %s5, 96
    %v200 = vld [vmem:[%s199] sm:$0xff]
    %v201 = vld [vmem:[%s199 + $0x8] sm:$0xff]
    %v202 = vld [vmem:[%s199 + $0x10] sm:$0xff]
    %v203 = vld [vmem:[%s199 + $0x18] sm:$0xff]
    %vm204 = vcmask 261120
    %v206 = vsel %vm204, %v72, 0
    %v209 = vsel %vm204, %v73, 0
    %211 = vmatpush.msra.mxu0 0.0
    %212 = vmatpush.msra.mxu0 0.0
    %213 = vmatpush.msra.mxu0 0.0
    %214 = vmatpush.msra.mxu0 0.0
    %215 = vmatpush.msra.mxu0 0.0
    %216 = vmatpush.msra.mxu0 0.0
    %217 = vmatpush.msra.mxu0 0.0
    %218 = vmatpush.msra.mxu0 0.0
    %219 = vmatpush.msra.mxu0 0.0
    %220 = vmatpush.msra.mxu0 0.0
    %221 = vmatpush.msra.mxu0 0.0
    %222 = vmatpush.msra.mxu0 0.0
    %223 = vmatpush.msra.mxu0 %v132
    %224 = vmatpush.msra.mxu0 %v131
    %225 = vmatpush.msra.mxu0 %v130
    %226 = vmatpush.msra.mxu0 %v129
    %227 = vmatmul.f32.gmra.mxu0 %v206
    %v228 = vpop.f32.mrf.mxu0
    %v229 = vadd.f32 0.0, %v228
    %230 = vmatmul.f32.gmra.mxu0 %v209
    %v231 = vpop.f32.mrf.mxu0
    %v232 = vadd.f32 0.0, %v231
    %233 = vdwg.mxu0
    %234 = vmatpush.msra.mxu0 0.0
    %235 = vmatpush.msra.mxu0 0.0
    %236 = vmatpush.msra.mxu0 0.0
    %237 = vmatpush.msra.mxu0 0.0
    %238 = vmatpush.msra.mxu0 0.0
    %239 = vmatpush.msra.mxu0 0.0
    %240 = vmatpush.msra.mxu0 0.0
    %241 = vmatpush.msra.mxu0 0.0
    %242 = vmatpush.msra.mxu0 0.0
    %243 = vmatpush.msra.mxu0 0.0
    %244 = vmatpush.msra.mxu0 0.0
    %245 = vmatpush.msra.mxu0 0.0
    %246 = vmatpush.msra.mxu0 %v137
    %247 = vmatpush.msra.mxu0 %v136
    %248 = vmatpush.msra.mxu0 %v135
    %249 = vmatpush.msra.mxu0 %v134
    %250 = vmatmul.f32.gmra.mxu0 %v206
    %v251 = vpop.f32.mrf.mxu0
    %v252 = vadd.f32 0.0, %v251
    %253 = vmatmul.f32.gmra.mxu0 %v209
    %v254 = vpop.f32.mrf.mxu0
    %v255 = vadd.f32 0.0, %v254
    %256 = vdwg.mxu0
    %257 = vmatpush.msra.mxu0 0.0
    %258 = vmatpush.msra.mxu0 0.0
    %259 = vmatpush.msra.mxu0 0.0
    %260 = vmatpush.msra.mxu0 0.0
    %261 = vmatpush.msra.mxu0 0.0
    %262 = vmatpush.msra.mxu0 0.0
    %263 = vmatpush.msra.mxu0 0.0
    %264 = vmatpush.msra.mxu0 0.0
    %265 = vmatpush.msra.mxu0 0.0
    %266 = vmatpush.msra.mxu0 0.0
    %267 = vmatpush.msra.mxu0 0.0
    %268 = vmatpush.msra.mxu0 0.0
    %269 = vmatpush.msra.mxu0 %v198
    %270 = vmatpush.msra.mxu0 %v197
    %271 = vmatpush.msra.mxu0 %v196
    %272 = vmatpush.msra.mxu0 %v195
    %273 = vmatmul.f32.gmra.mxu0 %v206
    %v274 = vpop.f32.mrf.mxu0
    %v275 = vadd.f32 0.0, %v274
    %276 = vmatmul.f32.gmra.mxu0 %v209
    %v277 = vpop.f32.mrf.mxu0
    %v278 = vadd.f32 0.0, %v277
    %279 = vdwg.mxu0
    %vm280 = vcmask 130048
    %v282 = vsel %vm280, %v229, 0
    %v285 = vsel %vm280, %v252, 0
    %287 = vmatpush.xpose.msra.mxu0 0.0
    %288 = vmatpush.xpose.msra.mxu0 0.0
    %289 = vmatpush.xpose.msra.mxu0 0.0
    %290 = vmatpush.xpose.msra.mxu0 0.0
    %291 = vmatpush.xpose.msra.mxu0 0.0
    %292 = vmatpush.xpose.msra.mxu0 0.0
    %293 = vmatpush.xpose.msra.mxu0 0.0
    %294 = vmatpush.xpose.msra.mxu0 0.0
    %295 = vmatpush.xpose.msra.mxu0 0.0
    %296 = vmatpush.xpose.msra.mxu0 0.0
    %297 = vmatpush.xpose.msra.mxu0 0.0
    %298 = vmatpush.xpose.msra.mxu0 0.0
    %299 = vmatpush.xpose.msra.mxu0 0.0
    %300 = vmatpush.xpose.msra.mxu0 0.0
    %301 = vmatpush.xpose.msra.mxu0 0.0
    %302 = vmatpush.xpose.msra.mxu0 %v285
    %303 = vmatmul.f32.gmra.mxu0 %v282
    %v304 = vpop.f32.mrf.mxu0
    %v305 = vadd.f32 0.0, %v304
    %306 = vdwg.mxu0
    %v308 = vsel %vm280, %v232, 0
    %v311 = vsel %vm280, %v255, 0
    %313 = vmatpush.xpose.msra.mxu0 0.0
    %314 = vmatpush.xpose.msra.mxu0 0.0
    %315 = vmatpush.xpose.msra.mxu0 0.0
    %316 = vmatpush.xpose.msra.mxu0 0.0
    %317 = vmatpush.xpose.msra.mxu0 0.0
    %318 = vmatpush.xpose.msra.mxu0 0.0
    %319 = vmatpush.xpose.msra.mxu0 0.0
    %320 = vmatpush.xpose.msra.mxu0 0.0
    %321 = vmatpush.xpose.msra.mxu0 0.0
    %322 = vmatpush.xpose.msra.mxu0 0.0
    %323 = vmatpush.xpose.msra.mxu0 0.0
    %324 = vmatpush.xpose.msra.mxu0 0.0
    %325 = vmatpush.xpose.msra.mxu0 0.0
    %326 = vmatpush.xpose.msra.mxu0 0.0
    %327 = vmatpush.xpose.msra.mxu0 0.0
    %328 = vmatpush.xpose.msra.mxu0 %v311
    %329 = vmatmul.f32.gmra.mxu0 %v308
    %v330 = vpop.f32.mrf.mxu0
    %v331 = vadd.f32 0.0, %v330
    %332 = vdwg.mxu0
    %v333 = vmul.f32 %v305, 0.25
    %v334 = vmul.f32 %v331, 0.25
    %v337 = vperm.slane %v50, 0
    %v338 = vperm.slane %v51, 0
    %v341 = vadd.f32 %v333, %v337
    %v342 = vadd.f32 %v334, %v338
    %v343 = vsel %vm83, %v341, -inf
    %344 = vmax.xlane.f32.xlu0 %v343
    %v345 = vpop.xlane.xlu0 %344
    %v346 = vsel %vm83, %v342, -inf
    %347 = vmax.xlane.f32.xlu0 %v346
    %v348 = vpop.xlane.xlu0 %347
    %v349 = vsub.f32 %v341, %v345
    %v350 = vsub.f32 %v342, %v348
    %v351 = vmul.f32 %v349, 1.442695
    %v352 = vpow.pop %v351
    %v353 = vmul.f32 %v350, 1.442695
    %v354 = vpow.pop %v353
    %v355 = vsel %vm83, %v352, 0.0
    %356 = vadd.xlane.f32.xlu0 %v355
    %v357 = vpop.xlane.xlu0 %356
    %v358 = vsel %vm83, %v354, 0.0
    %359 = vadd.xlane.f32.xlu0 %v358
    %v360 = vpop.xlane.xlu0 %359
    %v361 = vrcp.pop %v357
    %v362 = vrcp.pop %v360
    %v363 = vmul.f32 %v352, %v361
    %v364 = vmul.f32 %v354, %v362
    %v366 = vsel %vm83, %v363, 0
    %368 = vmatpush.msra.mxu0 0.0
    %369 = vmatpush.msra.mxu0 0.0
    %370 = vmatpush.msra.mxu0 0.0
    %371 = vmatpush.msra.mxu0 0.0
    %372 = vmatpush.msra.mxu0 0.0
    %373 = vmatpush.msra.mxu0 0.0
    %374 = vmatpush.msra.mxu0 0.0
    %375 = vmatpush.msra.mxu0 0.0
    %376 = vmatpush.msra.mxu0 0.0
    %377 = vmatpush.msra.mxu0 0.0
    %378 = vmatpush.msra.mxu0 0.0
    %379 = vmatpush.msra.mxu0 0.0
    %380 = vmatpush.msra.mxu0 0.0
    %381 = vmatpush.msra.mxu0 0.0
    %382 = vmatpush.msra.mxu0 0.0
    %383 = vmatpush.msra.mxu0 %v275
    %384 = vmatmul.f32.gmra.mxu0 %v366
    %v385 = vpop.f32.mrf.mxu0
    %v386 = vadd.f32 0.0, %v385
    %387 = vdwg.mxu0
    %v389 = vsel %vm83, %v364, 0
    %391 = vmatpush.msra.mxu0 0.0
    %392 = vmatpush.msra.mxu0 0.0
    %393 = vmatpush.msra.mxu0 0.0
    %394 = vmatpush.msra.mxu0 0.0
    %395 = vmatpush.msra.mxu0 0.0
    %396 = vmatpush.msra.mxu0 0.0
    %397 = vmatpush.msra.mxu0 0.0
    %398 = vmatpush.msra.mxu0 0.0
    %399 = vmatpush.msra.mxu0 0.0
    %400 = vmatpush.msra.mxu0 0.0
    %401 = vmatpush.msra.mxu0 0.0
    %402 = vmatpush.msra.mxu0 0.0
    %403 = vmatpush.msra.mxu0 0.0
    %404 = vmatpush.msra.mxu0 0.0
    %405 = vmatpush.msra.mxu0 0.0
    %406 = vmatpush.msra.mxu0 %v278
    %407 = vmatmul.f32.gmra.mxu0 %v389
    %v408 = vpop.f32.mrf.mxu0
    %v409 = vadd.f32 0.0, %v408
    %410 = vdwg.mxu0
    %415 = vrot.lane.b32.xlu0 %v129, 112
    %v416 = vpop.permute.xlu0 %415
    %417 = vrot.lane.b32.xlu0 %v130, 112
    %v418 = vpop.permute.xlu0 %417
    %419 = vrot.lane.b32.xlu0 %v131, 112
    %v420 = vpop.permute.xlu0 %419
    %421 = vrot.lane.b32.xlu0 %v132, 112
    %v422 = vpop.permute.xlu0 %421
    %427 = vmatpush.msra.mxu0 0.0
    %428 = vmatpush.msra.mxu0 0.0
    %429 = vmatpush.msra.mxu0 0.0
    %430 = vmatpush.msra.mxu0 0.0
    %431 = vmatpush.msra.mxu0 0.0
    %432 = vmatpush.msra.mxu0 0.0
    %433 = vmatpush.msra.mxu0 0.0
    %434 = vmatpush.msra.mxu0 0.0
    %435 = vmatpush.msra.mxu0 0.0
    %436 = vmatpush.msra.mxu0 0.0
    %437 = vmatpush.msra.mxu0 0.0
    %438 = vmatpush.msra.mxu0 0.0
    %439 = vmatpush.msra.mxu0 %v422
    %440 = vmatpush.msra.mxu0 %v420
    %441 = vmatpush.msra.mxu0 %v418
    %442 = vmatpush.msra.mxu0 %v416
    %443 = vmatmul.f32.gmra.mxu0 %v206
    %v444 = vpop.f32.mrf.mxu0
    %v445 = vadd.f32 0.0, %v444
    %446 = vmatmul.f32.gmra.mxu0 %v209
    %v447 = vpop.f32.mrf.mxu0
    %v448 = vadd.f32 0.0, %v447
    %449 = vdwg.mxu0
    %454 = vrot.lane.b32.xlu0 %v134, 112
    %v455 = vpop.permute.xlu0 %454
    %456 = vrot.lane.b32.xlu0 %v135, 112
    %v457 = vpop.permute.xlu0 %456
    %458 = vrot.lane.b32.xlu0 %v136, 112
    %v459 = vpop.permute.xlu0 %458
    %460 = vrot.lane.b32.xlu0 %v137, 112
    %v461 = vpop.permute.xlu0 %460
    %466 = vmatpush.msra.mxu0 0.0
    %467 = vmatpush.msra.mxu0 0.0
    %468 = vmatpush.msra.mxu0 0.0
    %469 = vmatpush.msra.mxu0 0.0
    %470 = vmatpush.msra.mxu0 0.0
    %471 = vmatpush.msra.mxu0 0.0
    %472 = vmatpush.msra.mxu0 0.0
    %473 = vmatpush.msra.mxu0 0.0
    %474 = vmatpush.msra.mxu0 0.0
    %475 = vmatpush.msra.mxu0 0.0
    %476 = vmatpush.msra.mxu0 0.0
    %477 = vmatpush.msra.mxu0 0.0
    %478 = vmatpush.msra.mxu0 %v461
    %479 = vmatpush.msra.mxu0 %v459
    %480 = vmatpush.msra.mxu0 %v457
    %481 = vmatpush.msra.mxu0 %v455
    %482 = vmatmul.f32.gmra.mxu0 %v206
    %v483 = vpop.f32.mrf.mxu0
    %v484 = vadd.f32 0.0, %v483
    %485 = vmatmul.f32.gmra.mxu0 %v209
    %v486 = vpop.f32.mrf.mxu0
    %v487 = vadd.f32 0.0, %v486
    %488 = vdwg.mxu0
    %493 = vrot.lane.b32.xlu0 %v195, 112
    %v494 = vpop.permute.xlu0 %493
    %495 = vrot.lane.b32.xlu0 %v196, 112
    %v496 = vpop.permute.xlu0 %495
    %497 = vrot.lane.b32.xlu0 %v197, 112
    %v498 = vpop.permute.xlu0 %497
    %499 = vrot.lane.b32.xlu0 %v198, 112
    %v500 = vpop.permute.xlu0 %499
    %505 = vmatpush.msra.mxu0 0.0
    %506 = vmatpush.msra.mxu0 0.0
    %507 = vmatpush.msra.mxu0 0.0
    %508 = vmatpush.msra.mxu0 0.0
    %509 = vmatpush.msra.mxu0 0.0
    %510 = vmatpush.msra.mxu0 0.0
    %511 = vmatpush.msra.mxu0 0.0
    %512 = vmatpush.msra.mxu0 0.0
    %513 = vmatpush.msra.mxu0 0.0
    %514 = vmatpush.msra.mxu0 0.0
    %515 = vmatpush.msra.mxu0 0.0
    %516 = vmatpush.msra.mxu0 0.0
    %517 = vmatpush.msra.mxu0 %v500
    %518 = vmatpush.msra.mxu0 %v498
    %519 = vmatpush.msra.mxu0 %v496
    %520 = vmatpush.msra.mxu0 %v494
    %521 = vmatmul.f32.gmra.mxu0 %v206
    %v522 = vpop.f32.mrf.mxu0
    %v523 = vadd.f32 0.0, %v522
    %524 = vmatmul.f32.gmra.mxu0 %v209
    %v525 = vpop.f32.mrf.mxu0
    %v526 = vadd.f32 0.0, %v525
    %527 = vdwg.mxu0
    %v529 = vsel %vm280, %v445, 0
    %v532 = vsel %vm280, %v484, 0
    %534 = vmatpush.xpose.msra.mxu0 0.0
    %535 = vmatpush.xpose.msra.mxu0 0.0
    %536 = vmatpush.xpose.msra.mxu0 0.0
    %537 = vmatpush.xpose.msra.mxu0 0.0
    %538 = vmatpush.xpose.msra.mxu0 0.0
    %539 = vmatpush.xpose.msra.mxu0 0.0
    %540 = vmatpush.xpose.msra.mxu0 0.0
    %541 = vmatpush.xpose.msra.mxu0 0.0
    %542 = vmatpush.xpose.msra.mxu0 0.0
    %543 = vmatpush.xpose.msra.mxu0 0.0
    %544 = vmatpush.xpose.msra.mxu0 0.0
    %545 = vmatpush.xpose.msra.mxu0 0.0
    %546 = vmatpush.xpose.msra.mxu0 0.0
    %547 = vmatpush.xpose.msra.mxu0 0.0
    %548 = vmatpush.xpose.msra.mxu0 0.0
    %549 = vmatpush.xpose.msra.mxu0 %v532
    %550 = vmatmul.f32.gmra.mxu0 %v529
    %v551 = vpop.f32.mrf.mxu0
    %v552 = vadd.f32 0.0, %v551
    %553 = vdwg.mxu0
    %v555 = vsel %vm280, %v448, 0
    %v558 = vsel %vm280, %v487, 0
    %560 = vmatpush.xpose.msra.mxu0 0.0
    %561 = vmatpush.xpose.msra.mxu0 0.0
    %562 = vmatpush.xpose.msra.mxu0 0.0
    %563 = vmatpush.xpose.msra.mxu0 0.0
    %564 = vmatpush.xpose.msra.mxu0 0.0
    %565 = vmatpush.xpose.msra.mxu0 0.0
    %566 = vmatpush.xpose.msra.mxu0 0.0
    %567 = vmatpush.xpose.msra.mxu0 0.0
    %568 = vmatpush.xpose.msra.mxu0 0.0
    %569 = vmatpush.xpose.msra.mxu0 0.0
    %570 = vmatpush.xpose.msra.mxu0 0.0
    %571 = vmatpush.xpose.msra.mxu0 0.0
    %572 = vmatpush.xpose.msra.mxu0 0.0
    %573 = vmatpush.xpose.msra.mxu0 0.0
    %574 = vmatpush.xpose.msra.mxu0 0.0
    %575 = vmatpush.xpose.msra.mxu0 %v558
    %576 = vmatmul.f32.gmra.mxu0 %v555
    %v577 = vpop.f32.mrf.mxu0
    %v578 = vadd.f32 0.0, %v577
    %579 = vdwg.mxu0
    %v580 = vmul.f32 %v552, 0.25
    %v581 = vmul.f32 %v578, 0.25
    %v582 = vadd.f32 %v580, %v337
    %v583 = vadd.f32 %v581, %v338
    %v584 = vsel %vm83, %v582, -inf
    %585 = vmax.xlane.f32.xlu0 %v584
    %v586 = vpop.xlane.xlu0 %585
    %v587 = vsel %vm83, %v583, -inf
    %588 = vmax.xlane.f32.xlu0 %v587
    %v589 = vpop.xlane.xlu0 %588
    %v590 = vsub.f32 %v582, %v586
    %v591 = vsub.f32 %v583, %v589
    %v592 = vmul.f32 %v590, 1.442695
    %v593 = vpow.pop %v592
    %v594 = vmul.f32 %v591, 1.442695
    %v595 = vpow.pop %v594
    %v596 = vsel %vm83, %v593, 0.0
    %597 = vadd.xlane.f32.xlu0 %v596
    %v598 = vpop.xlane.xlu0 %597
    %v599 = vsel %vm83, %v595, 0.0
    %600 = vadd.xlane.f32.xlu0 %v599
    %v601 = vpop.xlane.xlu0 %600
    %v602 = vrcp.pop %v598
    %v603 = vrcp.pop %v601
    %v604 = vmul.f32 %v593, %v602
    %v605 = vmul.f32 %v595, %v603
    %v607 = vsel %vm83, %v604, 0
    %609 = vmatpush.msra.mxu0 0.0
    %610 = vmatpush.msra.mxu0 0.0
    %611 = vmatpush.msra.mxu0 0.0
    %612 = vmatpush.msra.mxu0 0.0
    %613 = vmatpush.msra.mxu0 0.0
    %614 = vmatpush.msra.mxu0 0.0
    %615 = vmatpush.msra.mxu0 0.0
    %616 = vmatpush.msra.mxu0 0.0
    %617 = vmatpush.msra.mxu0 0.0
    %618 = vmatpush.msra.mxu0 0.0
    %619 = vmatpush.msra.mxu0 0.0
    %620 = vmatpush.msra.mxu0 0.0
    %621 = vmatpush.msra.mxu0 0.0
    %622 = vmatpush.msra.mxu0 0.0
    %623 = vmatpush.msra.mxu0 0.0
    %624 = vmatpush.msra.mxu0 %v523
    %625 = vmatmul.f32.gmra.mxu0 %v607
    %v626 = vpop.f32.mrf.mxu0
    %v627 = vadd.f32 0.0, %v626
    %628 = vdwg.mxu0
    %v630 = vsel %vm83, %v605, 0
    %632 = vmatpush.msra.mxu0 0.0
    %633 = vmatpush.msra.mxu0 0.0
    %634 = vmatpush.msra.mxu0 0.0
    %635 = vmatpush.msra.mxu0 0.0
    %636 = vmatpush.msra.mxu0 0.0
    %637 = vmatpush.msra.mxu0 0.0
    %638 = vmatpush.msra.mxu0 0.0
    %639 = vmatpush.msra.mxu0 0.0
    %640 = vmatpush.msra.mxu0 0.0
    %641 = vmatpush.msra.mxu0 0.0
    %642 = vmatpush.msra.mxu0 0.0
    %643 = vmatpush.msra.mxu0 0.0
    %644 = vmatpush.msra.mxu0 0.0
    %645 = vmatpush.msra.mxu0 0.0
    %646 = vmatpush.msra.mxu0 0.0
    %647 = vmatpush.msra.mxu0 %v526
    %648 = vmatmul.f32.gmra.mxu0 %v630
    %v649 = vpop.f32.mrf.mxu0
    %v650 = vadd.f32 0.0, %v649
    %651 = vdwg.mxu0
    %v653 = vsel %vm280, %v627, 0
    %v656 = vsel %vm280, %v650, 0
    %658 = vmatpush.msra.mxu0 0.0
    %659 = vmatpush.msra.mxu0 0.0
    %660 = vmatpush.msra.mxu0 0.0
    %661 = vmatpush.msra.mxu0 0.0
    %662 = vmatpush.msra.mxu0 0.0
    %663 = vmatpush.msra.mxu0 0.0
    %664 = vmatpush.msra.mxu0 0.0
    %665 = vmatpush.msra.mxu0 0.0
    %666 = vmatpush.msra.mxu0 0.0
    %667 = vmatpush.msra.mxu0 0.0
    %668 = vmatpush.msra.mxu0 0.0
    %669 = vmatpush.msra.mxu0 0.0
    %670 = vmatpush.msra.mxu0 0.0
    %671 = vmatpush.msra.mxu0 0.0
    %672 = vmatpush.msra.mxu0 %v203
    %673 = vmatpush.msra.mxu0 %v202
    %674 = vmatmul.f32.gmra.mxu0 %v653
    %v675 = vpop.f32.mrf.mxu0
    %v676 = vadd.f32 0.0, %v675
    %677 = vmatmul.f32.gmra.mxu0 %v656
    %v678 = vpop.f32.mrf.mxu0
    %v679 = vadd.f32 0.0, %v678
    %680 = vdwg.mxu0
    %v682 = vsel %vm280, %v386, 0
    %v685 = vsel %vm280, %v409, 0
    %687 = vmatpush.msra.mxu0 0.0
    %688 = vmatpush.msra.mxu0 0.0
    %689 = vmatpush.msra.mxu0 0.0
    %690 = vmatpush.msra.mxu0 0.0
    %691 = vmatpush.msra.mxu0 0.0
    %692 = vmatpush.msra.mxu0 0.0
    %693 = vmatpush.msra.mxu0 0.0
    %694 = vmatpush.msra.mxu0 0.0
    %695 = vmatpush.msra.mxu0 0.0
    %696 = vmatpush.msra.mxu0 0.0
    %697 = vmatpush.msra.mxu0 0.0
    %698 = vmatpush.msra.mxu0 0.0
    %699 = vmatpush.msra.mxu0 0.0
    %700 = vmatpush.msra.mxu0 0.0
    %701 = vmatpush.msra.mxu0 %v201
    %702 = vmatpush.msra.mxu0 %v200
    %703 = vmatmul.f32.gmra.mxu0 %v682
    %v704 = vpop.f32.mrf.mxu0
    %v705 = vadd.f32 %v676, %v704
    %706 = vmatmul.f32.gmra.mxu0 %v685
    %v707 = vpop.f32.mrf.mxu0
    %v708 = vadd.f32 %v679, %v707
    %709 = vdwg.mxu0
    %v710 = vadd.f32 %v72, %v705
    %v711 = vadd.f32 %v73, %v708
    %v712 = vld [vmem:[%s8] sm:$0x1]
    %v713 = vld [vmem:[%s8 + $0x1] sm:$0x1]
    %v714 = vsel %vm204, %v710, 0.0
    %715 = vadd.xlane.f32.xlu0 %v714
    %v716 = vpop.xlane.xlu0 %715
    %v717 = vsel %vm204, %v711, 0.0
    %718 = vadd.xlane.f32.xlu0 %v717
    %v719 = vpop.xlane.xlu0 %718
    %v720 = vrcp.pop 32.0
    %v721 = vmul.f32 32.0, %v720
    %v722 = vsub.f32 1.0, %v721
    %v723 = vmul.f32 %v720, %v722
    %v724 = vadd.f32 %v720, %v723
    %vm725 = vweird.f32 %v720
    %v726 = vsel %vm725, %v720, %v724
    %v727 = vmul.f32 %v716, %v726
    %v728 = vmul.f32 %v719, %v726
    %v729 = vsub.f32 %v710, %v727
    %v730 = vsub.f32 %v711, %v728
    %v731 = vmul.f32 %v729, %v729
    %v732 = vmul.f32 %v730, %v730
    %v733 = vsel %vm204, %v731, 0.0
    %734 = vadd.xlane.f32.xlu0 %v733
    %v735 = vpop.xlane.xlu0 %734
    %v736 = vsel %vm204, %v732, 0.0
    %737 = vadd.xlane.f32.xlu0 %v736
    %v738 = vpop.xlane.xlu0 %737
    %v739 = vmul.f32 %v735, %v726
    %v740 = vmul.f32 %v738, %v726
    %v741 = vadd.f32 %v739, 1e-06
    %v742 = vadd.f32 %v740, 1e-06
    %v743 = vrsqrt.pop %v741
    %v744 = vmul.f32 %v743, %v741
    %v745 = vmul.f32 %v744, %v743
    %v746 = vmul.f32 0.5, %v745
    %v747 = vsub.f32 1.5, %v746
    %v748 = vmul.f32 %v743, %v747
    %vm749 = vweird.f32 %v741
    %vm750 = vweird.f32 %v743
    %vm751 = vmor %vm749, %vm750
    %v752 = vsel %vm751, %v743, %v748
    %v753 = vrsqrt.pop %v742
    %v754 = vmul.f32 %v753, %v742
    %v755 = vmul.f32 %v754, %v753
    %v756 = vmul.f32 0.5, %v755
    %v757 = vsub.f32 1.5, %v756
    %v758 = vmul.f32 %v753, %v757
    %vm759 = vweird.f32 %v742
    %vm760 = vweird.f32 %v753
    %vm761 = vmor %vm759, %vm760
    %v762 = vsel %vm761, %v753, %v758
    %v763 = vmul.f32 %v729, %v752
    %v764 = vmul.f32 %v730, %v762
    %v765 = vperm.slane %v712, 0
    %v766 = vmul.f32 %v763, %v765
    %v767 = vmul.f32 %v764, %v765
    %v768 = vperm.slane %v713, 0
    %v769 = vadd.f32 %v766, %v768
    %v770 = vadd.f32 %v767, %v768
    %v771 = vld [vmem:[%s9] sm:$0xff]
    %v772 = vld [vmem:[%s9 + $0x8] sm:$0xff]
    %v773 = vld [vmem:[%s9 + $0x10] sm:$0xff]
    %v774 = vld [vmem:[%s9 + $0x18] sm:$0xff]
    %v776 = vsel %vm204, %v769, 0
    %v779 = vsel %vm204, %v770, 0
    %781 = vmatpush.msra.mxu0 0.0
    %782 = vmatpush.msra.mxu0 0.0
    %783 = vmatpush.msra.mxu0 0.0
    %784 = vmatpush.msra.mxu0 0.0
    %785 = vmatpush.msra.mxu0 0.0
    %786 = vmatpush.msra.mxu0 0.0
    %787 = vmatpush.msra.mxu0 0.0
    %788 = vmatpush.msra.mxu0 0.0
    %789 = vmatpush.msra.mxu0 0.0
    %790 = vmatpush.msra.mxu0 0.0
    %791 = vmatpush.msra.mxu0 0.0
    %792 = vmatpush.msra.mxu0 0.0
    %793 = vmatpush.msra.mxu0 %v774
    %794 = vmatpush.msra.mxu0 %v773
    %795 = vmatpush.msra.mxu0 %v772
    %796 = vmatpush.msra.mxu0 %v771
    %797 = vmatmul.f32.gmra.mxu0 %v776
    %v798 = vpop.f32.mrf.mxu0
    %v799 = vadd.f32 0.0, %v798
    %800 = vmatmul.f32.gmra.mxu0 %v779
    %v801 = vpop.f32.mrf.mxu0
    %v802 = vadd.f32 0.0, %v801
    %803 = vdwg.mxu0
    %v804 = vmax.f32 %v799, 0.0
    %v805 = vmax.f32 %v802, 0.0
    %v806 = vld [vmem:[%s10] sm:$0xff]
    %v807 = vld [vmem:[%s10 + $0x8] sm:$0xff]
    %v808 = vld [vmem:[%s10 + $0x10] sm:$0xff]
    %v809 = vld [vmem:[%s10 + $0x18] sm:$0xff]
    %v810 = vld [vmem:[%s10 + $0x20] sm:$0xff]
    %v811 = vld [vmem:[%s10 + $0x28] sm:$0xff]
    %v812 = vld [vmem:[%s10 + $0x30] sm:$0xff]
    %v813 = vld [vmem:[%s10 + $0x38] sm:$0xff]
    %vm814 = vcmask 523264
    %v816 = vsel %vm814, %v804, 0
    %v819 = vsel %vm814, %v805, 0
    %821 = vmatpush.msra.mxu0 0.0
    %822 = vmatpush.msra.mxu0 0.0
    %823 = vmatpush.msra.mxu0 0.0
    %824 = vmatpush.msra.mxu0 0.0
    %825 = vmatpush.msra.mxu0 0.0
    %826 = vmatpush.msra.mxu0 0.0
    %827 = vmatpush.msra.mxu0 0.0
    %828 = vmatpush.msra.mxu0 0.0
    %829 = vmatpush.msra.mxu0 %v813
    %830 = vmatpush.msra.mxu0 %v812
    %831 = vmatpush.msra.mxu0 %v811
    %832 = vmatpush.msra.mxu0 %v810
    %833 = vmatpush.msra.mxu0 %v809
    %834 = vmatpush.msra.mxu0 %v808
    %835 = vmatpush.msra.mxu0 %v807
    %836 = vmatpush.msra.mxu0 %v806
    %837 = vmatmul.f32.gmra.mxu0 %v816
    %v838 = vpop.f32.mrf.mxu0
    %v839 = vadd.f32 0.0, %v838
    %840 = vmatmul.f32.gmra.mxu0 %v819
    %v841 = vpop.f32.mrf.mxu0
    %v842 = vadd.f32 0.0, %v841
    %843 = vdwg.mxu0
    %v844 = vadd.f32 %v769, %v839
    %v845 = vadd.f32 %v770, %v842
    %v846 = vld [vmem:[%s8 + $0x2] sm:$0x1]
    %v847 = vld [vmem:[%s8 + $0x3] sm:$0x1]
    %v848 = vsel %vm204, %v844, 0.0
    %849 = vadd.xlane.f32.xlu0 %v848
    %v850 = vpop.xlane.xlu0 %849
    %v851 = vsel %vm204, %v845, 0.0
    %852 = vadd.xlane.f32.xlu0 %v851
    %v853 = vpop.xlane.xlu0 %852
    %v854 = vmul.f32 %v850, %v726
    %v855 = vmul.f32 %v853, %v726
    %v856 = vsub.f32 %v844, %v854
    %v857 = vsub.f32 %v845, %v855
    %v858 = vmul.f32 %v856, %v856
    %v859 = vmul.f32 %v857, %v857
    %v860 = vsel %vm204, %v858, 0.0
    %861 = vadd.xlane.f32.xlu0 %v860
    %v862 = vpop.xlane.xlu0 %861
    %v863 = vsel %vm204, %v859, 0.0
    %864 = vadd.xlane.f32.xlu0 %v863
    %v865 = vpop.xlane.xlu0 %864
    %v866 = vmul.f32 %v862, %v726
    %v867 = vmul.f32 %v865, %v726
    %v868 = vadd.f32 %v866, 1e-06
    %v869 = vadd.f32 %v867, 1e-06
    %v870 = vrsqrt.pop %v868
    %v871 = vmul.f32 %v870, %v868
    %v872 = vmul.f32 %v871, %v870
    %v873 = vmul.f32 0.5, %v872
    %v874 = vsub.f32 1.5, %v873
    %v875 = vmul.f32 %v870, %v874
    %vm876 = vweird.f32 %v868
    %vm877 = vweird.f32 %v870
    %vm878 = vmor %vm876, %vm877
    %v879 = vsel %vm878, %v870, %v875
    %v880 = vrsqrt.pop %v869
    %v881 = vmul.f32 %v880, %v869
    %v882 = vmul.f32 %v881, %v880
    %v883 = vmul.f32 0.5, %v882
    %v884 = vsub.f32 1.5, %v883
    %v885 = vmul.f32 %v880, %v884
    %vm886 = vweird.f32 %v869
    %vm887 = vweird.f32 %v880
    %vm888 = vmor %vm886, %vm887
    %v889 = vsel %vm888, %v880, %v885
    %v890 = vmul.f32 %v856, %v879
    %v891 = vmul.f32 %v857, %v889
    %v892 = vperm.slane %v846, 0
    %v893 = vmul.f32 %v890, %v892
    %v894 = vmul.f32 %v891, %v892
    %v895 = vperm.slane %v847, 0
    %v896 = vadd.f32 %v893, %v895
    %v897 = vadd.f32 %v894, %v895
    %v898 = vld [vmem:[%s1] sm:$0xff]
    %v899 = vld [vmem:[%s1 + $0x8] sm:$0xff]
    %s900 = scalar_lea.vmem %s5, 128
    %v901 = vld [vmem:[%s900] sm:$0xff]
    %v902 = vld [vmem:[%s900 + $0x8] sm:$0xff]
    %v903 = vld [vmem:[%s900 + $0x10] sm:$0xff]
    %v904 = vld [vmem:[%s900 + $0x18] sm:$0xff]
    %s905 = scalar_lea.vmem %s6, 64
    %v906 = vld [vmem:[%s905] sm:$0xff]
    %v907 = vld [vmem:[%s905 + $0x8] sm:$0xff]
    %v908 = vld [vmem:[%s905 + $0x10] sm:$0xff]
    %v909 = vld [vmem:[%s905 + $0x18] sm:$0xff]
    %s910 = scalar_lea.vmem %s7, 16
    %v911 = vld [vmem:[%s910] sm:$0xff]
    %v913 = vsel %vm83, %v906, 0
    %v916 = vsel %vm83, %v907, 0
    %v919 = vsel %vm83, %v908, 0
    %v922 = vsel %vm83, %v909, 0
    %924 = vmatpush.msra.mxu0 0.0
    %925 = vmatpush.msra.mxu0 0.0
    %926 = vmatpush.msra.mxu0 0.0
    %927 = vmatpush.msra.mxu0 0.0
    %928 = vmatpush.msra.mxu0 0.0
    %929 = vmatpush.msra.mxu0 0.0
    %930 = vmatpush.msra.mxu0 0.0
    %931 = vmatpush.msra.mxu0 0.0
    %932 = vmatpush.msra.mxu0 0.0
    %933 = vmatpush.msra.mxu0 0.0
    %934 = vmatpush.msra.mxu0 0.0
    %935 = vmatpush.msra.mxu0 0.0
    %936 = vmatpush.msra.mxu0 0.0
    %937 = vmatpush.msra.mxu0 0.0
    %938 = vmatpush.msra.mxu0 0.0
    %939 = vmatpush.msra.mxu0 %v911
    %940 = vmatmul.f32.gmra.mxu0 %v913
    %v941 = vpop.f32.mrf.mxu0
    %v942 = vadd.f32 0.0, %v941
    %943 = vmatmul.f32.gmra.mxu0 %v916
    %v944 = vpop.f32.mrf.mxu0
    %v945 = vadd.f32 0.0, %v944
    %946 = vmatmul.f32.gmra.mxu0 %v919
    %v947 = vpop.f32.mrf.mxu0
    %v948 = vadd.f32 0.0, %v947
    %949 = vmatmul.f32.gmra.mxu0 %v922
    %v950 = vpop.f32.mrf.mxu0
    %v951 = vadd.f32 0.0, %v950
    %952 = vdwg.mxu0
    %v953 = vmul.f32 %v942, 4.0
    %v954 = vmul.f32 %v945, 4.0
    %v955 = vmul.f32 %v948, 4.0
    %v956 = vmul.f32 %v951, 4.0
    %v957 = vadd.f32 %v901, %v953
    %v958 = vadd.f32 %v902, %v954
    %v959 = vadd.f32 %v903, %v955
    %v960 = vadd.f32 %v904, %v956
    %s961 = scalar_lea.vmem %s5, 160
    %v962 = vld [vmem:[%s961] sm:$0xff]
    %v963 = vld [vmem:[%s961 + $0x8] sm:$0xff]
    %v964 = vld [vmem:[%s961 + $0x10] sm:$0xff]
    %v965 = vld [vmem:[%s961 + $0x18] sm:$0xff]
    %s966 = scalar_lea.vmem %s5, 192
    %v967 = vld [vmem:[%s966] sm:$0xff]
    %v968 = vld [vmem:[%s966 + $0x8] sm:$0xff]
    %v969 = vld [vmem:[%s966 + $0x10] sm:$0xff]
    %v970 = vld [vmem:[%s966 + $0x18] sm:$0xff]
    %s971 = scalar_lea.vmem %s6, 96
    %v972 = vld [vmem:[%s971] sm:$0xff]
    %v973 = vld [vmem:[%s971 + $0x8] sm:$0xff]
    %v974 = vld [vmem:[%s971 + $0x10] sm:$0xff]
    %v975 = vld [vmem:[%s971 + $0x18] sm:$0xff]
    %s976 = scalar_lea.vmem %s7, 24
    %v977 = vld [vmem:[%s976] sm:$0xff]
    %v979 = vsel %vm83, %v972, 0
    %v982 = vsel %vm83, %v973, 0
    %v985 = vsel %vm83, %v974, 0
    %v988 = vsel %vm83, %v975, 0
    %990 = vmatpush.msra.mxu0 0.0
    %991 = vmatpush.msra.mxu0 0.0
    %992 = vmatpush.msra.mxu0 0.0
    %993 = vmatpush.msra.mxu0 0.0
    %994 = vmatpush.msra.mxu0 0.0
    %995 = vmatpush.msra.mxu0 0.0
    %996 = vmatpush.msra.mxu0 0.0
    %997 = vmatpush.msra.mxu0 0.0
    %998 = vmatpush.msra.mxu0 0.0
    %999 = vmatpush.msra.mxu0 0.0
    %1000 = vmatpush.msra.mxu0 0.0
    %1001 = vmatpush.msra.mxu0 0.0
    %1002 = vmatpush.msra.mxu0 0.0
    %1003 = vmatpush.msra.mxu0 0.0
    %1004 = vmatpush.msra.mxu0 0.0
    %1005 = vmatpush.msra.mxu0 %v977
    %1006 = vmatmul.f32.gmra.mxu0 %v979
    %v1007 = vpop.f32.mrf.mxu0
    %v1008 = vadd.f32 0.0, %v1007
    %1009 = vmatmul.f32.gmra.mxu0 %v982
    %v1010 = vpop.f32.mrf.mxu0
    %v1011 = vadd.f32 0.0, %v1010
    %1012 = vmatmul.f32.gmra.mxu0 %v985
    %v1013 = vpop.f32.mrf.mxu0
    %v1014 = vadd.f32 0.0, %v1013
    %1015 = vmatmul.f32.gmra.mxu0 %v988
    %v1016 = vpop.f32.mrf.mxu0
    %v1017 = vadd.f32 0.0, %v1016
    %1018 = vdwg.mxu0
    %v1019 = vmul.f32 %v1008, 4.0
    %v1020 = vmul.f32 %v1011, 4.0
    %v1021 = vmul.f32 %v1014, 4.0
    %v1022 = vmul.f32 %v1017, 4.0
    %v1023 = vadd.f32 %v967, %v1019
    %v1024 = vadd.f32 %v968, %v1020
    %v1025 = vadd.f32 %v969, %v1021
    %v1026 = vadd.f32 %v970, %v1022
    %s1027 = scalar_lea.vmem %s5, 224
    %v1028 = vld [vmem:[%s1027] sm:$0xff]
    %v1029 = vld [vmem:[%s1027 + $0x8] sm:$0xff]
    %v1030 = vld [vmem:[%s1027 + $0x10] sm:$0xff]
    %v1031 = vld [vmem:[%s1027 + $0x18] sm:$0xff]
    %v1033 = vsel %vm204, %v898, 0
    %v1036 = vsel %vm204, %v899, 0
    %1038 = vmatpush.msra.mxu0 0.0
    %1039 = vmatpush.msra.mxu0 0.0
    %1040 = vmatpush.msra.mxu0 0.0
    %1041 = vmatpush.msra.mxu0 0.0
    %1042 = vmatpush.msra.mxu0 0.0
    %1043 = vmatpush.msra.mxu0 0.0
    %1044 = vmatpush.msra.mxu0 0.0
    %1045 = vmatpush.msra.mxu0 0.0
    %1046 = vmatpush.msra.mxu0 0.0
    %1047 = vmatpush.msra.mxu0 0.0
    %1048 = vmatpush.msra.mxu0 0.0
    %1049 = vmatpush.msra.mxu0 0.0
    %1050 = vmatpush.msra.mxu0 %v960
    %1051 = vmatpush.msra.mxu0 %v959
    %1052 = vmatpush.msra.mxu0 %v958
    %1053 = vmatpush.msra.mxu0 %v957
    %1054 = vmatmul.f32.gmra.mxu0 %v1033
    %v1055 = vpop.f32.mrf.mxu0
    %v1056 = vadd.f32 0.0, %v1055
    %1057 = vmatmul.f32.gmra.mxu0 %v1036
    %v1058 = vpop.f32.mrf.mxu0
    %v1059 = vadd.f32 0.0, %v1058
    %1060 = vdwg.mxu0
    %1061 = vmatpush.msra.mxu0 0.0
    %1062 = vmatpush.msra.mxu0 0.0
    %1063 = vmatpush.msra.mxu0 0.0
    %1064 = vmatpush.msra.mxu0 0.0
    %1065 = vmatpush.msra.mxu0 0.0
    %1066 = vmatpush.msra.mxu0 0.0
    %1067 = vmatpush.msra.mxu0 0.0
    %1068 = vmatpush.msra.mxu0 0.0
    %1069 = vmatpush.msra.mxu0 0.0
    %1070 = vmatpush.msra.mxu0 0.0
    %1071 = vmatpush.msra.mxu0 0.0
    %1072 = vmatpush.msra.mxu0 0.0
    %1073 = vmatpush.msra.mxu0 %v965
    %1074 = vmatpush.msra.mxu0 %v964
    %1075 = vmatpush.msra.mxu0 %v963
    %1076 = vmatpush.msra.mxu0 %v962
    %1077 = vmatmul.f32.gmra.mxu0 %v1033
    %v1078 = vpop.f32.mrf.mxu0
    %v1079 = vadd.f32 0.0, %v1078
    %1080 = vmatmul.f32.gmra.mxu0 %v1036
    %v1081 = vpop.f32.mrf.mxu0
    %v1082 = vadd.f32 0.0, %v1081
    %1083 = vdwg.mxu0
    %1084 = vmatpush.msra.mxu0 0.0
    %1085 = vmatpush.msra.mxu0 0.0
    %1086 = vmatpush.msra.mxu0 0.0
    %1087 = vmatpush.msra.mxu0 0.0
    %1088 = vmatpush.msra.mxu0 0.0
    %1089 = vmatpush.msra.mxu0 0.0
    %1090 = vmatpush.msra.mxu0 0.0
    %1091 = vmatpush.msra.mxu0 0.0
    %1092 = vmatpush.msra.mxu0 0.0
    %1093 = vmatpush.msra.mxu0 0.0
    %1094 = vmatpush.msra.mxu0 0.0
    %1095 = vmatpush.msra.mxu0 0.0
    %1096 = vmatpush.msra.mxu0 %v1026
    %1097 = vmatpush.msra.mxu0 %v1025
    %1098 = vmatpush.msra.mxu0 %v1024
    %1099 = vmatpush.msra.mxu0 %v1023
    %1100 = vmatmul.f32.gmra.mxu0 %v1033
    %v1101 = vpop.f32.mrf.mxu0
    %v1102 = vadd.f32 0.0, %v1101
    %1103 = vmatmul.f32.gmra.mxu0 %v1036
    %v1104 = vpop.f32.mrf.mxu0
    %v1105 = vadd.f32 0.0, %v1104
    %1106 = vdwg.mxu0
    %v1108 = vsel %vm280, %v1056, 0
    %v1111 = vsel %vm280, %v1079, 0
    %1113 = vmatpush.xpose.msra.mxu0 0.0
    %1114 = vmatpush.xpose.msra.mxu0 0.0
    %1115 = vmatpush.xpose.msra.mxu0 0.0
    %1116 = vmatpush.xpose.msra.mxu0 0.0
    %1117 = vmatpush.xpose.msra.mxu0 0.0
    %1118 = vmatpush.xpose.msra.mxu0 0.0
    %1119 = vmatpush.xpose.msra.mxu0 0.0
    %1120 = vmatpush.xpose.msra.mxu0 0.0
    %1121 = vmatpush.xpose.msra.mxu0 0.0
    %1122 = vmatpush.xpose.msra.mxu0 0.0
    %1123 = vmatpush.xpose.msra.mxu0 0.0
    %1124 = vmatpush.xpose.msra.mxu0 0.0
    %1125 = vmatpush.xpose.msra.mxu0 0.0
    %1126 = vmatpush.xpose.msra.mxu0 0.0
    %1127 = vmatpush.xpose.msra.mxu0 0.0
    %1128 = vmatpush.xpose.msra.mxu0 %v1111
    %1129 = vmatmul.f32.gmra.mxu0 %v1108
    %v1130 = vpop.f32.mrf.mxu0
    %v1131 = vadd.f32 0.0, %v1130
    %1132 = vdwg.mxu0
    %v1134 = vsel %vm280, %v1059, 0
    %v1137 = vsel %vm280, %v1082, 0
    %1139 = vmatpush.xpose.msra.mxu0 0.0
    %1140 = vmatpush.xpose.msra.mxu0 0.0
    %1141 = vmatpush.xpose.msra.mxu0 0.0
    %1142 = vmatpush.xpose.msra.mxu0 0.0
    %1143 = vmatpush.xpose.msra.mxu0 0.0
    %1144 = vmatpush.xpose.msra.mxu0 0.0
    %1145 = vmatpush.xpose.msra.mxu0 0.0
    %1146 = vmatpush.xpose.msra.mxu0 0.0
    %1147 = vmatpush.xpose.msra.mxu0 0.0
    %1148 = vmatpush.xpose.msra.mxu0 0.0
    %1149 = vmatpush.xpose.msra.mxu0 0.0
    %1150 = vmatpush.xpose.msra.mxu0 0.0
    %1151 = vmatpush.xpose.msra.mxu0 0.0
    %1152 = vmatpush.xpose.msra.mxu0 0.0
    %1153 = vmatpush.xpose.msra.mxu0 0.0
    %1154 = vmatpush.xpose.msra.mxu0 %v1137
    %1155 = vmatmul.f32.gmra.mxu0 %v1134
    %v1156 = vpop.f32.mrf.mxu0
    %v1157 = vadd.f32 0.0, %v1156
    %1158 = vdwg.mxu0
    %v1159 = vmul.f32 %v1131, 0.25
    %v1160 = vmul.f32 %v1157, 0.25
    %v1161 = vadd.f32 %v1159, %v70
    %v1162 = vadd.f32 %v1160, %v71
    %v1163 = vsel %vm83, %v1161, -inf
    %1164 = vmax.xlane.f32.xlu0 %v1163
    %v1165 = vpop.xlane.xlu0 %1164
    %v1166 = vsel %vm83, %v1162, -inf
    %1167 = vmax.xlane.f32.xlu0 %v1166
    %v1168 = vpop.xlane.xlu0 %1167
    %v1169 = vsub.f32 %v1161, %v1165
    %v1170 = vsub.f32 %v1162, %v1168
    %v1171 = vmul.f32 %v1169, 1.442695
    %v1172 = vpow.pop %v1171
    %v1173 = vmul.f32 %v1170, 1.442695
    %v1174 = vpow.pop %v1173
    %v1175 = vsel %vm83, %v1172, 0.0
    %1176 = vadd.xlane.f32.xlu0 %v1175
    %v1177 = vpop.xlane.xlu0 %1176
    %v1178 = vsel %vm83, %v1174, 0.0
    %1179 = vadd.xlane.f32.xlu0 %v1178
    %v1180 = vpop.xlane.xlu0 %1179
    %v1181 = vrcp.pop %v1177
    %v1182 = vrcp.pop %v1180
    %v1183 = vmul.f32 %v1172, %v1181
    %v1184 = vmul.f32 %v1174, %v1182
    %v1186 = vsel %vm83, %v1183, 0
    %1188 = vmatpush.msra.mxu0 0.0
    %1189 = vmatpush.msra.mxu0 0.0
    %1190 = vmatpush.msra.mxu0 0.0
    %1191 = vmatpush.msra.mxu0 0.0
    %1192 = vmatpush.msra.mxu0 0.0
    %1193 = vmatpush.msra.mxu0 0.0
    %1194 = vmatpush.msra.mxu0 0.0
    %1195 = vmatpush.msra.mxu0 0.0
    %1196 = vmatpush.msra.mxu0 0.0
    %1197 = vmatpush.msra.mxu0 0.0
    %1198 = vmatpush.msra.mxu0 0.0
    %1199 = vmatpush.msra.mxu0 0.0
    %1200 = vmatpush.msra.mxu0 0.0
    %1201 = vmatpush.msra.mxu0 0.0
    %1202 = vmatpush.msra.mxu0 0.0
    %1203 = vmatpush.msra.mxu0 %v1102
    %1204 = vmatmul.f32.gmra.mxu0 %v1186
    %v1205 = vpop.f32.mrf.mxu0
    %v1206 = vadd.f32 0.0, %v1205
    %1207 = vdwg.mxu0
    %v1209 = vsel %vm83, %v1184, 0
    %1211 = vmatpush.msra.mxu0 0.0
    %1212 = vmatpush.msra.mxu0 0.0
    %1213 = vmatpush.msra.mxu0 0.0
    %1214 = vmatpush.msra.mxu0 0.0
    %1215 = vmatpush.msra.mxu0 0.0
    %1216 = vmatpush.msra.mxu0 0.0
    %1217 = vmatpush.msra.mxu0 0.0
    %1218 = vmatpush.msra.mxu0 0.0
    %1219 = vmatpush.msra.mxu0 0.0
    %1220 = vmatpush.msra.mxu0 0.0
    %1221 = vmatpush.msra.mxu0 0.0
    %1222 = vmatpush.msra.mxu0 0.0
    %1223 = vmatpush.msra.mxu0 0.0
    %1224 = vmatpush.msra.mxu0 0.0
    %1225 = vmatpush.msra.mxu0 0.0
    %1226 = vmatpush.msra.mxu0 %v1105
    %1227 = vmatmul.f32.gmra.mxu0 %v1209
    %v1228 = vpop.f32.mrf.mxu0
    %v1229 = vadd.f32 0.0, %v1228
    %1230 = vdwg.mxu0
    %1235 = vrot.lane.b32.xlu0 %v957, 112
    %v1236 = vpop.permute.xlu0 %1235
    %1237 = vrot.lane.b32.xlu0 %v958, 112
    %v1238 = vpop.permute.xlu0 %1237
    %1239 = vrot.lane.b32.xlu0 %v959, 112
    %v1240 = vpop.permute.xlu0 %1239
    %1241 = vrot.lane.b32.xlu0 %v960, 112
    %v1242 = vpop.permute.xlu0 %1241
    %1247 = vmatpush.msra.mxu0 0.0
    %1248 = vmatpush.msra.mxu0 0.0
    %1249 = vmatpush.msra.mxu0 0.0
    %1250 = vmatpush.msra.mxu0 0.0
    %1251 = vmatpush.msra.mxu0 0.0
    %1252 = vmatpush.msra.mxu0 0.0
    %1253 = vmatpush.msra.mxu0 0.0
    %1254 = vmatpush.msra.mxu0 0.0
    %1255 = vmatpush.msra.mxu0 0.0
    %1256 = vmatpush.msra.mxu0 0.0
    %1257 = vmatpush.msra.mxu0 0.0
    %1258 = vmatpush.msra.mxu0 0.0
    %1259 = vmatpush.msra.mxu0 %v1242
    %1260 = vmatpush.msra.mxu0 %v1240
    %1261 = vmatpush.msra.mxu0 %v1238
    %1262 = vmatpush.msra.mxu0 %v1236
    %1263 = vmatmul.f32.gmra.mxu0 %v1033
    %v1264 = vpop.f32.mrf.mxu0
    %v1265 = vadd.f32 0.0, %v1264
    %1266 = vmatmul.f32.gmra.mxu0 %v1036
    %v1267 = vpop.f32.mrf.mxu0
    %v1268 = vadd.f32 0.0, %v1267
    %1269 = vdwg.mxu0
    %1274 = vrot.lane.b32.xlu0 %v962, 112
    %v1275 = vpop.permute.xlu0 %1274
    %1276 = vrot.lane.b32.xlu0 %v963, 112
    %v1277 = vpop.permute.xlu0 %1276
    %1278 = vrot.lane.b32.xlu0 %v964, 112
    %v1279 = vpop.permute.xlu0 %1278
    %1280 = vrot.lane.b32.xlu0 %v965, 112
    %v1281 = vpop.permute.xlu0 %1280
    %1286 = vmatpush.msra.mxu0 0.0
    %1287 = vmatpush.msra.mxu0 0.0
    %1288 = vmatpush.msra.mxu0 0.0
    %1289 = vmatpush.msra.mxu0 0.0
    %1290 = vmatpush.msra.mxu0 0.0
    %1291 = vmatpush.msra.mxu0 0.0
    %1292 = vmatpush.msra.mxu0 0.0
    %1293 = vmatpush.msra.mxu0 0.0
    %1294 = vmatpush.msra.mxu0 0.0
    %1295 = vmatpush.msra.mxu0 0.0
    %1296 = vmatpush.msra.mxu0 0.0
    %1297 = vmatpush.msra.mxu0 0.0
    %1298 = vmatpush.msra.mxu0 %v1281
    %1299 = vmatpush.msra.mxu0 %v1279
    %1300 = vmatpush.msra.mxu0 %v1277
    %1301 = vmatpush.msra.mxu0 %v1275
    %1302 = vmatmul.f32.gmra.mxu0 %v1033
    %v1303 = vpop.f32.mrf.mxu0
    %v1304 = vadd.f32 0.0, %v1303
    %1305 = vmatmul.f32.gmra.mxu0 %v1036
    %v1306 = vpop.f32.mrf.mxu0
    %v1307 = vadd.f32 0.0, %v1306
    %1308 = vdwg.mxu0
    %1313 = vrot.lane.b32.xlu0 %v1023, 112
    %v1314 = vpop.permute.xlu0 %1313
    %1315 = vrot.lane.b32.xlu0 %v1024, 112
    %v1316 = vpop.permute.xlu0 %1315
    %1317 = vrot.lane.b32.xlu0 %v1025, 112
    %v1318 = vpop.permute.xlu0 %1317
    %1319 = vrot.lane.b32.xlu0 %v1026, 112
    %v1320 = vpop.permute.xlu0 %1319
    %1325 = vmatpush.msra.mxu0 0.0
    %1326 = vmatpush.msra.mxu0 0.0
    %1327 = vmatpush.msra.mxu0 0.0
    %1328 = vmatpush.msra.mxu0 0.0
    %1329 = vmatpush.msra.mxu0 0.0
    %1330 = vmatpush.msra.mxu0 0.0
    %1331 = vmatpush.msra.mxu0 0.0
    %1332 = vmatpush.msra.mxu0 0.0
    %1333 = vmatpush.msra.mxu0 0.0
    %1334 = vmatpush.msra.mxu0 0.0
    %1335 = vmatpush.msra.mxu0 0.0
    %1336 = vmatpush.msra.mxu0 0.0
    %1337 = vmatpush.msra.mxu0 %v1320
    %1338 = vmatpush.msra.mxu0 %v1318
    %1339 = vmatpush.msra.mxu0 %v1316
    %1340 = vmatpush.msra.mxu0 %v1314
    %1341 = vmatmul.f32.gmra.mxu0 %v1033
    %v1342 = vpop.f32.mrf.mxu0
    %v1343 = vadd.f32 0.0, %v1342
    %1344 = vmatmul.f32.gmra.mxu0 %v1036
    %v1345 = vpop.f32.mrf.mxu0
    %v1346 = vadd.f32 0.0, %v1345
    %1347 = vdwg.mxu0
    %v1349 = vsel %vm280, %v1265, 0
    %v1352 = vsel %vm280, %v1304, 0
    %1354 = vmatpush.xpose.msra.mxu0 0.0
    %1355 = vmatpush.xpose.msra.mxu0 0.0
    %1356 = vmatpush.xpose.msra.mxu0 0.0
    %1357 = vmatpush.xpose.msra.mxu0 0.0
    %1358 = vmatpush.xpose.msra.mxu0 0.0
    %1359 = vmatpush.xpose.msra.mxu0 0.0
    %1360 = vmatpush.xpose.msra.mxu0 0.0
    %1361 = vmatpush.xpose.msra.mxu0 0.0
    %1362 = vmatpush.xpose.msra.mxu0 0.0
    %1363 = vmatpush.xpose.msra.mxu0 0.0
    %1364 = vmatpush.xpose.msra.mxu0 0.0
    %1365 = vmatpush.xpose.msra.mxu0 0.0
    %1366 = vmatpush.xpose.msra.mxu0 0.0
    %1367 = vmatpush.xpose.msra.mxu0 0.0
    %1368 = vmatpush.xpose.msra.mxu0 0.0
    %1369 = vmatpush.xpose.msra.mxu0 %v1352
    %1370 = vmatmul.f32.gmra.mxu0 %v1349
    %v1371 = vpop.f32.mrf.mxu0
    %v1372 = vadd.f32 0.0, %v1371
    %1373 = vdwg.mxu0
    %v1375 = vsel %vm280, %v1268, 0
    %v1378 = vsel %vm280, %v1307, 0
    %1380 = vmatpush.xpose.msra.mxu0 0.0
    %1381 = vmatpush.xpose.msra.mxu0 0.0
    %1382 = vmatpush.xpose.msra.mxu0 0.0
    %1383 = vmatpush.xpose.msra.mxu0 0.0
    %1384 = vmatpush.xpose.msra.mxu0 0.0
    %1385 = vmatpush.xpose.msra.mxu0 0.0
    %1386 = vmatpush.xpose.msra.mxu0 0.0
    %1387 = vmatpush.xpose.msra.mxu0 0.0
    %1388 = vmatpush.xpose.msra.mxu0 0.0
    %1389 = vmatpush.xpose.msra.mxu0 0.0
    %1390 = vmatpush.xpose.msra.mxu0 0.0
    %1391 = vmatpush.xpose.msra.mxu0 0.0
    %1392 = vmatpush.xpose.msra.mxu0 0.0
    %1393 = vmatpush.xpose.msra.mxu0 0.0
    %1394 = vmatpush.xpose.msra.mxu0 0.0
    %1395 = vmatpush.xpose.msra.mxu0 %v1378
    %1396 = vmatmul.f32.gmra.mxu0 %v1375
    %v1397 = vpop.f32.mrf.mxu0
    %v1398 = vadd.f32 0.0, %v1397
    %1399 = vdwg.mxu0
    %v1400 = vmul.f32 %v1372, 0.25
    %v1401 = vmul.f32 %v1398, 0.25
    %v1402 = vadd.f32 %v1400, %v70
    %v1403 = vadd.f32 %v1401, %v71
    %v1404 = vsel %vm83, %v1402, -inf
    %1405 = vmax.xlane.f32.xlu0 %v1404
    %v1406 = vpop.xlane.xlu0 %1405
    %v1407 = vsel %vm83, %v1403, -inf
    %1408 = vmax.xlane.f32.xlu0 %v1407
    %v1409 = vpop.xlane.xlu0 %1408
    %v1410 = vsub.f32 %v1402, %v1406
    %v1411 = vsub.f32 %v1403, %v1409
    %v1412 = vmul.f32 %v1410, 1.442695
    %v1413 = vpow.pop %v1412
    %v1414 = vmul.f32 %v1411, 1.442695
    %v1415 = vpow.pop %v1414
    %v1416 = vsel %vm83, %v1413, 0.0
    %1417 = vadd.xlane.f32.xlu0 %v1416
    %v1418 = vpop.xlane.xlu0 %1417
    %v1419 = vsel %vm83, %v1415, 0.0
    %1420 = vadd.xlane.f32.xlu0 %v1419
    %v1421 = vpop.xlane.xlu0 %1420
    %v1422 = vrcp.pop %v1418
    %v1423 = vrcp.pop %v1421
    %v1424 = vmul.f32 %v1413, %v1422
    %v1425 = vmul.f32 %v1415, %v1423
    %v1427 = vsel %vm83, %v1424, 0
    %1429 = vmatpush.msra.mxu0 0.0
    %1430 = vmatpush.msra.mxu0 0.0
    %1431 = vmatpush.msra.mxu0 0.0
    %1432 = vmatpush.msra.mxu0 0.0
    %1433 = vmatpush.msra.mxu0 0.0
    %1434 = vmatpush.msra.mxu0 0.0
    %1435 = vmatpush.msra.mxu0 0.0
    %1436 = vmatpush.msra.mxu0 0.0
    %1437 = vmatpush.msra.mxu0 0.0
    %1438 = vmatpush.msra.mxu0 0.0
    %1439 = vmatpush.msra.mxu0 0.0
    %1440 = vmatpush.msra.mxu0 0.0
    %1441 = vmatpush.msra.mxu0 0.0
    %1442 = vmatpush.msra.mxu0 0.0
    %1443 = vmatpush.msra.mxu0 0.0
    %1444 = vmatpush.msra.mxu0 %v1343
    %1445 = vmatmul.f32.gmra.mxu0 %v1427
    %v1446 = vpop.f32.mrf.mxu0
    %v1447 = vadd.f32 0.0, %v1446
    %1448 = vdwg.mxu0
    %v1450 = vsel %vm83, %v1425, 0
    %1452 = vmatpush.msra.mxu0 0.0
    %1453 = vmatpush.msra.mxu0 0.0
    %1454 = vmatpush.msra.mxu0 0.0
    %1455 = vmatpush.msra.mxu0 0.0
    %1456 = vmatpush.msra.mxu0 0.0
    %1457 = vmatpush.msra.mxu0 0.0
    %1458 = vmatpush.msra.mxu0 0.0
    %1459 = vmatpush.msra.mxu0 0.0
    %1460 = vmatpush.msra.mxu0 0.0
    %1461 = vmatpush.msra.mxu0 0.0
    %1462 = vmatpush.msra.mxu0 0.0
    %1463 = vmatpush.msra.mxu0 0.0
    %1464 = vmatpush.msra.mxu0 0.0
    %1465 = vmatpush.msra.mxu0 0.0
    %1466 = vmatpush.msra.mxu0 0.0
    %1467 = vmatpush.msra.mxu0 %v1346
    %1468 = vmatmul.f32.gmra.mxu0 %v1450
    %v1469 = vpop.f32.mrf.mxu0
    %v1470 = vadd.f32 0.0, %v1469
    %1471 = vdwg.mxu0
    %v1473 = vsel %vm280, %v1447, 0
    %v1476 = vsel %vm280, %v1470, 0
    %1478 = vmatpush.msra.mxu0 0.0
    %1479 = vmatpush.msra.mxu0 0.0
    %1480 = vmatpush.msra.mxu0 0.0
    %1481 = vmatpush.msra.mxu0 0.0
    %1482 = vmatpush.msra.mxu0 0.0
    %1483 = vmatpush.msra.mxu0 0.0
    %1484 = vmatpush.msra.mxu0 0.0
    %1485 = vmatpush.msra.mxu0 0.0
    %1486 = vmatpush.msra.mxu0 0.0
    %1487 = vmatpush.msra.mxu0 0.0
    %1488 = vmatpush.msra.mxu0 0.0
    %1489 = vmatpush.msra.mxu0 0.0
    %1490 = vmatpush.msra.mxu0 0.0
    %1491 = vmatpush.msra.mxu0 0.0
    %1492 = vmatpush.msra.mxu0 %v1031
    %1493 = vmatpush.msra.mxu0 %v1030
    %1494 = vmatmul.f32.gmra.mxu0 %v1473
    %v1495 = vpop.f32.mrf.mxu0
    %v1496 = vadd.f32 0.0, %v1495
    %1497 = vmatmul.f32.gmra.mxu0 %v1476
    %v1498 = vpop.f32.mrf.mxu0
    %v1499 = vadd.f32 0.0, %v1498
    %1500 = vdwg.mxu0
    %v1502 = vsel %vm280, %v1206, 0
    %v1505 = vsel %vm280, %v1229, 0
    %1507 = vmatpush.msra.mxu0 0.0
    %1508 = vmatpush.msra.mxu0 0.0
    %1509 = vmatpush.msra.mxu0 0.0
    %1510 = vmatpush.msra.mxu0 0.0
    %1511 = vmatpush.msra.mxu0 0.0
    %1512 = vmatpush.msra.mxu0 0.0
    %1513 = vmatpush.msra.mxu0 0.0
    %1514 = vmatpush.msra.mxu0 0.0
    %1515 = vmatpush.msra.mxu0 0.0
    %1516 = vmatpush.msra.mxu0 0.0
    %1517 = vmatpush.msra.mxu0 0.0
    %1518 = vmatpush.msra.mxu0 0.0
    %1519 = vmatpush.msra.mxu0 0.0
    %1520 = vmatpush.msra.mxu0 0.0
    %1521 = vmatpush.msra.mxu0 %v1029
    %1522 = vmatpush.msra.mxu0 %v1028
    %1523 = vmatmul.f32.gmra.mxu0 %v1502
    %v1524 = vpop.f32.mrf.mxu0
    %v1525 = vadd.f32 %v1496, %v1524
    %1526 = vmatmul.f32.gmra.mxu0 %v1505
    %v1527 = vpop.f32.mrf.mxu0
    %v1528 = vadd.f32 %v1499, %v1527
    %1529 = vdwg.mxu0
    %v1530 = vadd.f32 %v898, %v1525
    %v1531 = vadd.f32 %v899, %v1528
    %v1532 = vld [vmem:[%s8 + $0x4] sm:$0x1]
    %v1533 = vld [vmem:[%s8 + $0x5] sm:$0x1]
    %v1534 = vsel %vm204, %v1530, 0.0
    %1535 = vadd.xlane.f32.xlu0 %v1534
    %v1536 = vpop.xlane.xlu0 %1535
    %v1537 = vsel %vm204, %v1531, 0.0
    %1538 = vadd.xlane.f32.xlu0 %v1537
    %v1539 = vpop.xlane.xlu0 %1538
    %v1540 = vmul.f32 %v1536, %v726
    %v1541 = vmul.f32 %v1539, %v726
    %v1542 = vsub.f32 %v1530, %v1540
    %v1543 = vsub.f32 %v1531, %v1541
    %v1544 = vmul.f32 %v1542, %v1542
    %v1545 = vmul.f32 %v1543, %v1543
    %v1546 = vsel %vm204, %v1544, 0.0
    %1547 = vadd.xlane.f32.xlu0 %v1546
    %v1548 = vpop.xlane.xlu0 %1547
    %v1549 = vsel %vm204, %v1545, 0.0
    %1550 = vadd.xlane.f32.xlu0 %v1549
    %v1551 = vpop.xlane.xlu0 %1550
    %v1552 = vmul.f32 %v1548, %v726
    %v1553 = vmul.f32 %v1551, %v726
    %v1554 = vadd.f32 %v1552, 1e-06
    %v1555 = vadd.f32 %v1553, 1e-06
    %v1556 = vrsqrt.pop %v1554
    %v1557 = vmul.f32 %v1556, %v1554
    %v1558 = vmul.f32 %v1557, %v1556
    %v1559 = vmul.f32 0.5, %v1558
    %v1560 = vsub.f32 1.5, %v1559
    %v1561 = vmul.f32 %v1556, %v1560
    %vm1562 = vweird.f32 %v1554
    %vm1563 = vweird.f32 %v1556
    %vm1564 = vmor %vm1562, %vm1563
    %v1565 = vsel %vm1564, %v1556, %v1561
    %v1566 = vrsqrt.pop %v1555
    %v1567 = vmul.f32 %v1566, %v1555
    %v1568 = vmul.f32 %v1567, %v1566
    %v1569 = vmul.f32 0.5, %v1568
    %v1570 = vsub.f32 1.5, %v1569
    %v1571 = vmul.f32 %v1566, %v1570
    %vm1572 = vweird.f32 %v1555
    %vm1573 = vweird.f32 %v1566
    %vm1574 = vmor %vm1572, %vm1573
    %v1575 = vsel %vm1574, %v1566, %v1571
    %v1576 = vmul.f32 %v1542, %v1565
    %v1577 = vmul.f32 %v1543, %v1575
    %v1578 = vperm.slane %v1532, 0
    %v1579 = vmul.f32 %v1576, %v1578
    %v1580 = vmul.f32 %v1577, %v1578
    %v1581 = vperm.slane %v1533, 0
    %v1582 = vadd.f32 %v1579, %v1581
    %v1583 = vadd.f32 %v1580, %v1581
    %s1584 = scalar_lea.vmem %s5, 256
    %v1585 = vld [vmem:[%s1584] sm:$0xff]
    %v1586 = vld [vmem:[%s1584 + $0x8] sm:$0xff]
    %v1587 = vld [vmem:[%s1584 + $0x10] sm:$0xff]
    %v1588 = vld [vmem:[%s1584 + $0x18] sm:$0xff]
    %s1589 = scalar_lea.vmem %s6, 128
    %v1590 = vld [vmem:[%s1589] sm:$0xff]
    %v1591 = vld [vmem:[%s1589 + $0x8] sm:$0xff]
    %v1592 = vld [vmem:[%s1589 + $0x10] sm:$0xff]
    %v1593 = vld [vmem:[%s1589 + $0x18] sm:$0xff]
    %s1594 = scalar_lea.vmem %s7, 32
    %v1595 = vld [vmem:[%s1594] sm:$0xff]
    %v1597 = vsel %vm83, %v1590, 0
    %v1600 = vsel %vm83, %v1591, 0
    %v1603 = vsel %vm83, %v1592, 0
    %v1606 = vsel %vm83, %v1593, 0
    %1608 = vmatpush.msra.mxu0 0.0
    %1609 = vmatpush.msra.mxu0 0.0
    %1610 = vmatpush.msra.mxu0 0.0
    %1611 = vmatpush.msra.mxu0 0.0
    %1612 = vmatpush.msra.mxu0 0.0
    %1613 = vmatpush.msra.mxu0 0.0
    %1614 = vmatpush.msra.mxu0 0.0
    %1615 = vmatpush.msra.mxu0 0.0
    %1616 = vmatpush.msra.mxu0 0.0
    %1617 = vmatpush.msra.mxu0 0.0
    %1618 = vmatpush.msra.mxu0 0.0
    %1619 = vmatpush.msra.mxu0 0.0
    %1620 = vmatpush.msra.mxu0 0.0
    %1621 = vmatpush.msra.mxu0 0.0
    %1622 = vmatpush.msra.mxu0 0.0
    %1623 = vmatpush.msra.mxu0 %v1595
    %1624 = vmatmul.f32.gmra.mxu0 %v1597
    %v1625 = vpop.f32.mrf.mxu0
    %v1626 = vadd.f32 0.0, %v1625
    %1627 = vmatmul.f32.gmra.mxu0 %v1600
    %v1628 = vpop.f32.mrf.mxu0
    %v1629 = vadd.f32 0.0, %v1628
    %1630 = vmatmul.f32.gmra.mxu0 %v1603
    %v1631 = vpop.f32.mrf.mxu0
    %v1632 = vadd.f32 0.0, %v1631
    %1633 = vmatmul.f32.gmra.mxu0 %v1606
    %v1634 = vpop.f32.mrf.mxu0
    %v1635 = vadd.f32 0.0, %v1634
    %1636 = vdwg.mxu0
    %v1637 = vmul.f32 %v1626, 4.0
    %v1638 = vmul.f32 %v1629, 4.0
    %v1639 = vmul.f32 %v1632, 4.0
    %v1640 = vmul.f32 %v1635, 4.0
    %v1641 = vadd.f32 %v1585, %v1637
    %v1642 = vadd.f32 %v1586, %v1638
    %v1643 = vadd.f32 %v1587, %v1639
    %v1644 = vadd.f32 %v1588, %v1640
    %s1645 = scalar_lea.vmem %s5, 288
    %v1646 = vld [vmem:[%s1645] sm:$0xff]
    %v1647 = vld [vmem:[%s1645 + $0x8] sm:$0xff]
    %v1648 = vld [vmem:[%s1645 + $0x10] sm:$0xff]
    %v1649 = vld [vmem:[%s1645 + $0x18] sm:$0xff]
    %s1650 = scalar_lea.vmem %s5, 320
    %v1651 = vld [vmem:[%s1650] sm:$0xff]
    %v1652 = vld [vmem:[%s1650 + $0x8] sm:$0xff]
    %v1653 = vld [vmem:[%s1650 + $0x10] sm:$0xff]
    %v1654 = vld [vmem:[%s1650 + $0x18] sm:$0xff]
    %s1655 = scalar_lea.vmem %s6, 160
    %v1656 = vld [vmem:[%s1655] sm:$0xff]
    %v1657 = vld [vmem:[%s1655 + $0x8] sm:$0xff]
    %v1658 = vld [vmem:[%s1655 + $0x10] sm:$0xff]
    %v1659 = vld [vmem:[%s1655 + $0x18] sm:$0xff]
    %s1660 = scalar_lea.vmem %s7, 40
    %v1661 = vld [vmem:[%s1660] sm:$0xff]
    %v1663 = vsel %vm83, %v1656, 0
    %v1666 = vsel %vm83, %v1657, 0
    %v1669 = vsel %vm83, %v1658, 0
    %v1672 = vsel %vm83, %v1659, 0
    %1674 = vmatpush.msra.mxu0 0.0
    %1675 = vmatpush.msra.mxu0 0.0
    %1676 = vmatpush.msra.mxu0 0.0
    %1677 = vmatpush.msra.mxu0 0.0
    %1678 = vmatpush.msra.mxu0 0.0
    %1679 = vmatpush.msra.mxu0 0.0
    %1680 = vmatpush.msra.mxu0 0.0
    %1681 = vmatpush.msra.mxu0 0.0
    %1682 = vmatpush.msra.mxu0 0.0
    %1683 = vmatpush.msra.mxu0 0.0
    %1684 = vmatpush.msra.mxu0 0.0
    %1685 = vmatpush.msra.mxu0 0.0
    %1686 = vmatpush.msra.mxu0 0.0
    %1687 = vmatpush.msra.mxu0 0.0
    %1688 = vmatpush.msra.mxu0 0.0
    %1689 = vmatpush.msra.mxu0 %v1661
    %1690 = vmatmul.f32.gmra.mxu0 %v1663
    %v1691 = vpop.f32.mrf.mxu0
    %v1692 = vadd.f32 0.0, %v1691
    %1693 = vmatmul.f32.gmra.mxu0 %v1666
    %v1694 = vpop.f32.mrf.mxu0
    %v1695 = vadd.f32 0.0, %v1694
    %1696 = vmatmul.f32.gmra.mxu0 %v1669
    %v1697 = vpop.f32.mrf.mxu0
    %v1698 = vadd.f32 0.0, %v1697
    %1699 = vmatmul.f32.gmra.mxu0 %v1672
    %v1700 = vpop.f32.mrf.mxu0
    %v1701 = vadd.f32 0.0, %v1700
    %1702 = vdwg.mxu0
    %v1703 = vmul.f32 %v1692, 4.0
    %v1704 = vmul.f32 %v1695, 4.0
    %v1705 = vmul.f32 %v1698, 4.0
    %v1706 = vmul.f32 %v1701, 4.0
    %v1707 = vadd.f32 %v1651, %v1703
    %v1708 = vadd.f32 %v1652, %v1704
    %v1709 = vadd.f32 %v1653, %v1705
    %v1710 = vadd.f32 %v1654, %v1706
    %s1711 = scalar_lea.vmem %s5, 352
    %v1712 = vld [vmem:[%s1711] sm:$0xff]
    %v1713 = vld [vmem:[%s1711 + $0x8] sm:$0xff]
    %v1714 = vld [vmem:[%s1711 + $0x10] sm:$0xff]
    %v1715 = vld [vmem:[%s1711 + $0x18] sm:$0xff]
    %v1717 = vsel %vm204, %v1582, 0
    %v1720 = vsel %vm204, %v1583, 0
    %1722 = vmatpush.msra.mxu0 0.0
    %1723 = vmatpush.msra.mxu0 0.0
    %1724 = vmatpush.msra.mxu0 0.0
    %1725 = vmatpush.msra.mxu0 0.0
    %1726 = vmatpush.msra.mxu0 0.0
    %1727 = vmatpush.msra.mxu0 0.0
    %1728 = vmatpush.msra.mxu0 0.0
    %1729 = vmatpush.msra.mxu0 0.0
    %1730 = vmatpush.msra.mxu0 0.0
    %1731 = vmatpush.msra.mxu0 0.0
    %1732 = vmatpush.msra.mxu0 0.0
    %1733 = vmatpush.msra.mxu0 0.0
    %1734 = vmatpush.msra.mxu0 %v1644
    %1735 = vmatpush.msra.mxu0 %v1643
    %1736 = vmatpush.msra.mxu0 %v1642
    %1737 = vmatpush.msra.mxu0 %v1641
    %1738 = vmatmul.f32.gmra.mxu0 %v1717
    %v1739 = vpop.f32.mrf.mxu0
    %v1740 = vadd.f32 0.0, %v1739
    %1741 = vmatmul.f32.gmra.mxu0 %v1720
    %v1742 = vpop.f32.mrf.mxu0
    %v1743 = vadd.f32 0.0, %v1742
    %1744 = vdwg.mxu0
    %v1746 = vsel %vm204, %v896, 0
    %v1749 = vsel %vm204, %v897, 0
    %1751 = vmatpush.msra.mxu0 0.0
    %1752 = vmatpush.msra.mxu0 0.0
    %1753 = vmatpush.msra.mxu0 0.0
    %1754 = vmatpush.msra.mxu0 0.0
    %1755 = vmatpush.msra.mxu0 0.0
    %1756 = vmatpush.msra.mxu0 0.0
    %1757 = vmatpush.msra.mxu0 0.0
    %1758 = vmatpush.msra.mxu0 0.0
    %1759 = vmatpush.msra.mxu0 0.0
    %1760 = vmatpush.msra.mxu0 0.0
    %1761 = vmatpush.msra.mxu0 0.0
    %1762 = vmatpush.msra.mxu0 0.0
    %1763 = vmatpush.msra.mxu0 %v1649
    %1764 = vmatpush.msra.mxu0 %v1648
    %1765 = vmatpush.msra.mxu0 %v1647
    %1766 = vmatpush.msra.mxu0 %v1646
    %1767 = vmatmul.f32.gmra.mxu0 %v1746
    %v1768 = vpop.f32.mrf.mxu0
    %v1769 = vadd.f32 0.0, %v1768
    %1770 = vmatmul.f32.gmra.mxu0 %v1749
    %v1771 = vpop.f32.mrf.mxu0
    %v1772 = vadd.f32 0.0, %v1771
    %1773 = vdwg.mxu0
    %1774 = vmatpush.msra.mxu0 0.0
    %1775 = vmatpush.msra.mxu0 0.0
    %1776 = vmatpush.msra.mxu0 0.0
    %1777 = vmatpush.msra.mxu0 0.0
    %1778 = vmatpush.msra.mxu0 0.0
    %1779 = vmatpush.msra.mxu0 0.0
    %1780 = vmatpush.msra.mxu0 0.0
    %1781 = vmatpush.msra.mxu0 0.0
    %1782 = vmatpush.msra.mxu0 0.0
    %1783 = vmatpush.msra.mxu0 0.0
    %1784 = vmatpush.msra.mxu0 0.0
    %1785 = vmatpush.msra.mxu0 0.0
    %1786 = vmatpush.msra.mxu0 %v1710
    %1787 = vmatpush.msra.mxu0 %v1709
    %1788 = vmatpush.msra.mxu0 %v1708
    %1789 = vmatpush.msra.mxu0 %v1707
    %1790 = vmatmul.f32.gmra.mxu0 %v1746
    %v1791 = vpop.f32.mrf.mxu0
    %v1792 = vadd.f32 0.0, %v1791
    %1793 = vmatmul.f32.gmra.mxu0 %v1749
    %v1794 = vpop.f32.mrf.mxu0
    %v1795 = vadd.f32 0.0, %v1794
    %1796 = vdwg.mxu0
    %v1798 = vsel %vm280, %v1740, 0
    %v1801 = vsel %vm280, %v1769, 0
    %1803 = vmatpush.xpose.msra.mxu0 0.0
    %1804 = vmatpush.xpose.msra.mxu0 0.0
    %1805 = vmatpush.xpose.msra.mxu0 0.0
    %1806 = vmatpush.xpose.msra.mxu0 0.0
    %1807 = vmatpush.xpose.msra.mxu0 0.0
    %1808 = vmatpush.xpose.msra.mxu0 0.0
    %1809 = vmatpush.xpose.msra.mxu0 0.0
    %1810 = vmatpush.xpose.msra.mxu0 0.0
    %1811 = vmatpush.xpose.msra.mxu0 0.0
    %1812 = vmatpush.xpose.msra.mxu0 0.0
    %1813 = vmatpush.xpose.msra.mxu0 0.0
    %1814 = vmatpush.xpose.msra.mxu0 0.0
    %1815 = vmatpush.xpose.msra.mxu0 0.0
    %1816 = vmatpush.xpose.msra.mxu0 0.0
    %1817 = vmatpush.xpose.msra.mxu0 0.0
    %1818 = vmatpush.xpose.msra.mxu0 %v1801
    %1819 = vmatmul.f32.gmra.mxu0 %v1798
    %v1820 = vpop.f32.mrf.mxu0
    %v1821 = vadd.f32 0.0, %v1820
    %1822 = vdwg.mxu0
    %v1824 = vsel %vm280, %v1743, 0
    %v1827 = vsel %vm280, %v1772, 0
    %1829 = vmatpush.xpose.msra.mxu0 0.0
    %1830 = vmatpush.xpose.msra.mxu0 0.0
    %1831 = vmatpush.xpose.msra.mxu0 0.0
    %1832 = vmatpush.xpose.msra.mxu0 0.0
    %1833 = vmatpush.xpose.msra.mxu0 0.0
    %1834 = vmatpush.xpose.msra.mxu0 0.0
    %1835 = vmatpush.xpose.msra.mxu0 0.0
    %1836 = vmatpush.xpose.msra.mxu0 0.0
    %1837 = vmatpush.xpose.msra.mxu0 0.0
    %1838 = vmatpush.xpose.msra.mxu0 0.0
    %1839 = vmatpush.xpose.msra.mxu0 0.0
    %1840 = vmatpush.xpose.msra.mxu0 0.0
    %1841 = vmatpush.xpose.msra.mxu0 0.0
    %1842 = vmatpush.xpose.msra.mxu0 0.0
    %1843 = vmatpush.xpose.msra.mxu0 0.0
    %1844 = vmatpush.xpose.msra.mxu0 %v1827
    %1845 = vmatmul.f32.gmra.mxu0 %v1824
    %v1846 = vpop.f32.mrf.mxu0
    %v1847 = vadd.f32 0.0, %v1846
    %1848 = vdwg.mxu0
    %v1849 = vmul.f32 %v1821, 0.25
    %v1850 = vmul.f32 %v1847, 0.25
    %v1851 = vadd.f32 %v1849, %v337
    %v1852 = vadd.f32 %v1850, %v338
    %v1853 = vsel %vm83, %v1851, -inf
    %1854 = vmax.xlane.f32.xlu0 %v1853
    %v1855 = vpop.xlane.xlu0 %1854
    %v1856 = vsel %vm83, %v1852, -inf
    %1857 = vmax.xlane.f32.xlu0 %v1856
    %v1858 = vpop.xlane.xlu0 %1857
    %v1859 = vsub.f32 %v1851, %v1855
    %v1860 = vsub.f32 %v1852, %v1858
    %v1861 = vmul.f32 %v1859, 1.442695
    %v1862 = vpow.pop %v1861
    %v1863 = vmul.f32 %v1860, 1.442695
    %v1864 = vpow.pop %v1863
    %v1865 = vsel %vm83, %v1862, 0.0
    %1866 = vadd.xlane.f32.xlu0 %v1865
    %v1867 = vpop.xlane.xlu0 %1866
    %v1868 = vsel %vm83, %v1864, 0.0
    %1869 = vadd.xlane.f32.xlu0 %v1868
    %v1870 = vpop.xlane.xlu0 %1869
    %v1871 = vrcp.pop %v1867
    %v1872 = vrcp.pop %v1870
    %v1873 = vmul.f32 %v1862, %v1871
    %v1874 = vmul.f32 %v1864, %v1872
    %v1876 = vsel %vm83, %v1873, 0
    %1878 = vmatpush.msra.mxu0 0.0
    %1879 = vmatpush.msra.mxu0 0.0
    %1880 = vmatpush.msra.mxu0 0.0
    %1881 = vmatpush.msra.mxu0 0.0
    %1882 = vmatpush.msra.mxu0 0.0
    %1883 = vmatpush.msra.mxu0 0.0
    %1884 = vmatpush.msra.mxu0 0.0
    %1885 = vmatpush.msra.mxu0 0.0
    %1886 = vmatpush.msra.mxu0 0.0
    %1887 = vmatpush.msra.mxu0 0.0
    %1888 = vmatpush.msra.mxu0 0.0
    %1889 = vmatpush.msra.mxu0 0.0
    %1890 = vmatpush.msra.mxu0 0.0
    %1891 = vmatpush.msra.mxu0 0.0
    %1892 = vmatpush.msra.mxu0 0.0
    %1893 = vmatpush.msra.mxu0 %v1792
    %1894 = vmatmul.f32.gmra.mxu0 %v1876
    %v1895 = vpop.f32.mrf.mxu0
    %v1896 = vadd.f32 0.0, %v1895
    %1897 = vdwg.mxu0
    %v1899 = vsel %vm83, %v1874, 0
    %1901 = vmatpush.msra.mxu0 0.0
    %1902 = vmatpush.msra.mxu0 0.0
    %1903 = vmatpush.msra.mxu0 0.0
    %1904 = vmatpush.msra.mxu0 0.0
    %1905 = vmatpush.msra.mxu0 0.0
    %1906 = vmatpush.msra.mxu0 0.0
    %1907 = vmatpush.msra.mxu0 0.0
    %1908 = vmatpush.msra.mxu0 0.0
    %1909 = vmatpush.msra.mxu0 0.0
    %1910 = vmatpush.msra.mxu0 0.0
    %1911 = vmatpush.msra.mxu0 0.0
    %1912 = vmatpush.msra.mxu0 0.0
    %1913 = vmatpush.msra.mxu0 0.0
    %1914 = vmatpush.msra.mxu0 0.0
    %1915 = vmatpush.msra.mxu0 0.0
    %1916 = vmatpush.msra.mxu0 %v1795
    %1917 = vmatmul.f32.gmra.mxu0 %v1899
    %v1918 = vpop.f32.mrf.mxu0
    %v1919 = vadd.f32 0.0, %v1918
    %1920 = vdwg.mxu0
    %1925 = vrot.lane.b32.xlu0 %v1641, 112
    %v1926 = vpop.permute.xlu0 %1925
    %1927 = vrot.lane.b32.xlu0 %v1642, 112
    %v1928 = vpop.permute.xlu0 %1927
    %1929 = vrot.lane.b32.xlu0 %v1643, 112
    %v1930 = vpop.permute.xlu0 %1929
    %1931 = vrot.lane.b32.xlu0 %v1644, 112
    %v1932 = vpop.permute.xlu0 %1931
    %1937 = vmatpush.msra.mxu0 0.0
    %1938 = vmatpush.msra.mxu0 0.0
    %1939 = vmatpush.msra.mxu0 0.0
    %1940 = vmatpush.msra.mxu0 0.0
    %1941 = vmatpush.msra.mxu0 0.0
    %1942 = vmatpush.msra.mxu0 0.0
    %1943 = vmatpush.msra.mxu0 0.0
    %1944 = vmatpush.msra.mxu0 0.0
    %1945 = vmatpush.msra.mxu0 0.0
    %1946 = vmatpush.msra.mxu0 0.0
    %1947 = vmatpush.msra.mxu0 0.0
    %1948 = vmatpush.msra.mxu0 0.0
    %1949 = vmatpush.msra.mxu0 %v1932
    %1950 = vmatpush.msra.mxu0 %v1930
    %1951 = vmatpush.msra.mxu0 %v1928
    %1952 = vmatpush.msra.mxu0 %v1926
    %1953 = vmatmul.f32.gmra.mxu0 %v1717
    %v1954 = vpop.f32.mrf.mxu0
    %v1955 = vadd.f32 0.0, %v1954
    %1956 = vmatmul.f32.gmra.mxu0 %v1720
    %v1957 = vpop.f32.mrf.mxu0
    %v1958 = vadd.f32 0.0, %v1957
    %1959 = vdwg.mxu0
    %1964 = vrot.lane.b32.xlu0 %v1646, 112
    %v1965 = vpop.permute.xlu0 %1964
    %1966 = vrot.lane.b32.xlu0 %v1647, 112
    %v1967 = vpop.permute.xlu0 %1966
    %1968 = vrot.lane.b32.xlu0 %v1648, 112
    %v1969 = vpop.permute.xlu0 %1968
    %1970 = vrot.lane.b32.xlu0 %v1649, 112
    %v1971 = vpop.permute.xlu0 %1970
    %1976 = vmatpush.msra.mxu0 0.0
    %1977 = vmatpush.msra.mxu0 0.0
    %1978 = vmatpush.msra.mxu0 0.0
    %1979 = vmatpush.msra.mxu0 0.0
    %1980 = vmatpush.msra.mxu0 0.0
    %1981 = vmatpush.msra.mxu0 0.0
    %1982 = vmatpush.msra.mxu0 0.0
    %1983 = vmatpush.msra.mxu0 0.0
    %1984 = vmatpush.msra.mxu0 0.0
    %1985 = vmatpush.msra.mxu0 0.0
    %1986 = vmatpush.msra.mxu0 0.0
    %1987 = vmatpush.msra.mxu0 0.0
    %1988 = vmatpush.msra.mxu0 %v1971
    %1989 = vmatpush.msra.mxu0 %v1969
    %1990 = vmatpush.msra.mxu0 %v1967
    %1991 = vmatpush.msra.mxu0 %v1965
    %1992 = vmatmul.f32.gmra.mxu0 %v1746
    %v1993 = vpop.f32.mrf.mxu0
    %v1994 = vadd.f32 0.0, %v1993
    %1995 = vmatmul.f32.gmra.mxu0 %v1749
    %v1996 = vpop.f32.mrf.mxu0
    %v1997 = vadd.f32 0.0, %v1996
    %1998 = vdwg.mxu0
    %2003 = vrot.lane.b32.xlu0 %v1707, 112
    %v2004 = vpop.permute.xlu0 %2003
    %2005 = vrot.lane.b32.xlu0 %v1708, 112
    %v2006 = vpop.permute.xlu0 %2005
    %2007 = vrot.lane.b32.xlu0 %v1709, 112
    %v2008 = vpop.permute.xlu0 %2007
    %2009 = vrot.lane.b32.xlu0 %v1710, 112
    %v2010 = vpop.permute.xlu0 %2009
    %2015 = vmatpush.msra.mxu0 0.0
    %2016 = vmatpush.msra.mxu0 0.0
    %2017 = vmatpush.msra.mxu0 0.0
    %2018 = vmatpush.msra.mxu0 0.0
    %2019 = vmatpush.msra.mxu0 0.0
    %2020 = vmatpush.msra.mxu0 0.0
    %2021 = vmatpush.msra.mxu0 0.0
    %2022 = vmatpush.msra.mxu0 0.0
    %2023 = vmatpush.msra.mxu0 0.0
    %2024 = vmatpush.msra.mxu0 0.0
    %2025 = vmatpush.msra.mxu0 0.0
    %2026 = vmatpush.msra.mxu0 0.0
    %2027 = vmatpush.msra.mxu0 %v2010
    %2028 = vmatpush.msra.mxu0 %v2008
    %2029 = vmatpush.msra.mxu0 %v2006
    %2030 = vmatpush.msra.mxu0 %v2004
    %2031 = vmatmul.f32.gmra.mxu0 %v1746
    %v2032 = vpop.f32.mrf.mxu0
    %v2033 = vadd.f32 0.0, %v2032
    %2034 = vmatmul.f32.gmra.mxu0 %v1749
    %v2035 = vpop.f32.mrf.mxu0
    %v2036 = vadd.f32 0.0, %v2035
    %2037 = vdwg.mxu0
    %v2039 = vsel %vm280, %v1955, 0
    %v2042 = vsel %vm280, %v1994, 0
    %2044 = vmatpush.xpose.msra.mxu0 0.0
    %2045 = vmatpush.xpose.msra.mxu0 0.0
    %2046 = vmatpush.xpose.msra.mxu0 0.0
    %2047 = vmatpush.xpose.msra.mxu0 0.0
    %2048 = vmatpush.xpose.msra.mxu0 0.0
    %2049 = vmatpush.xpose.msra.mxu0 0.0
    %2050 = vmatpush.xpose.msra.mxu0 0.0
    %2051 = vmatpush.xpose.msra.mxu0 0.0
    %2052 = vmatpush.xpose.msra.mxu0 0.0
    %2053 = vmatpush.xpose.msra.mxu0 0.0
    %2054 = vmatpush.xpose.msra.mxu0 0.0
    %2055 = vmatpush.xpose.msra.mxu0 0.0
    %2056 = vmatpush.xpose.msra.mxu0 0.0
    %2057 = vmatpush.xpose.msra.mxu0 0.0
    %2058 = vmatpush.xpose.msra.mxu0 0.0
    %2059 = vmatpush.xpose.msra.mxu0 %v2042
    %2060 = vmatmul.f32.gmra.mxu0 %v2039
    %v2061 = vpop.f32.mrf.mxu0
    %v2062 = vadd.f32 0.0, %v2061
    %2063 = vdwg.mxu0
    %v2065 = vsel %vm280, %v1958, 0
    %v2068 = vsel %vm280, %v1997, 0
    %2070 = vmatpush.xpose.msra.mxu0 0.0
    %2071 = vmatpush.xpose.msra.mxu0 0.0
    %2072 = vmatpush.xpose.msra.mxu0 0.0
    %2073 = vmatpush.xpose.msra.mxu0 0.0
    %2074 = vmatpush.xpose.msra.mxu0 0.0
    %2075 = vmatpush.xpose.msra.mxu0 0.0
    %2076 = vmatpush.xpose.msra.mxu0 0.0
    %2077 = vmatpush.xpose.msra.mxu0 0.0
    %2078 = vmatpush.xpose.msra.mxu0 0.0
    %2079 = vmatpush.xpose.msra.mxu0 0.0
    %2080 = vmatpush.xpose.msra.mxu0 0.0
    %2081 = vmatpush.xpose.msra.mxu0 0.0
    %2082 = vmatpush.xpose.msra.mxu0 0.0
    %2083 = vmatpush.xpose.msra.mxu0 0.0
    %2084 = vmatpush.xpose.msra.mxu0 0.0
    %2085 = vmatpush.xpose.msra.mxu0 %v2068
    %2086 = vmatmul.f32.gmra.mxu0 %v2065
    %v2087 = vpop.f32.mrf.mxu0
    %v2088 = vadd.f32 0.0, %v2087
    %2089 = vdwg.mxu0
    %v2090 = vmul.f32 %v2062, 0.25
    %v2091 = vmul.f32 %v2088, 0.25
    %v2092 = vadd.f32 %v2090, %v337
    %v2093 = vadd.f32 %v2091, %v338
    %v2094 = vsel %vm83, %v2092, -inf
    %2095 = vmax.xlane.f32.xlu0 %v2094
    %v2096 = vpop.xlane.xlu0 %2095
    %v2097 = vsel %vm83, %v2093, -inf
    %2098 = vmax.xlane.f32.xlu0 %v2097
    %v2099 = vpop.xlane.xlu0 %2098
    %v2100 = vsub.f32 %v2092, %v2096
    %v2101 = vsub.f32 %v2093, %v2099
    %v2102 = vmul.f32 %v2100, 1.442695
    %v2103 = vpow.pop %v2102
    %v2104 = vmul.f32 %v2101, 1.442695
    %v2105 = vpow.pop %v2104
    %v2106 = vsel %vm83, %v2103, 0.0
    %2107 = vadd.xlane.f32.xlu0 %v2106
    %v2108 = vpop.xlane.xlu0 %2107
    %v2109 = vsel %vm83, %v2105, 0.0
    %2110 = vadd.xlane.f32.xlu0 %v2109
    %v2111 = vpop.xlane.xlu0 %2110
    %v2112 = vrcp.pop %v2108
    %v2113 = vrcp.pop %v2111
    %v2114 = vmul.f32 %v2103, %v2112
    %v2115 = vmul.f32 %v2105, %v2113
    %v2117 = vsel %vm83, %v2114, 0
    %2119 = vmatpush.msra.mxu0 0.0
    %2120 = vmatpush.msra.mxu0 0.0
    %2121 = vmatpush.msra.mxu0 0.0
    %2122 = vmatpush.msra.mxu0 0.0
    %2123 = vmatpush.msra.mxu0 0.0
    %2124 = vmatpush.msra.mxu0 0.0
    %2125 = vmatpush.msra.mxu0 0.0
    %2126 = vmatpush.msra.mxu0 0.0
    %2127 = vmatpush.msra.mxu0 0.0
    %2128 = vmatpush.msra.mxu0 0.0
    %2129 = vmatpush.msra.mxu0 0.0
    %2130 = vmatpush.msra.mxu0 0.0
    %2131 = vmatpush.msra.mxu0 0.0
    %2132 = vmatpush.msra.mxu0 0.0
    %2133 = vmatpush.msra.mxu0 0.0
    %2134 = vmatpush.msra.mxu0 %v2033
    %2135 = vmatmul.f32.gmra.mxu0 %v2117
    %v2136 = vpop.f32.mrf.mxu0
    %v2137 = vadd.f32 0.0, %v2136
    %2138 = vdwg.mxu0
    %v2140 = vsel %vm83, %v2115, 0
    %2142 = vmatpush.msra.mxu0 0.0
    %2143 = vmatpush.msra.mxu0 0.0
    %2144 = vmatpush.msra.mxu0 0.0
    %2145 = vmatpush.msra.mxu0 0.0
    %2146 = vmatpush.msra.mxu0 0.0
    %2147 = vmatpush.msra.mxu0 0.0
    %2148 = vmatpush.msra.mxu0 0.0
    %2149 = vmatpush.msra.mxu0 0.0
    %2150 = vmatpush.msra.mxu0 0.0
    %2151 = vmatpush.msra.mxu0 0.0
    %2152 = vmatpush.msra.mxu0 0.0
    %2153 = vmatpush.msra.mxu0 0.0
    %2154 = vmatpush.msra.mxu0 0.0
    %2155 = vmatpush.msra.mxu0 0.0
    %2156 = vmatpush.msra.mxu0 0.0
    %2157 = vmatpush.msra.mxu0 %v2036
    %2158 = vmatmul.f32.gmra.mxu0 %v2140
    %v2159 = vpop.f32.mrf.mxu0
    %v2160 = vadd.f32 0.0, %v2159
    %2161 = vdwg.mxu0
    %v2163 = vsel %vm280, %v2137, 0
    %v2166 = vsel %vm280, %v2160, 0
    %2168 = vmatpush.msra.mxu0 0.0
    %2169 = vmatpush.msra.mxu0 0.0
    %2170 = vmatpush.msra.mxu0 0.0
    %2171 = vmatpush.msra.mxu0 0.0
    %2172 = vmatpush.msra.mxu0 0.0
    %2173 = vmatpush.msra.mxu0 0.0
    %2174 = vmatpush.msra.mxu0 0.0
    %2175 = vmatpush.msra.mxu0 0.0
    %2176 = vmatpush.msra.mxu0 0.0
    %2177 = vmatpush.msra.mxu0 0.0
    %2178 = vmatpush.msra.mxu0 0.0
    %2179 = vmatpush.msra.mxu0 0.0
    %2180 = vmatpush.msra.mxu0 0.0
    %2181 = vmatpush.msra.mxu0 0.0
    %2182 = vmatpush.msra.mxu0 %v1715
    %2183 = vmatpush.msra.mxu0 %v1714
    %2184 = vmatmul.f32.gmra.mxu0 %v2163
    %v2185 = vpop.f32.mrf.mxu0
    %v2186 = vadd.f32 0.0, %v2185
    %2187 = vmatmul.f32.gmra.mxu0 %v2166
    %v2188 = vpop.f32.mrf.mxu0
    %v2189 = vadd.f32 0.0, %v2188
    %2190 = vdwg.mxu0
    %v2192 = vsel %vm280, %v1896, 0
    %v2195 = vsel %vm280, %v1919, 0
    %2197 = vmatpush.msra.mxu0 0.0
    %2198 = vmatpush.msra.mxu0 0.0
    %2199 = vmatpush.msra.mxu0 0.0
    %2200 = vmatpush.msra.mxu0 0.0
    %2201 = vmatpush.msra.mxu0 0.0
    %2202 = vmatpush.msra.mxu0 0.0
    %2203 = vmatpush.msra.mxu0 0.0
    %2204 = vmatpush.msra.mxu0 0.0
    %2205 = vmatpush.msra.mxu0 0.0
    %2206 = vmatpush.msra.mxu0 0.0
    %2207 = vmatpush.msra.mxu0 0.0
    %2208 = vmatpush.msra.mxu0 0.0
    %2209 = vmatpush.msra.mxu0 0.0
    %2210 = vmatpush.msra.mxu0 0.0
    %2211 = vmatpush.msra.mxu0 %v1713
    %2212 = vmatpush.msra.mxu0 %v1712
    %2213 = vmatmul.f32.gmra.mxu0 %v2192
    %v2214 = vpop.f32.mrf.mxu0
    %v2215 = vadd.f32 %v2186, %v2214
    %2216 = vmatmul.f32.gmra.mxu0 %v2195
    %v2217 = vpop.f32.mrf.mxu0
    %v2218 = vadd.f32 %v2189, %v2217
    %2219 = vdwg.mxu0
    %v2220 = vadd.f32 %v1582, %v2215
    %v2221 = vadd.f32 %v1583, %v2218
    %v2222 = vld [vmem:[%s8 + $0x6] sm:$0x1]
    %v2223 = vld [vmem:[%s8 + $0x7] sm:$0x1]
    %v2224 = vsel %vm204, %v2220, 0.0
    %2225 = vadd.xlane.f32.xlu0 %v2224
    %v2226 = vpop.xlane.xlu0 %2225
    %v2227 = vsel %vm204, %v2221, 0.0
    %2228 = vadd.xlane.f32.xlu0 %v2227
    %v2229 = vpop.xlane.xlu0 %2228
    %v2230 = vmul.f32 %v2226, %v726
    %v2231 = vmul.f32 %v2229, %v726
    %v2232 = vsub.f32 %v2220, %v2230
    %v2233 = vsub.f32 %v2221, %v2231
    %v2234 = vmul.f32 %v2232, %v2232
    %v2235 = vmul.f32 %v2233, %v2233
    %v2236 = vsel %vm204, %v2234, 0.0
    %2237 = vadd.xlane.f32.xlu0 %v2236
    %v2238 = vpop.xlane.xlu0 %2237
    %v2239 = vsel %vm204, %v2235, 0.0
    %2240 = vadd.xlane.f32.xlu0 %v2239
    %v2241 = vpop.xlane.xlu0 %2240
    %v2242 = vmul.f32 %v2238, %v726
    %v2243 = vmul.f32 %v2241, %v726
    %v2244 = vadd.f32 %v2242, 1e-06
    %v2245 = vadd.f32 %v2243, 1e-06
    %v2246 = vrsqrt.pop %v2244
    %v2247 = vmul.f32 %v2246, %v2244
    %v2248 = vmul.f32 %v2247, %v2246
    %v2249 = vmul.f32 0.5, %v2248
    %v2250 = vsub.f32 1.5, %v2249
    %v2251 = vmul.f32 %v2246, %v2250
    %vm2252 = vweird.f32 %v2244
    %vm2253 = vweird.f32 %v2246
    %vm2254 = vmor %vm2252, %vm2253
    %v2255 = vsel %vm2254, %v2246, %v2251
    %v2256 = vrsqrt.pop %v2245
    %v2257 = vmul.f32 %v2256, %v2245
    %v2258 = vmul.f32 %v2257, %v2256
    %v2259 = vmul.f32 0.5, %v2258
    %v2260 = vsub.f32 1.5, %v2259
    %v2261 = vmul.f32 %v2256, %v2260
    %vm2262 = vweird.f32 %v2245
    %vm2263 = vweird.f32 %v2256
    %vm2264 = vmor %vm2262, %vm2263
    %v2265 = vsel %vm2264, %v2256, %v2261
    %v2266 = vmul.f32 %v2232, %v2255
    %v2267 = vmul.f32 %v2233, %v2265
    %v2268 = vperm.slane %v2222, 0
    %v2269 = vmul.f32 %v2266, %v2268
    %v2270 = vmul.f32 %v2267, %v2268
    %v2271 = vperm.slane %v2223, 0
    %v2272 = vadd.f32 %v2269, %v2271
    %v2273 = vadd.f32 %v2270, %v2271
    %s2274 = scalar_lea.vmem %s9, 32
    %v2275 = vld [vmem:[%s2274] sm:$0xff]
    %v2276 = vld [vmem:[%s2274 + $0x8] sm:$0xff]
    %v2277 = vld [vmem:[%s2274 + $0x10] sm:$0xff]
    %v2278 = vld [vmem:[%s2274 + $0x18] sm:$0xff]
    %v2280 = vsel %vm204, %v2272, 0
    %v2283 = vsel %vm204, %v2273, 0
    %2285 = vmatpush.msra.mxu0 0.0
    %2286 = vmatpush.msra.mxu0 0.0
    %2287 = vmatpush.msra.mxu0 0.0
    %2288 = vmatpush.msra.mxu0 0.0
    %2289 = vmatpush.msra.mxu0 0.0
    %2290 = vmatpush.msra.mxu0 0.0
    %2291 = vmatpush.msra.mxu0 0.0
    %2292 = vmatpush.msra.mxu0 0.0
    %2293 = vmatpush.msra.mxu0 0.0
    %2294 = vmatpush.msra.mxu0 0.0
    %2295 = vmatpush.msra.mxu0 0.0
    %2296 = vmatpush.msra.mxu0 0.0
    %2297 = vmatpush.msra.mxu0 %v2278
    %2298 = vmatpush.msra.mxu0 %v2277
    %2299 = vmatpush.msra.mxu0 %v2276
    %2300 = vmatpush.msra.mxu0 %v2275
    %2301 = vmatmul.f32.gmra.mxu0 %v2280
    %v2302 = vpop.f32.mrf.mxu0
    %v2303 = vadd.f32 0.0, %v2302
    %2304 = vmatmul.f32.gmra.mxu0 %v2283
    %v2305 = vpop.f32.mrf.mxu0
    %v2306 = vadd.f32 0.0, %v2305
    %2307 = vdwg.mxu0
    %v2308 = vmax.f32 %v2303, 0.0
    %v2309 = vmax.f32 %v2306, 0.0
    %s2310 = scalar_lea.vmem %s10, 64
    %v2311 = vld [vmem:[%s2310] sm:$0xff]
    %v2312 = vld [vmem:[%s2310 + $0x8] sm:$0xff]
    %v2313 = vld [vmem:[%s2310 + $0x10] sm:$0xff]
    %v2314 = vld [vmem:[%s2310 + $0x18] sm:$0xff]
    %v2315 = vld [vmem:[%s2310 + $0x20] sm:$0xff]
    %v2316 = vld [vmem:[%s2310 + $0x28] sm:$0xff]
    %v2317 = vld [vmem:[%s2310 + $0x30] sm:$0xff]
    %v2318 = vld [vmem:[%s2310 + $0x38] sm:$0xff]
    %v2320 = vsel %vm814, %v2308, 0
    %v2323 = vsel %vm814, %v2309, 0
    %2325 = vmatpush.msra.mxu0 0.0
    %2326 = vmatpush.msra.mxu0 0.0
    %2327 = vmatpush.msra.mxu0 0.0
    %2328 = vmatpush.msra.mxu0 0.0
    %2329 = vmatpush.msra.mxu0 0.0
    %2330 = vmatpush.msra.mxu0 0.0
    %2331 = vmatpush.msra.mxu0 0.0
    %2332 = vmatpush.msra.mxu0 0.0
    %2333 = vmatpush.msra.mxu0 %v2318
    %2334 = vmatpush.msra.mxu0 %v2317
    %2335 = vmatpush.msra.mxu0 %v2316
    %2336 = vmatpush.msra.mxu0 %v2315
    %2337 = vmatpush.msra.mxu0 %v2314
    %2338 = vmatpush.msra.mxu0 %v2313
    %2339 = vmatpush.msra.mxu0 %v2312
    %2340 = vmatpush.msra.mxu0 %v2311
    %2341 = vmatmul.f32.gmra.mxu0 %v2320
    %v2342 = vpop.f32.mrf.mxu0
    %v2343 = vadd.f32 0.0, %v2342
    %2344 = vmatmul.f32.gmra.mxu0 %v2323
    %v2345 = vpop.f32.mrf.mxu0
    %v2346 = vadd.f32 0.0, %v2345
    %2347 = vdwg.mxu0
    %v2348 = vadd.f32 %v2272, %v2343
    %v2349 = vadd.f32 %v2273, %v2346
    %v2350 = vld [vmem:[%s8 + $0x8] sm:$0x1]
    %v2351 = vld [vmem:[%s8 + $0x9] sm:$0x1]
    %v2352 = vsel %vm204, %v2348, 0.0
    %2353 = vadd.xlane.f32.xlu0 %v2352
    %v2354 = vpop.xlane.xlu0 %2353
    %v2355 = vsel %vm204, %v2349, 0.0
    %2356 = vadd.xlane.f32.xlu0 %v2355
    %v2357 = vpop.xlane.xlu0 %2356
    %v2358 = vmul.f32 %v2354, %v726
    %v2359 = vmul.f32 %v2357, %v726
    %v2360 = vsub.f32 %v2348, %v2358
    %v2361 = vsub.f32 %v2349, %v2359
    %v2362 = vmul.f32 %v2360, %v2360
    %v2363 = vmul.f32 %v2361, %v2361
    %v2364 = vsel %vm204, %v2362, 0.0
    %2365 = vadd.xlane.f32.xlu0 %v2364
    %v2366 = vpop.xlane.xlu0 %2365
    %v2367 = vsel %vm204, %v2363, 0.0
    %2368 = vadd.xlane.f32.xlu0 %v2367
    %v2369 = vpop.xlane.xlu0 %2368
    %v2370 = vmul.f32 %v2366, %v726
    %v2371 = vmul.f32 %v2369, %v726
    %v2372 = vadd.f32 %v2370, 1e-06
    %v2373 = vadd.f32 %v2371, 1e-06
    %v2374 = vrsqrt.pop %v2372
    %v2375 = vmul.f32 %v2374, %v2372
    %v2376 = vmul.f32 %v2375, %v2374
    %v2377 = vmul.f32 0.5, %v2376
    %v2378 = vsub.f32 1.5, %v2377
    %v2379 = vmul.f32 %v2374, %v2378
    %vm2380 = vweird.f32 %v2372
    %vm2381 = vweird.f32 %v2374
    %vm2382 = vmor %vm2380, %vm2381
    %v2383 = vsel %vm2382, %v2374, %v2379
    %v2384 = vrsqrt.pop %v2373
    %v2385 = vmul.f32 %v2384, %v2373
    %v2386 = vmul.f32 %v2385, %v2384
    %v2387 = vmul.f32 0.5, %v2386
    %v2388 = vsub.f32 1.5, %v2387
    %v2389 = vmul.f32 %v2384, %v2388
    %vm2390 = vweird.f32 %v2373
    %vm2391 = vweird.f32 %v2384
    %vm2392 = vmor %vm2390, %vm2391
    %v2393 = vsel %vm2392, %v2384, %v2389
    %v2394 = vmul.f32 %v2360, %v2383
    %v2395 = vmul.f32 %v2361, %v2393
    %v2396 = vperm.slane %v2350, 0
    %v2397 = vmul.f32 %v2394, %v2396
    %v2398 = vmul.f32 %v2395, %v2396
    %v2399 = vperm.slane %v2351, 0
    %v2400 = vadd.f32 %v2397, %v2399
    %v2401 = vadd.f32 %v2398, %v2399
    %v2402 = vld [vmem:[%s11] sm:$0xff]
    %v2403 = vld [vmem:[%s11 + $0x8] sm:$0xff]
    %v2404 = vld [vmem:[%s11 + $0x10] sm:$0xff]
    %v2405 = vld [vmem:[%s11 + $0x18] sm:$0xff]
    %v2407 = vsel %vm204, %v2400, 0
    %v2410 = vsel %vm204, %v2401, 0
    %2412 = vmatpush.msra.mxu0 0.0
    %2413 = vmatpush.msra.mxu0 0.0
    %2414 = vmatpush.msra.mxu0 0.0
    %2415 = vmatpush.msra.mxu0 0.0
    %2416 = vmatpush.msra.mxu0 0.0
    %2417 = vmatpush.msra.mxu0 0.0
    %2418 = vmatpush.msra.mxu0 0.0
    %2419 = vmatpush.msra.mxu0 0.0
    %2420 = vmatpush.msra.mxu0 0.0
    %2421 = vmatpush.msra.mxu0 0.0
    %2422 = vmatpush.msra.mxu0 0.0
    %2423 = vmatpush.msra.mxu0 0.0
    %2424 = vmatpush.msra.mxu0 %v2405
    %2425 = vmatpush.msra.mxu0 %v2404
    %2426 = vmatpush.msra.mxu0 %v2403
    %2427 = vmatpush.msra.mxu0 %v2402
    %2428 = vmatmul.f32.gmra.mxu0 %v2407
    %v2429 = vpop.f32.mrf.mxu0
    %v2430 = vadd.f32 0.0, %v2429
    %2431 = vmatmul.f32.gmra.mxu0 %v2410
    %v2432 = vpop.f32.mrf.mxu0
    %v2433 = vadd.f32 0.0, %v2432
    %2434 = vdwg.mxu0
    %2435 = vst.msk [vmem:[#allocation2] sm:$0xff] %vm814, %v2430
    %2436 = vst.msk [vmem:[#allocation2 + $0x8] sm:$0xff] %vm814, %v2433
    %v2437 = vld [vmem:[%s4] sm:$0xff]
    %v2438 = vld [vmem:[%s4 + $0x8] sm:$0xff]
    %vm2439 = vcmp.ge.s32.totalorder %v2437, 0
    %vm2440 = vcmp.ge.s32.totalorder %v2438, 0
    %v2441 = vsel %vm2439, 1, 0
    %v2442 = vsel %vm2440, 1, 0
    %v2443 = vcvt.s32.f32 %v2441
    %v2444 = vcvt.s32.f32 %v2442
    %v2445 = vsel %vm814, %v2430, -inf
    %2446 = vmax.xlane.f32.xlu0 %v2445
    %v2447 = vpop.xlane.xlu0 %2446
    %v2448 = vsel %vm814, %v2433, -inf
    %2449 = vmax.xlane.f32.xlu0 %v2448
    %v2450 = vpop.xlane.xlu0 %2449
    %v2451 = vsub.f32 %v2430, %v2447
    %v2452 = vsub.f32 %v2433, %v2450
    %v2453 = vmul.f32 %v2451, 1.442695
    %v2454 = vpow.pop %v2453
    %v2455 = vmul.f32 %v2452, 1.442695
    %v2456 = vpow.pop %v2455
    %v2457 = vsel %vm814, %v2454, 0.0
    %2458 = vadd.xlane.f32.xlu0 %v2457
    %v2459 = vpop.xlane.xlu0 %2458
    %v2460 = vsel %vm814, %v2456, 0.0
    %2461 = vadd.xlane.f32.xlu0 %v2460
    %v2462 = vpop.xlane.xlu0 %2461
    %v2463 = vlog2.pop %v2459
    %v2464 = vmul.f32 %v2463, 0.6931472
    %v2465 = vlog2.pop %v2462
    %v2466 = vmul.f32 %v2465, 0.6931472
    %v2467 = vadd.f32 %v2447, %v2464
    %v2468 = vadd.f32 %v2450, %v2466
    %2469 = vset.pattern.permute.xlu0 0
    %2470 = vperm.xlu0 %2469, %v2437
    %v2471 = vpop.permute.xlu0 %2470
    %2472 = vset.pattern.permute.xlu0 0
    %2473 = vperm.xlu0 %2472, %v2438
    %v2474 = vpop.permute.xlu0 %2473
    %vm2475 = vcmp.eq.s32.totalorder %v56, %v2471
    %vm2476 = vcmp.eq.s32.totalorder %v56, %v2474
    %v2477 = vsel %vm2475, %v2430, 0.0
    %v2478 = vsel %vm2476, %v2433, 0.0
    %v2479 = vsel %vm814, %v2477, 0.0
    %2480 = vadd.xlane.f32.xlu0 %v2479
    %v2481 = vpop.xlane.xlu0 %2480
    %v2482 = vsel %vm814, %v2478, 0.0
    %2483 = vadd.xlane.f32.xlu0 %v2482
    %v2484 = vpop.xlane.xlu0 %2483
    %v2485 = vsub.f32 %v2467, %v2481
    %v2486 = vsub.f32 %v2468, %v2484
    %v2487 = vmul.f32 %v2485, %v2443
    %v2488 = vmul.f32 %v2486, %v2444
    %vm2489 = vcmask 7168
    %v2490 = vsel %vm2489, %v2487, 0.0
    %v2491 = vsel %vm2489, %v2488, 0.0
    %v2492 = vadd.f32 %v2490, %v2491
    %2493 = vadd.xlane.f32.xlu0 %v2492
    %v2494 = vpop.xlane.xlu0 %2493
    %v2495 = vrot.slane %v2494, 4
    %v2496 = vadd.f32 %v2494, %v2495
    %v2497 = vrot.slane %v2496, 2
    %v2498 = vadd.f32 %v2496, %v2497
    %v2499 = vrot.slane %v2498, 1
    %v2500 = vadd.f32 %v2498, %v2499
    %s2501 = vtos %v2500
    %v2502 = vsel %vm2489, %v2443, 0.0
    %v2503 = vsel %vm2489, %v2444, 0.0
    %v2504 = vadd.f32 %v2502, %v2503
    %2505 = vadd.xlane.f32.xlu0 %v2504
    %v2506 = vpop.xlane.xlu0 %2505
    %v2507 = vrot.slane %v2506, 4
    %v2508 = vadd.f32 %v2506, %v2507
    %v2509 = vrot.slane %v2508, 2
    %v2510 = vadd.f32 %v2508, %v2509
    %v2511 = vrot.slane %v2510, 1
    %v2512 = vadd.f32 %v2510, %v2511
    %s2513 = vtos %v2512
    %s2514 = smax.f32 %s2513, 1.0
    %v2515 = vstv %s2514
    %v2516 = vrcp.pop %v2515
    %v2517 = vmul.f32 %v2515, %v2516
    %v2518 = vsub.f32 1.0, %v2517
    %v2519 = vmul.f32 %v2516, %v2518
    %v2520 = vadd.f32 %v2516, %v2519
    %vm2521 = vweird.f32 %v2515
    %vm2522 = vweird.f32 %v2516
    %vm2523 = vmor %vm2521, %vm2522
    %v2524 = vsel %vm2523, %v2516, %v2520
    %v2525 = vand.u32 2147483647, %v2515
    %vm2526 = vcmp.eq.f32.partialorder %v2525, 8.507059e+37
    %v2527 = vand.u32 %v2515, 2147483648
    %v2528 = vor.u32 1.1754944e-38, %v2527
    %v2529 = vsel %vm2526, %v2528, %v2524
    %s2530 = vtos %v2529
    %s2531 = smul.f32 %s2501, %s2530
    %s2532 = scalar_lea.smem [#allocation5], 0
    %2533 = sst [smem:[%s2532]] %s2531
    // Predicated region
    $region50: #{peft_seq2seq_forward.1} parent=1 // pred_check
      _
    $region51: #{peft_seq2seq_forward.1} parent=1 // pred_check_branch
      %2535 = sbr.rel (0) target = $region53
    $region52: #{peft_seq2seq_forward.1} parent=1 // pred_region
      %2537 = vsyncadd [#allocation3], 0
      %s2538 = sshll.u32 [#allocation2], 4
      %s2539 = int_to_ptr.vmem [resolvable:$true] %s2538
      %s2540 = sshll.u32 %s12, 4
      %s2541 = int_to_ptr.hbm [resolvable:$true] %s2540
      %2546 = dma.vmem_to_hbm [thread:$0]  %s2539, 256, %s2541, [#allocation3], 128, 128, 8
    $region53: #{peft_seq2seq_forward.1} parent=1 // pred_fallthru
      _
    // Predicated region
    $region54: #{peft_seq2seq_forward.1} parent=1 // pred_check
      _
    $region55: #{peft_seq2seq_forward.1} parent=1 // pred_check_branch
      %2548 = sbr.rel (0) target = $region57
    $region56: #{peft_seq2seq_forward.1} parent=1 // pred_region
      %2550 = vsyncadd [#allocation4], 0
      %s2552 = sshll.u32 %s13, 4
      %s2553 = int_to_ptr.hbm [resolvable:$true] %s2552
      %2555 = dma.smem_to_hbm [#allocation5], 16, %s2553, [#allocation4]
    $region57: #{peft_seq2seq_forward.1} parent=1 // pred_fallthru
      _
    // Predicated region
    $region58: #{peft_seq2seq_forward.1} parent=1 // pred_check
      _
    $region59: #{peft_seq2seq_forward.1} parent=1 // pred_check_branch
      %2557 = sbr.rel (0) target = $region61
    $region60: #{peft_seq2seq_forward.1} parent=1 // pred_region
      %2559 = dma.done [#allocation3], 256
    $region61: #{peft_seq2seq_forward.1} parent=1 // pred_fallthru
      _
    // Predicated region
    $region62: #{peft_seq2seq_forward.1} parent=1 // pred_check
      _
    $region63: #{peft_seq2seq_forward.1} parent=1 // pred_check_branch
      %2561 = sbr.rel (0) target = $region65
    $region64: #{peft_seq2seq_forward.1} parent=1 // pred_region
      %2563 = dma.done [#allocation4], 16
    $region65: #{peft_seq2seq_forward.1} parent=1 // pred_fallthru
      _
    %2564 = sfence
    %2565 = vsyncpa [#allocation3], 1
    %2566 = vsyncpa [#allocation4], 1

</llo_original>
